<compile_context>
chip_gen: v7x
topology: tpu7x:2x2x1
jax: 0.10.0
libtpu: 0.0.40
codegen_flags: <defaults>
</compile_context>

<pallas_src>
import functools

import jax
import jax.numpy as jnp
from jax import lax
from jax.experimental import pallas as pl
from jax.experimental.pallas import tpu as pltpu

SSN_BANDS = 5
BN_EPS = 1e-5
ALPHA = 10.0  # forward() creates nn.Parameter(torch.tensor(10.0)) fresh every call


def _pact(x, bitwidth):
    # PACT activation + uniform fake-quantization (ActFn.apply(x, alpha, k)).
    # TODO(synk): exact ActFn source not provided; standard PACT clamp+round used
    #             (jnp.round is round-half-even).
    levels = float(2 ** bitwidth - 1)
    y = jnp.clip(x, 0.0, ALPHA)
    scale = levels / ALPHA
    return jnp.round(y * scale) / scale


def _bn_flat(x, gamma, beta, g_mat, gt_mat):
    """Training-mode BatchNorm on a flat (..., W*C) tensor (per-channel batch stats).

    Centered two-pass statistics (mean, then E[(x-mean)^2]).  The group-reduction over
    W inside the flat lane axis and the channel->flat broadcast are tiny f32 matmuls
    (g_mat: (WC, C), gt_mat: (C, WC)); no sublane-splitting reshapes anywhere.
    """
    WC = x.shape[-1]
    C = g_mat.shape[-1]
    W = WC // C
    lead = 1
    for s in x.shape[:-1]:
        lead *= s
    cnt = float(lead * W)

    def _sum_leading(v):
        for _ in range(v.ndim - 2):
            v = jnp.sum(v, axis=0)
        return jnp.sum(v, axis=0, keepdims=True)                           # (1, WC)

    s1 = _sum_leading(x)
    mean_c = jnp.dot(s1, g_mat, preferred_element_type=jnp.float32) / cnt  # (1, C)
    mean_f = jnp.dot(mean_c, gt_mat, preferred_element_type=jnp.float32)   # (1, WC)
    bshape = (1,) * (x.ndim - 1) + (WC,)
    xc = x - mean_f.reshape(bshape)
    s2 = _sum_leading(xc * xc)
    var_c = jnp.dot(s2, g_mat, preferred_element_type=jnp.float32) / cnt   # (1, C) biased
    scale_c = gamma.reshape(1, C) * lax.rsqrt(var_c + BN_EPS)
    shift_c = beta.reshape(1, C) - mean_c * scale_c
    scale_f = jnp.dot(scale_c, gt_mat, preferred_element_type=jnp.float32)  # (1, WC)
    shift_f = jnp.dot(shift_c, gt_mat, preferred_element_type=jnp.float32)  # (1, WC)
    return x * scale_f.reshape(bshape) + shift_f.reshape(bshape)


def _ssn_flat(x, gamma_b, beta_b, g_mat, gt_mat, band, band_t):
    """SubSpectralNorm (5 bands along H) on a flat (N, H, W*C) tensor.

    Band reduction / band->frequency broadcast use (5,H)/(H,5) selector matmuls
    (band, band_t), avoiding reshapes that split the unaligned H=20 sublane axis.
    Centered two-pass statistics, applied as a single elementwise FMA.
    """
    N, H, WC = x.shape
    C = g_mat.shape[-1]
    W = WC // C
    Hs = H // SSN_BANDS
    cnt = float(N * Hs * W)
    s1_h = jnp.sum(x, axis=0)                                               # (H, WC)
    s1_b = jnp.dot(band, s1_h, preferred_element_type=jnp.float32)          # (5, WC)
    mean_c = jnp.dot(s1_b, g_mat, preferred_element_type=jnp.float32) / cnt  # (5, C)
    mean_f = jnp.dot(mean_c, gt_mat, preferred_element_type=jnp.float32)     # (5, WC)
    mean_h = jnp.dot(band_t, mean_f, preferred_element_type=jnp.float32)     # (H, WC)
    xc = x - mean_h[None]
    s2_h = jnp.sum(xc * xc, axis=0)                                           # (H, WC)
    s2_b = jnp.dot(band, s2_h, preferred_element_type=jnp.float32)            # (5, WC)
    var_c = jnp.dot(s2_b, g_mat, preferred_element_type=jnp.float32) / cnt    # (5, C)
    scale_b = gamma_b * lax.rsqrt(var_c + BN_EPS)                             # (5, C)
    shift_b = beta_b - mean_c * scale_b                                       # (5, C)
    scale_f = jnp.dot(scale_b, gt_mat, preferred_element_type=jnp.float32)    # (5, WC)
    shift_f = jnp.dot(shift_b, gt_mat, preferred_element_type=jnp.float32)    # (5, WC)
    scale_h = jnp.dot(band_t, scale_f, preferred_element_type=jnp.float32)    # (H, WC)
    shift_h = jnp.dot(band_t, shift_f, preferred_element_type=jnp.float32)    # (H, WC)
    return x * scale_h[None] + shift_h[None]


def _bcres_kernel(transition, bitwidth, W, C, *refs):
    if transition:
        (x_ref, w_tr_ref, trbn_g_ref, trbn_b_ref,
         wf_ref, ssn_g_ref, ssn_b_ref,
         wt_band_ref, bn_g_ref, bn_b_ref, w_pw_ref,
         g_ref, gt_ref, band_ref, bandt_ref,
         out_ref, pad_ref) = refs
    else:
        (x_ref, wf_ref, ssn_g_ref, ssn_b_ref,
         wt_band_ref, bn_g_ref, bn_b_ref, w_pw_ref,
         g_ref, gt_ref, band_ref, bandt_ref,
         out_ref, pad_ref) = refs

    x0 = x_ref[...]                               # (N, H, W*Cin), flat w-major/c-minor
    N, H, _ = x0.shape
    WC = W * C
    g_mat = g_ref[...]                            # (WC, C)  channel group-reduce
    gt_mat = gt_ref[...]                          # (C, WC)  channel -> flat broadcast
    band = band_ref[...]                          # (5, H)   SSN band selector
    band_t = bandt_ref[...]                       # (H, 5)   band -> frequency broadcast

    # ---- f2: optional transition 1x1 conv + BN + PACT -------------------------
    if transition:
        # 1x1 conv over channels == lane-dense MXU matmul with kron(I_W, w_tr),
        # expressed as a batched (over N) matmul directly on the 3-D slab: no
        # (N*H, WC) reshape, so no sublane relayout for H=20.  bf16 operands, f32 acc.
        w_tr = w_tr_ref[...]                                          # (W*Cin, WC) bf16
        w_tr_b = jnp.broadcast_to(w_tr[None], (N,) + w_tr.shape)
        x = jnp.einsum("nhk,nkm->nhm", x0.astype(jnp.bfloat16), w_tr_b,
                       preferred_element_type=jnp.float32)             # (N, H, WC)
        x = _bn_flat(x, trbn_g_ref[...], trbn_b_ref[...], g_mat, gt_mat)
        x = _pact(x, bitwidth)
    else:
        x = x0

    # ---- f2: depthwise (3,1) frequency conv, stride 1, pad (1,0) ---------------
    # TODO(synk): pltpu.roll along H would remove the scratch + misaligned slices, but
    # sublane rotates require the rotated dims to be 8-aligned (H=20 is not); keep the
    # padded scratch and zero ONLY the two boundary rows (no full zero-fill pass).
    wf = wf_ref[...]                              # (3, WC) per-channel taps tiled over W
    pad_ref[:, 0:1, :] = jnp.zeros((N, 1, WC), jnp.float32)
    pad_ref[:, H + 1:H + 2, :] = jnp.zeros((N, 1, WC), jnp.float32)
    pad_ref[:, 1:H + 1, :] = x
    x = (wf[0][None, None, :] * pad_ref[:, 0:H, :]
         + wf[1][None, None, :] * pad_ref[:, 1:H + 1, :]
         + wf[2][None, None, :] * pad_ref[:, 2:H + 2, :])

    # ---- f2: SubSpectralNorm (5 frequency sub-bands, batch stats) --------------
    x = _ssn_flat(x, ssn_g_ref[...], ssn_b_ref[...], g_mat, gt_mat, band, band_t)
    aux = x                                       # aux_2d_res

    # ---- avg_gpool: AdaptiveAvgPool2d((1, None)) over frequency ----------------
    xg = jnp.mean(x, axis=1)                      # (N, WC)

    # ---- f1: depthwise (1,3) dilated temporal conv, pad (0, d) -----------------
    # Banded (WC, WC) bf16 matrix built in the wrapper (zero padding baked in).
    # TODO(synk): for 8-aligned batch sizes a lane roll (pltpu.roll, shift=+-d*C)
    # + 3 VPU FMAs would avoid the mostly-zero (WC, WC) operand entirely.
    xg = jnp.dot(xg.astype(jnp.bfloat16), wt_band_ref[...],
                 preferred_element_type=jnp.float32)                      # (N, WC)

    # ---- f1: BN + PACT -----------------------------------------------------------
    xg = _pact(_bn_flat(xg, bn_g_ref[...], bn_b_ref[...], g_mat, gt_mat), bitwidth)

    # ---- f1: pointwise 1x1 conv (kron(I_W, w_pw) keeps it lane-dense on the MXU) --
    xg = jnp.dot(xg.astype(jnp.bfloat16), w_pw_ref[...],
                 preferred_element_type=jnp.float32)                      # (N, WC)
    # TODO(synk): Dropout2d(0.1) has no deterministic training-mode equivalent;
    #             treated as identity (inference semantics).

    # ---- residual adds + final PACT ----------------------------------------------
    out = xg[:, None, :] + aux                    # broadcast over frequency axis H
    if not transition:
        out = out + x0                            # identity shortcut
    out_ref[...] = _pact(out, bitwidth)


def nchw_to_flat(x_nchw):
    """NCHW -> lane-dense flat (N, H, W*C) layout (w-major, c-minor)."""
    N, C, H, W = x_nchw.shape
    return jnp.transpose(x_nchw, (0, 2, 3, 1)).reshape(N, H, W * C).astype(jnp.float32)


def flat_to_nchw(x_flat, width, channels):
    N, H, _ = x_flat.shape
    return jnp.transpose(x_flat.reshape(N, H, width, channels), (0, 3, 1, 2))


def init_params(key, in_plane, out_plane):
    """Deterministic parameter init matching the PyTorch module's shapes.

    Conv weights: kaiming_normal_ (fan_in, gain=sqrt(2)). BN affine: gamma=1, beta=0.
    """
    transition = in_plane != out_plane
    k0, k1, k2, k3 = jax.random.split(key, 4)
    p = {}
    if transition:
        w = jax.random.normal(k0, (out_plane, in_plane, 1, 1), jnp.float32) \
            * (2.0 / in_plane) ** 0.5
        p["w_tr"] = w[:, :, 0, 0].T                    # (Cin, Cout)
        p["trbn_g"] = jnp.ones((1, out_plane), jnp.float32)
        p["trbn_b"] = jnp.zeros((1, out_plane), jnp.float32)
    else:
        p["w_tr"] = None
    w = jax.random.normal(k1, (out_plane, 1, 3, 1), jnp.float32) * (2.0 / 3.0) ** 0.5
    p["w_freq"] = jnp.transpose(w[:, 0, :, 0])         # (3, Cout)
    p["ssn_g"] = jnp.ones((SSN_BANDS, out_plane), jnp.float32)
    p["ssn_b"] = jnp.zeros((SSN_BANDS, out_plane), jnp.float32)
    w = jax.random.normal(k2, (out_plane, 1, 1, 3), jnp.float32) * (2.0 / 3.0) ** 0.5
    p["w_temp"] = jnp.transpose(w[:, 0, 0, :])         # (3, Cout)
    p["bn_g"] = jnp.ones((1, out_plane), jnp.float32)
    p["bn_b"] = jnp.zeros((1, out_plane), jnp.float32)
    w = jax.random.normal(k3, (out_plane, out_plane, 1, 1), jnp.float32) \
        * (2.0 / out_plane) ** 0.5
    p["w_pw"] = w[:, :, 0, 0].T                        # (Cout, Cout)
    return p


def bc_res_block_flat(x_flat, params, *, width, idx, bitwidth, stride=(1, 1)):
    """BCResBlock on the flat (N, H, width*Cin) layout -> (N, H, width*Cout)."""
    assert tuple(stride) == (1, 1), "residual adds require stride (1, 1)"
    N, H, WCin = x_flat.shape
    W = int(width)
    Cin = WCin // W
    assert W * Cin == WCin
    assert H % SSN_BANDS == 0, "SubSpectralNorm needs H divisible by 5"
    transition = params["w_tr"] is not None
    Cout = params["w_pw"].shape[-1]
    WC = W * Cout
    dilation = int(2 ** idx)
    assert dilation < W

    f32 = jnp.float32
    bf16 = jnp.bfloat16
    eye_w = jnp.eye(W, dtype=f32)
    # Weight pre-arrangement for the flat layout (tiny one-off XLA ops):
    #  * 1x1 convs -> kron(I_W, w): single lane-dense bf16 MXU matmul in the kernel
    #  * depthwise freq taps tiled over W so they broadcast on the flat axis
    #  * dilated depthwise temporal conv -> banded (WC, WC) bf16 matrix (zero pad baked in)
    #  * g/gt: channel group-reduce / broadcast matrices for the fused BN/SSN stats
    #  * band/band_t: SSN band selector / broadcast matrices (avoid H-axis reshapes)
    # TODO(synk): these dense (WC, WC) matrices scale as WC^2; for large stages
    # (v7x 64 MiB VMEM) switch to per-channel forms or tile the contraction.
    w_pw_big = jnp.kron(eye_w, params["w_pw"].astype(f32)).astype(bf16)      # (WC, WC)
    wf_flat = jnp.tile(params["w_freq"].astype(f32), (1, W))                 # (3, WC)
    wt = params["w_temp"].astype(f32)                                        # (3, Cout)
    w_temp_band = (jnp.kron(jnp.eye(W, k=dilation, dtype=f32), jnp.diag(wt[0]))
                   + jnp.kron(eye_w, jnp.diag(wt[1]))
                   + jnp.kron(jnp.eye(W, k=-dilation, dtype=f32), jnp.diag(wt[2]))
                   ).astype(bf16)                                            # (WC, WC)
    g_mat = jnp.tile(jnp.eye(Cout, dtype=f32), (W, 1))                       # (WC, Cout)
    gt_mat = g_mat.T                                                         # (Cout, WC)
    Hs = H // SSN_BANDS
    band = (jnp.arange(H, dtype=jnp.int32)[None, :] // Hs
            == jnp.arange(SSN_BANDS, dtype=jnp.int32)[:, None]).astype(f32)  # (5, H)
    band_t = band.T                                                          # (H, 5)

    if transition:
        w_tr_big = jnp.kron(eye_w, params["w_tr"].astype(f32)).astype(bf16)  # (W*Cin, WC)
        inputs = (x_flat, w_tr_big, params["trbn_g"], params["trbn_b"],
                  wf_flat, params["ssn_g"], params["ssn_b"],
                  w_temp_band, params["bn_g"], params["bn_b"], w_pw_big,
                  g_mat, gt_mat, band, band_t)
    else:
        assert Cin == Cout
        inputs = (x_flat, wf_flat, params["ssn_g"], params["ssn_b"],
                  w_temp_band, params["bn_g"], params["bn_b"], w_pw_big,
                  g_mat, gt_mat, band, band_t)

    def full_spec(a):
        nd = a.ndim
        return pl.BlockSpec(a.shape, lambda i, nd=nd: (0,) * nd)

    kernel = functools.partial(_bcres_kernel, transition, bitwidth, W, Cout)

    # TODO(synk): batch-stat BN/SSN needs the whole tensor, so this is a single grid
    # point with everything resident (fine at these sizes).  For production sizes:
    # split stats into a first pass (or use running stats), tile the apply pass over
    # N/H with BlockSpec pipelining, mark the batch axis "parallel" (v7x: 2 TCs), set
    # vmem_limit_bytes, and fuse consecutive blocks into one pallas_call on the flat
    # layout to avoid per-block launch + HBM round trips.
    return pl.pallas_call(
        kernel,
        out_shape=jax.ShapeDtypeStruct((N, H, WC), f32),
        grid=(1,),
        in_specs=[full_spec(a) for a in inputs],
        out_specs=pl.BlockSpec((N, H, WC), lambda i: (0, 0, 0)),
        scratch_shapes=[pltpu.VMEM((N, H + 2, WC), f32)],
        compiler_params=pltpu.CompilerParams(dimension_semantics=("arbitrary",)),
    )(*inputs)


def bc_res_block(x_nchw, params, *, idx, bitwidth, stride=(1, 1)):
    """PyTorch-compatible NCHW interface (one layout conversion at each end)."""
    N, Cin, H, W = x_nchw.shape
    Cout = params["w_pw"].shape[-1]
    x_flat = nchw_to_flat(x_nchw)
    y_flat = bc_res_block_flat(x_flat, params, width=W, idx=idx,
                               bitwidth=bitwidth, stride=stride)
    return flat_to_nchw(y_flat, W, Cout)


if __name__ == "__main__":
    key = jax.random.PRNGKey(0)
    kx1, kx2, kp1, kp2 = jax.random.split(key, 4)
    N, H, W = 2, 20, 16
    idx, bitwidth = 1, 4

    # Case 1: transition block (in_plane != out_plane): extra 1x1 conv + BN + PACT,
    #         no identity shortcut.  W*Cout = 128 -> lane-dense compute and stores.
    x1 = jax.random.normal(kx1, (N, 4, H, W), jnp.float32)
    p1 = init_params(kp1, 4, 8)
    # Case 2: non-transition block (in_plane == out_plane): identity shortcut added.
    x2 = jax.random.normal(kx2, (N, 8, H, W), jnp.float32)
    p2 = init_params(kp2, 8, 8)

    nchw_block = jax.jit(functools.partial(bc_res_block, idx=idx, bitwidth=bitwidth))
    y1 = nchw_block(x1, p1)
    y2 = nchw_block(x2, p2)

    # Stacked blocks chained entirely in the flat layout (no NCHW<->flat HBM
    # round trips between blocks).
    flat_block = jax.jit(functools.partial(bc_res_block_flat, width=W, idx=idx,
                                           bitwidth=bitwidth))
    z1 = flat_block(nchw_to_flat(x1), p1)
    z2 = flat_block(z1, p2)

    jax.block_until_ready((y1, y2, z1, z2))
    assert y1.shape == (N, 8, H, W) and y2.shape == (N, 8, H, W)
    assert z1.shape == (N, H, W * 8) and z2.shape == (N, H, W * 8)
    assert bool(jnp.all(jnp.isfinite(y1))) and bool(jnp.all(jnp.isfinite(y2)))
    assert bool(jnp.all(jnp.isfinite(z2)))
    assert bool(jnp.all(y1 >= 0.0)) and bool(jnp.all(y1 <= ALPHA))
    assert bool(jnp.all(y2 >= 0.0)) and bool(jnp.all(y2 <= ALPHA))
    # NCHW wrapper and flat-layout path agree.
    assert bool(jnp.allclose(flat_to_nchw(z1, W, 8), y1, atol=1e-5, rtol=1e-5))
    print("KERNEL_OK")
</pallas_src>

<mosaic_0001>
module attributes {stable_mosaic.version = 11 : i64} {
  func.func @_bcres_kernel(%arg0: i32, %arg1: memref<2x20x64xf32, #tpu.memory_space<vmem>>, %arg2: memref<64x128xbf16, #tpu.memory_space<vmem>>, %arg3: memref<1x8xf32, #tpu.memory_space<vmem>>, %arg4: memref<1x8xf32, #tpu.memory_space<vmem>>, %arg5: memref<3x128xf32, #tpu.memory_space<vmem>>, %arg6: memref<5x8xf32, #tpu.memory_space<vmem>>, %arg7: memref<5x8xf32, #tpu.memory_space<vmem>>, %arg8: memref<128x128xbf16, #tpu.memory_space<vmem>>, %arg9: memref<1x8xf32, #tpu.memory_space<vmem>>, %arg10: memref<1x8xf32, #tpu.memory_space<vmem>>, %arg11: memref<128x128xbf16, #tpu.memory_space<vmem>>, %arg12: memref<128x8xf32, #tpu.memory_space<vmem>>, %arg13: memref<8x128xf32, #tpu.memory_space<vmem>>, %arg14: memref<5x20xf32, #tpu.memory_space<vmem>>, %arg15: memref<20x5xf32, #tpu.memory_space<vmem>>, %arg16: memref<2x20x128xf32, #tpu.memory_space<vmem>>, %arg17: memref<2x22x128xf32, #tpu.memory_space<vmem>>) attributes {dimension_semantics = [#tpu.dimension_semantics<arbitrary>], iteration_bounds = array<i64: 1>, scalar_prefetch = 0 : i64, scratch_operands = 1 : i64, tpu.core_type = #tpu.core_type<tc>, window_params = [{pipeline_mode = #tpu.pipeline_mode<synchronous>, transform_indices = @transform_0, window_bounds = array<i64: 2, 20, 64>}, {pipeline_mode = #tpu.pipeline_mode<synchronous>, transform_indices = @transform_1, window_bounds = array<i64: 64, 128>}, {pipeline_mode = #tpu.pipeline_mode<synchronous>, transform_indices = @transform_2, window_bounds = array<i64: 1, 8>}, {pipeline_mode = #tpu.pipeline_mode<synchronous>, transform_indices = @transform_3, window_bounds = array<i64: 1, 8>}, {pipeline_mode = #tpu.pipeline_mode<synchronous>, transform_indices = @transform_4, window_bounds = array<i64: 3, 128>}, {pipeline_mode = #tpu.pipeline_mode<synchronous>, transform_indices = @transform_5, window_bounds = array<i64: 5, 8>}, {pipeline_mode = #tpu.pipeline_mode<synchronous>, transform_indices = @transform_6, window_bounds = array<i64: 5, 8>}, {pipeline_mode = #tpu.pipeline_mode<synchronous>, transform_indices = @transform_7, window_bounds = array<i64: 128, 128>}, {pipeline_mode = #tpu.pipeline_mode<synchronous>, transform_indices = @transform_8, window_bounds = array<i64: 1, 8>}, {pipeline_mode = #tpu.pipeline_mode<synchronous>, transform_indices = @transform_9, window_bounds = array<i64: 1, 8>}, {pipeline_mode = #tpu.pipeline_mode<synchronous>, transform_indices = @transform_10, window_bounds = array<i64: 128, 128>}, {pipeline_mode = #tpu.pipeline_mode<synchronous>, transform_indices = @transform_11, window_bounds = array<i64: 128, 8>}, {pipeline_mode = #tpu.pipeline_mode<synchronous>, transform_indices = @transform_12, window_bounds = array<i64: 8, 128>}, {pipeline_mode = #tpu.pipeline_mode<synchronous>, transform_indices = @transform_13, window_bounds = array<i64: 5, 20>}, {pipeline_mode = #tpu.pipeline_mode<synchronous>, transform_indices = @transform_14, window_bounds = array<i64: 20, 5>}, {pipeline_mode = #tpu.pipeline_mode<synchronous>, transform_indices = @transform_15, window_bounds = array<i64: 2, 20, 128>}]} {
    %c0 = arith.constant 0 : index
    %c0_0 = arith.constant 0 : index
    %c0_1 = arith.constant 0 : index
    %0 = vector.load %arg1[%c0, %c0_0, %c0_1] : memref<2x20x64xf32, #tpu.memory_space<vmem>>, vector<2x20x64xf32>
    %c0_2 = arith.constant 0 : index
    %c0_3 = arith.constant 0 : index
    %1 = vector.load %arg12[%c0_2, %c0_3] : memref<128x8xf32, #tpu.memory_space<vmem>>, vector<128x8xf32>
    %c0_4 = arith.constant 0 : index
    %c0_5 = arith.constant 0 : index
    %2 = vector.load %arg13[%c0_4, %c0_5] : memref<8x128xf32, #tpu.memory_space<vmem>>, vector<8x128xf32>
    %c0_6 = arith.constant 0 : index
    %c0_7 = arith.constant 0 : index
    %3 = vector.load %arg14[%c0_6, %c0_7] : memref<5x20xf32, #tpu.memory_space<vmem>>, vector<5x20xf32>
    %c0_8 = arith.constant 0 : index
    %c0_9 = arith.constant 0 : index
    %4 = vector.load %arg15[%c0_8, %c0_9] : memref<20x5xf32, #tpu.memory_space<vmem>>, vector<20x5xf32>
    %c0_10 = arith.constant 0 : index
    %c0_11 = arith.constant 0 : index
    %5 = vector.load %arg2[%c0_10, %c0_11] : memref<64x128xbf16, #tpu.memory_space<vmem>>, vector<64x128xbf16>
    %6 = vector.shape_cast %5 : vector<64x128xbf16> to vector<1x64x128xbf16>
    %7 = vector.shape_cast %6 : vector<1x64x128xbf16> to vector<1x64x128xbf16>
    %8 = vector.broadcast %7 : vector<1x64x128xbf16> to vector<2x64x128xbf16>
    %9 = arith.truncf %0 : vector<2x20x64xf32> to vector<2x20x64xbf16>
    "tpu.trace_start"() <{level = 10 : i32, message = "nhk,nkm->nhm"}> : () -> ()
    %cst = arith.constant dense<0.000000e+00> : vector<2x20x128xf32>
    %10 = tpu.matmul %9, %8, %cst {dimension_numbers = #tpu.dot_dimension_numbers<[2], [1], [1], [2], [0, 0, 0, 1, 1, 2], [0], [0]>} : vector<2x20x64xbf16>, vector<2x64x128xbf16>, vector<2x20x128xf32> -> vector<2x20x128xf32>
    "tpu.trace_stop"() : () -> ()
    %c0_12 = arith.constant 0 : index
    %c0_13 = arith.constant 0 : index
    %11 = vector.load %arg3[%c0_12, %c0_13] : memref<1x8xf32, #tpu.memory_space<vmem>>, vector<1x8xf32>
    %c0_14 = arith.constant 0 : index
    %c0_15 = arith.constant 0 : index
    %12 = vector.load %arg4[%c0_14, %c0_15] : memref<1x8xf32, #tpu.memory_space<vmem>>, vector<1x8xf32>
    %cst_16 = arith.constant dense<0.000000e+00> : vector<20x128xf32>
    %13 = vector.multi_reduction <add>, %10, %cst_16 [0] : vector<2x20x128xf32> to vector<20x128xf32>
    %cst_17 = arith.constant dense<0.000000e+00> : vector<128xf32>
    %14 = vector.multi_reduction <add>, %13, %cst_17 [0] : vector<20x128xf32> to vector<128xf32>
    %15 = vector.shape_cast %14 : vector<128xf32> to vector<1x128xf32>
    %cst_18 = arith.constant dense<0.000000e+00> : vector<1x8xf32>
    %16 = tpu.matmul %15, %1, %cst_18 {dimension_numbers = #tpu.dot_dimension_numbers<[1], [0], [0], [1], [0, 0, 1, 1], [], []>} : vector<1x128xf32>, vector<128x8xf32>, vector<1x8xf32> -> vector<1x8xf32>
    %cst_19 = arith.constant 6.400000e+02 : f32
    %17 = vector.broadcast %cst_19 : f32 to vector<1x8xf32>
    %18 = arith.divf %16, %17 : vector<1x8xf32>
    %cst_20 = arith.constant dense<0.000000e+00> : vector<1x128xf32>
    %19 = tpu.matmul %18, %2, %cst_20 {dimension_numbers = #tpu.dot_dimension_numbers<[1], [0], [0], [1], [0, 0, 1, 1], [], []>} : vector<1x8xf32>, vector<8x128xf32>, vector<1x128xf32> -> vector<1x128xf32>
    %20 = vector.shape_cast %19 : vector<1x128xf32> to vector<1x1x128xf32>
    %21 = vector.broadcast %20 : vector<1x1x128xf32> to vector<2x20x128xf32>
    %22 = arith.subf %10, %21 : vector<2x20x128xf32>
    %23 = arith.mulf %22, %22 : vector<2x20x128xf32>
    %cst_21 = arith.constant dense<0.000000e+00> : vector<20x128xf32>
    %24 = vector.multi_reduction <add>, %23, %cst_21 [0] : vector<2x20x128xf32> to vector<20x128xf32>
    %cst_22 = arith.constant dense<0.000000e+00> : vector<128xf32>
    %25 = vector.multi_reduction <add>, %24, %cst_22 [0] : vector<20x128xf32> to vector<128xf32>
    %26 = vector.shape_cast %25 : vector<128xf32> to vector<1x128xf32>
    %cst_23 = arith.constant dense<0.000000e+00> : vector<1x8xf32>
    %27 = tpu.matmul %26, %1, %cst_23 {dimension_numbers = #tpu.dot_dimension_numbers<[1], [0], [0], [1], [0, 0, 1, 1], [], []>} : vector<1x128xf32>, vector<128x8xf32>, vector<1x8xf32> -> vector<1x8xf32>
    %cst_24 = arith.constant 6.400000e+02 : f32
    %28 = vector.broadcast %cst_24 : f32 to vector<1x8xf32>
    %29 = arith.divf %27, %28 : vector<1x8xf32>
    %cst_25 = arith.constant 9.99999974E-6 : f32
    %30 = vector.broadcast %cst_25 : f32 to vector<1x8xf32>
    %31 = arith.addf %29, %30 : vector<1x8xf32>
    %32 = math.rsqrt %31 : vector<1x8xf32>
    %33 = arith.mulf %11, %32 : vector<1x8xf32>
    %34 = arith.mulf %18, %33 : vector<1x8xf32>
    %35 = arith.subf %12, %34 : vector<1x8xf32>
    %cst_26 = arith.constant dense<0.000000e+00> : vector<1x128xf32>
    %36 = tpu.matmul %33, %2, %cst_26 {dimension_numbers = #tpu.dot_dimension_numbers<[1], [0], [0], [1], [0, 0, 1, 1], [], []>} : vector<1x8xf32>, vector<8x128xf32>, vector<1x128xf32> -> vector<1x128xf32>
    %cst_27 = arith.constant dense<0.000000e+00> : vector<1x128xf32>
    %37 = tpu.matmul %35, %2, %cst_27 {dimension_numbers = #tpu.dot_dimension_numbers<[1], [0], [0], [1], [0, 0, 1, 1], [], []>} : vector<1x8xf32>, vector<8x128xf32>, vector<1x128xf32> -> vector<1x128xf32>
    %38 = vector.shape_cast %36 : vector<1x128xf32> to vector<1x1x128xf32>
    %39 = vector.broadcast %38 : vector<1x1x128xf32> to vector<2x20x128xf32>
    %40 = arith.mulf %10, %39 : vector<2x20x128xf32>
    %41 = vector.shape_cast %37 : vector<1x128xf32> to vector<1x1x128xf32>
    %42 = vector.broadcast %41 : vector<1x1x128xf32> to vector<2x20x128xf32>
    %43 = arith.addf %40, %42 : vector<2x20x128xf32>
    %cst_28 = arith.constant 0.000000e+00 : f32
    %cst_29 = arith.constant 1.000000e+01 : f32
    %44 = vector.broadcast %cst_28 : f32 to vector<2x20x128xf32>
    %45 = arith.maximumf %44, %43 : vector<2x20x128xf32>
    %46 = vector.broadcast %cst_29 : f32 to vector<2x20x128xf32>
    %47 = arith.minimumf %46, %45 : vector<2x20x128xf32>
    %cst_30 = arith.constant 1.500000e+00 : f32
    %48 = vector.broadcast %cst_30 : f32 to vector<2x20x128xf32>
    %49 = arith.mulf %47, %48 : vector<2x20x128xf32>
    %50 = math.roundeven %49 : vector<2x20x128xf32>
    %cst_31 = arith.constant 1.500000e+00 : f32
    %51 = vector.broadcast %cst_31 : f32 to vector<2x20x128xf32>
    %52 = arith.divf %50, %51 : vector<2x20x128xf32>
    %c0_32 = arith.constant 0 : index
    %c0_33 = arith.constant 0 : index
    %53 = vector.load %arg5[%c0_32, %c0_33] : memref<3x128xf32, #tpu.memory_space<vmem>>, vector<3x128xf32>
    %cst_34 = arith.constant 0.000000e+00 : f32
    %54 = vector.broadcast %cst_34 : f32 to vector<2x1x128xf32>
    %c0_35 = arith.constant 0 : index
    %c0_36 = arith.constant 0 : index
    %c0_37 = arith.constant 0 : index
    %55 = vector.load %arg17[%c0_35, %c0_36, %c0_37] : memref<2x22x128xf32, #tpu.memory_space<vmem>>, vector<2x1x128xf32>
    tpu.vector_store %arg17[%c0_35, %c0_36, %c0_37], %54 {strides = array<i32>} : memref<2x22x128xf32, #tpu.memory_space<vmem>>, vector<2x1x128xf32>,
    %cst_38 = arith.constant 0.000000e+00 : f32
    %56 = vector.broadcast %cst_38 : f32 to vector<2x1x128xf32>
    %c0_39 = arith.constant 0 : index
    %c21 = arith.constant 21 : index
    %c0_40 = arith.constant 0 : index
    %57 = vector.load %arg17[%c0_39, %c21, %c0_40] : memref<2x22x128xf32, #tpu.memory_space<vmem>>, vector<2x1x128xf32>
    tpu.vector_store %arg17[%c0_39, %c21, %c0_40], %56 {strides = array<i32>} : memref<2x22x128xf32, #tpu.memory_space<vmem>>, vector<2x1x128xf32>,
    %c0_41 = arith.constant 0 : index
    %c1 = arith.constant 1 : index
    %c0_42 = arith.constant 0 : index
    %58 = vector.load %arg17[%c0_41, %c1, %c0_42] : memref<2x22x128xf32, #tpu.memory_space<vmem>>, vector<2x20x128xf32>
    tpu.vector_store %arg17[%c0_41, %c1, %c0_42], %52 {strides = array<i32>} : memref<2x22x128xf32, #tpu.memory_space<vmem>>, vector<2x20x128xf32>,
    %59 = vector.extract_strided_slice %53 {offsets = [0, 0], sizes = [1, 128], strides = [1, 1]} : vector<3x128xf32> to vector<1x128xf32>
    %60 = vector.shape_cast %59 : vector<1x128xf32> to vector<128xf32>
    %61 = vector.shape_cast %60 : vector<128xf32> to vector<1x1x128xf32>
    %c0_43 = arith.constant 0 : index
    %c0_44 = arith.constant 0 : index
    %c0_45 = arith.constant 0 : index
    %62 = vector.load %arg17[%c0_43, %c0_44, %c0_45] : memref<2x22x128xf32, #tpu.memory_space<vmem>>, vector<2x20x128xf32>
    %63 = vector.broadcast %61 : vector<1x1x128xf32> to vector<2x20x128xf32>
    %64 = arith.mulf %63, %62 : vector<2x20x128xf32>
    %65 = vector.extract_strided_slice %53 {offsets = [1, 0], sizes = [1, 128], strides = [1, 1]} : vector<3x128xf32> to vector<1x128xf32>
    %66 = vector.shape_cast %65 : vector<1x128xf32> to vector<128xf32>
    %67 = vector.shape_cast %66 : vector<128xf32> to vector<1x1x128xf32>
    %c0_46 = arith.constant 0 : index
    %c1_47 = arith.constant 1 : index
    %c0_48 = arith.constant 0 : index
    %68 = vector.load %arg17[%c0_46, %c1_47, %c0_48] : memref<2x22x128xf32, #tpu.memory_space<vmem>>, vector<2x20x128xf32>
    %69 = vector.broadcast %67 : vector<1x1x128xf32> to vector<2x20x128xf32>
    %70 = arith.mulf %69, %68 : vector<2x20x128xf32>
    %71 = arith.addf %64, %70 : vector<2x20x128xf32>
    %72 = vector.extract_strided_slice %53 {offsets = [2, 0], sizes = [1, 128], strides = [1, 1]} : vector<3x128xf32> to vector<1x128xf32>
    %73 = vector.shape_cast %72 : vector<1x128xf32> to vector<128xf32>
    %74 = vector.shape_cast %73 : vector<128xf32> to vector<1x1x128xf32>
    %c0_49 = arith.constant 0 : index
    %c2 = arith.constant 2 : index
    %c0_50 = arith.constant 0 : index
    %75 = vector.load %arg17[%c0_49, %c2, %c0_50] : memref<2x22x128xf32, #tpu.memory_space<vmem>>, vector<2x20x128xf32>
    %76 = vector.broadcast %74 : vector<1x1x128xf32> to vector<2x20x128xf32>
    %77 = arith.mulf %76, %75 : vector<2x20x128xf32>
    %78 = arith.addf %71, %77 : vector<2x20x128xf32>
    %c0_51 = arith.constant 0 : index
    %c0_52 = arith.constant 0 : index
    %79 = vector.load %arg6[%c0_51, %c0_52] : memref<5x8xf32, #tpu.memory_space<vmem>>, vector<5x8xf32>
    %c0_53 = arith.constant 0 : index
    %c0_54 = arith.constant 0 : index
    %80 = vector.load %arg7[%c0_53, %c0_54] : memref<5x8xf32, #tpu.memory_space<vmem>>, vector<5x8xf32>
    %cst_55 = arith.constant dense<0.000000e+00> : vector<20x128xf32>
    %81 = vector.multi_reduction <add>, %78, %cst_55 [0] : vector<2x20x128xf32> to vector<20x128xf32>
    %cst_56 = arith.constant dense<0.000000e+00> : vector<5x128xf32>
    %82 = tpu.matmul %3, %81, %cst_56 {dimension_numbers = #tpu.dot_dimension_numbers<[1], [0], [0], [1], [0, 0, 1, 1], [], []>} : vector<5x20xf32>, vector<20x128xf32>, vector<5x128xf32> -> vector<5x128xf32>
    %cst_57 = arith.constant dense<0.000000e+00> : vector<5x8xf32>
    %83 = tpu.matmul %82, %1, %cst_57 {dimension_numbers = #tpu.dot_dimension_numbers<[1], [0], [0], [1], [0, 0, 1, 1], [], []>} : vector<5x128xf32>, vector<128x8xf32>, vector<5x8xf32> -> vector<5x8xf32>
    %cst_58 = arith.constant 1.280000e+02 : f32
    %84 = vector.broadcast %cst_58 : f32 to vector<5x8xf32>
    %85 = arith.divf %83, %84 : vector<5x8xf32>
    %cst_59 = arith.constant dense<0.000000e+00> : vector<5x128xf32>
    %86 = tpu.matmul %85, %2, %cst_59 {dimension_numbers = #tpu.dot_dimension_numbers<[1], [0], [0], [1], [0, 0, 1, 1], [], []>} : vector<5x8xf32>, vector<8x128xf32>, vector<5x128xf32> -> vector<5x128xf32>
    %cst_60 = arith.constant dense<0.000000e+00> : vector<20x128xf32>
    %87 = tpu.matmul %4, %86, %cst_60 {dimension_numbers = #tpu.dot_dimension_numbers<[1], [0], [0], [1], [0, 0, 1, 1], [], []>} : vector<20x5xf32>, vector<5x128xf32>, vector<20x128xf32> -> vector<20x128xf32>
    %88 = vector.shape_cast %87 : vector<20x128xf32> to vector<1x20x128xf32>
    %89 = vector.broadcast %88 : vector<1x20x128xf32> to vector<2x20x128xf32>
    %90 = arith.subf %78, %89 : vector<2x20x128xf32>
    %91 = arith.mulf %90, %90 : vector<2x20x128xf32>
    %cst_61 = arith.constant dense<0.000000e+00> : vector<20x128xf32>
    %92 = vector.multi_reduction <add>, %91, %cst_61 [0] : vector<2x20x128xf32> to vector<20x128xf32>
    %cst_62 = arith.constant dense<0.000000e+00> : vector<5x128xf32>
    %93 = tpu.matmul %3, %92, %cst_62 {dimension_numbers = #tpu.dot_dimension_numbers<[1], [0], [0], [1], [0, 0, 1, 1], [], []>} : vector<5x20xf32>, vector<20x128xf32>, vector<5x128xf32> -> vector<5x128xf32>
    %cst_63 = arith.constant dense<0.000000e+00> : vector<5x8xf32>
    %94 = tpu.matmul %93, %1, %cst_63 {dimension_numbers = #tpu.dot_dimension_numbers<[1], [0], [0], [1], [0, 0, 1, 1], [], []>} : vector<5x128xf32>, vector<128x8xf32>, vector<5x8xf32> -> vector<5x8xf32>
    %cst_64 = arith.constant 1.280000e+02 : f32
    %95 = vector.broadcast %cst_64 : f32 to vector<5x8xf32>
    %96 = arith.divf %94, %95 : vector<5x8xf32>
    %cst_65 = arith.constant 9.99999974E-6 : f32
    %97 = vector.broadcast %cst_65 : f32 to vector<5x8xf32>
    %98 = arith.addf %96, %97 : vector<5x8xf32>
    %99 = math.rsqrt %98 : vector<5x8xf32>
    %100 = arith.mulf %79, %99 : vector<5x8xf32>
    %101 = arith.mulf %85, %100 : vector<5x8xf32>
    %102 = arith.subf %80, %101 : vector<5x8xf32>
    %cst_66 = arith.constant dense<0.000000e+00> : vector<5x128xf32>
    %103 = tpu.matmul %100, %2, %cst_66 {dimension_numbers = #tpu.dot_dimension_numbers<[1], [0], [0], [1], [0, 0, 1, 1], [], []>} : vector<5x8xf32>, vector<8x128xf32>, vector<5x128xf32> -> vector<5x128xf32>
    %cst_67 = arith.constant dense<0.000000e+00> : vector<5x128xf32>
    %104 = tpu.matmul %102, %2, %cst_67 {dimension_numbers = #tpu.dot_dimension_numbers<[1], [0], [0], [1], [0, 0, 1, 1], [], []>} : vector<5x8xf32>, vector<8x128xf32>, vector<5x128xf32> -> vector<5x128xf32>
    %cst_68 = arith.constant dense<0.000000e+00> : vector<20x128xf32>
    %105 = tpu.matmul %4, %103, %cst_68 {dimension_numbers = #tpu.dot_dimension_numbers<[1], [0], [0], [1], [0, 0, 1, 1], [], []>} : vector<20x5xf32>, vector<5x128xf32>, vector<20x128xf32> -> vector<20x128xf32>
    %cst_69 = arith.constant dense<0.000000e+00> : vector<20x128xf32>
    %106 = tpu.matmul %4, %104, %cst_69 {dimension_numbers = #tpu.dot_dimension_numbers<[1], [0], [0], [1], [0, 0, 1, 1], [], []>} : vector<20x5xf32>, vector<5x128xf32>, vector<20x128xf32> -> vector<20x128xf32>
    %107 = vector.shape_cast %105 : vector<20x128xf32> to vector<1x20x128xf32>
    %108 = vector.broadcast %107 : vector<1x20x128xf32> to vector<2x20x128xf32>
    %109 = arith.mulf %78, %108 : vector<2x20x128xf32>
    %110 = vector.shape_cast %106 : vector<20x128xf32> to vector<1x20x128xf32>
    %111 = vector.broadcast %110 : vector<1x20x128xf32> to vector<2x20x128xf32>
    %112 = arith.addf %109, %111 : vector<2x20x128xf32>
    %cst_70 = arith.constant dense<0.000000e+00> : vector<2x128xf32>
    %113 = vector.multi_reduction <add>, %112, %cst_70 [1] : vector<2x20x128xf32> to vector<2x128xf32>
    %cst_71 = arith.constant 2.000000e+01 : f32
    %114 = vector.broadcast %cst_71 : f32 to vector<2x128xf32>
    %115 = arith.divf %113, %114 : vector<2x128xf32>
    %116 = arith.truncf %115 : vector<2x128xf32> to vector<2x128xbf16>
    %c0_72 = arith.constant 0 : index
    %c0_73 = arith.constant 0 : index
    %117 = vector.load %arg8[%c0_72, %c0_73] : memref<128x128xbf16, #tpu.memory_space<vmem>>, vector<128x128xbf16>
    %cst_74 = arith.constant dense<0.000000e+00> : vector<2x128xf32>
    %118 = tpu.matmul %116, %117, %cst_74 {dimension_numbers = #tpu.dot_dimension_numbers<[1], [0], [0], [1], [0, 0, 1, 1], [], []>} : vector<2x128xbf16>, vector<128x128xbf16>, vector<2x128xf32> -> vector<2x128xf32>
    %c0_75 = arith.constant 0 : index
    %c0_76 = arith.constant 0 : index
    %119 = vector.load %arg9[%c0_75, %c0_76] : memref<1x8xf32, #tpu.memory_space<vmem>>, vector<1x8xf32>
    %c0_77 = arith.constant 0 : index
    %c0_78 = arith.constant 0 : index
    %120 = vector.load %arg10[%c0_77, %c0_78] : memref<1x8xf32, #tpu.memory_space<vmem>>, vector<1x8xf32>
    %cst_79 = arith.constant dense<0.000000e+00> : vector<128xf32>
    %121 = vector.multi_reduction <add>, %118, %cst_79 [0] : vector<2x128xf32> to vector<128xf32>
    %122 = vector.shape_cast %121 : vector<128xf32> to vector<1x128xf32>
    %cst_80 = arith.constant dense<0.000000e+00> : vector<1x8xf32>
    %123 = tpu.matmul %122, %1, %cst_80 {dimension_numbers = #tpu.dot_dimension_numbers<[1], [0], [0], [1], [0, 0, 1, 1], [], []>} : vector<1x128xf32>, vector<128x8xf32>, vector<1x8xf32> -> vector<1x8xf32>
    %cst_81 = arith.constant 3.200000e+01 : f32
    %124 = vector.broadcast %cst_81 : f32 to vector<1x8xf32>
    %125 = arith.divf %123, %124 : vector<1x8xf32>
    %cst_82 = arith.constant dense<0.000000e+00> : vector<1x128xf32>
    %126 = tpu.matmul %125, %2, %cst_82 {dimension_numbers = #tpu.dot_dimension_numbers<[1], [0], [0], [1], [0, 0, 1, 1], [], []>} : vector<1x8xf32>, vector<8x128xf32>, vector<1x128xf32> -> vector<1x128xf32>
    %127 = vector.broadcast %126 : vector<1x128xf32> to vector<2x128xf32>
    %128 = arith.subf %118, %127 : vector<2x128xf32>
    %129 = arith.mulf %128, %128 : vector<2x128xf32>
    %cst_83 = arith.constant dense<0.000000e+00> : vector<128xf32>
    %130 = vector.multi_reduction <add>, %129, %cst_83 [0] : vector<2x128xf32> to vector<128xf32>
    %131 = vector.shape_cast %130 : vector<128xf32> to vector<1x128xf32>
    %cst_84 = arith.constant dense<0.000000e+00> : vector<1x8xf32>
    %132 = tpu.matmul %131, %1, %cst_84 {dimension_numbers = #tpu.dot_dimension_numbers<[1], [0], [0], [1], [0, 0, 1, 1], [], []>} : vector<1x128xf32>, vector<128x8xf32>, vector<1x8xf32> -> vector<1x8xf32>
    %cst_85 = arith.constant 3.200000e+01 : f32
    %133 = vector.broadcast %cst_85 : f32 to vector<1x8xf32>
    %134 = arith.divf %132, %133 : vector<1x8xf32>
    %cst_86 = arith.constant 9.99999974E-6 : f32
    %135 = vector.broadcast %cst_86 : f32 to vector<1x8xf32>
    %136 = arith.addf %134, %135 : vector<1x8xf32>
    %137 = math.rsqrt %136 : vector<1x8xf32>
    %138 = arith.mulf %119, %137 : vector<1x8xf32>
    %139 = arith.mulf %125, %138 : vector<1x8xf32>
    %140 = arith.subf %120, %139 : vector<1x8xf32>
    %cst_87 = arith.constant dense<0.000000e+00> : vector<1x128xf32>
    %141 = tpu.matmul %138, %2, %cst_87 {dimension_numbers = #tpu.dot_dimension_numbers<[1], [0], [0], [1], [0, 0, 1, 1], [], []>} : vector<1x8xf32>, vector<8x128xf32>, vector<1x128xf32> -> vector<1x128xf32>
    %cst_88 = arith.constant dense<0.000000e+00> : vector<1x128xf32>
    %142 = tpu.matmul %140, %2, %cst_88 {dimension_numbers = #tpu.dot_dimension_numbers<[1], [0], [0], [1], [0, 0, 1, 1], [], []>} : vector<1x8xf32>, vector<8x128xf32>, vector<1x128xf32> -> vector<1x128xf32>
    %143 = vector.broadcast %141 : vector<1x128xf32> to vector<2x128xf32>
    %144 = arith.mulf %118, %143 : vector<2x128xf32>
    %145 = vector.broadcast %142 : vector<1x128xf32> to vector<2x128xf32>
    %146 = arith.addf %144, %145 : vector<2x128xf32>
    %cst_89 = arith.constant 0.000000e+00 : f32
    %cst_90 = arith.constant 1.000000e+01 : f32
    %147 = vector.broadcast %cst_89 : f32 to vector<2x128xf32>
    %148 = arith.maximumf %147, %146 : vector<2x128xf32>
    %149 = vector.broadcast %cst_90 : f32 to vector<2x128xf32>
    %150 = arith.minimumf %149, %148 : vector<2x128xf32>
    %cst_91 = arith.constant 1.500000e+00 : f32
    %151 = vector.broadcast %cst_91 : f32 to vector<2x128xf32>
    %152 = arith.mulf %150, %151 : vector<2x128xf32>
    %153 = math.roundeven %152 : vector<2x128xf32>
    %cst_92 = arith.constant 1.500000e+00 : f32
    %154 = vector.broadcast %cst_92 : f32 to vector<2x128xf32>
    %155 = arith.divf %153, %154 : vector<2x128xf32>
    %156 = arith.truncf %155 : vector<2x128xf32> to vector<2x128xbf16>
    %c0_93 = arith.constant 0 : index
    %c0_94 = arith.constant 0 : index
    %157 = vector.load %arg11[%c0_93, %c0_94] : memref<128x128xbf16, #tpu.memory_space<vmem>>, vector<128x128xbf16>
    %cst_95 = arith.constant dense<0.000000e+00> : vector<2x128xf32>
    %158 = tpu.matmul %156, %157, %cst_95 {dimension_numbers = #tpu.dot_dimension_numbers<[1], [0], [0], [1], [0, 0, 1, 1], [], []>} : vector<2x128xbf16>, vector<128x128xbf16>, vector<2x128xf32> -> vector<2x128xf32>
    %159 = vector.shape_cast %158 : vector<2x128xf32> to vector<2x1x128xf32>
    %160 = vector.broadcast %159 : vector<2x1x128xf32> to vector<2x20x128xf32>
    %161 = arith.addf %160, %112 : vector<2x20x128xf32>
    %cst_96 = arith.constant 0.000000e+00 : f32
    %cst_97 = arith.constant 1.000000e+01 : f32
    %162 = vector.broadcast %cst_96 : f32 to vector<2x20x128xf32>
    %163 = arith.maximumf %162, %161 : vector<2x20x128xf32>
    %164 = vector.broadcast %cst_97 : f32 to vector<2x20x128xf32>
    %165 = arith.minimumf %164, %163 : vector<2x20x128xf32>
    %cst_98 = arith.constant 1.500000e+00 : f32
    %166 = vector.broadcast %cst_98 : f32 to vector<2x20x128xf32>
    %167 = arith.mulf %165, %166 : vector<2x20x128xf32>
    %168 = math.roundeven %167 : vector<2x20x128xf32>
    %cst_99 = arith.constant 1.500000e+00 : f32
    %169 = vector.broadcast %cst_99 : f32 to vector<2x20x128xf32>
    %170 = arith.divf %168, %169 : vector<2x20x128xf32>
    %c0_100 = arith.constant 0 : index
    %c0_101 = arith.constant 0 : index
    %c0_102 = arith.constant 0 : index
    %171 = vector.load %arg16[%c0_100, %c0_101, %c0_102] : memref<2x20x128xf32, #tpu.memory_space<vmem>>, vector<2x20x128xf32>
    tpu.vector_store %arg16[%c0_100, %c0_101, %c0_102], %170 {strides = array<i32>} : memref<2x20x128xf32, #tpu.memory_space<vmem>>, vector<2x20x128xf32>,
    return
  }
  func.func @transform_0(%arg0: i32) -> (i32, i32, i32) {
    %c0_i32 = arith.constant 0 : i32
    %c0_i32_0 = arith.constant 0 : i32
    %c0_i32_1 = arith.constant 0 : i32
    %c0_i32_2 = arith.constant 0 : i32
    return %c0_i32, %c0_i32_0, %c0_i32_1 : i32, i32, i32
  }
  func.func @transform_1(%arg0: i32) -> (i32, i32) {
    %c0_i32 = arith.constant 0 : i32
    %c0_i32_0 = arith.constant 0 : i32
    %c0_i32_1 = arith.constant 0 : i32
    return %c0_i32, %c0_i32_0 : i32, i32
  }
  func.func @transform_2(%arg0: i32) -> (i32, i32) {
    %c0_i32 = arith.constant 0 : i32
    %c0_i32_0 = arith.constant 0 : i32
    %c0_i32_1 = arith.constant 0 : i32
    return %c0_i32, %c0_i32_0 : i32, i32
  }
  func.func @transform_3(%arg0: i32) -> (i32, i32) {
    %c0_i32 = arith.constant 0 : i32
    %c0_i32_0 = arith.constant 0 : i32
    %c0_i32_1 = arith.constant 0 : i32
    return %c0_i32, %c0_i32_0 : i32, i32
  }
  func.func @transform_4(%arg0: i32) -> (i32, i32) {
    %c0_i32 = arith.constant 0 : i32
    %c0_i32_0 = arith.constant 0 : i32
    %c0_i32_1 = arith.constant 0 : i32
    return %c0_i32, %c0_i32_0 : i32, i32
  }
  func.func @transform_5(%arg0: i32) -> (i32, i32) {
    %c0_i32 = arith.constant 0 : i32
    %c0_i32_0 = arith.constant 0 : i32
    %c0_i32_1 = arith.constant 0 : i32
    return %c0_i32, %c0_i32_0 : i32, i32
  }
  func.func @transform_6(%arg0: i32) -> (i32, i32) {
    %c0_i32 = arith.constant 0 : i32
    %c0_i32_0 = arith.constant 0 : i32
    %c0_i32_1 = arith.constant 0 : i32
    return %c0_i32, %c0_i32_0 : i32, i32
  }
  func.func @transform_7(%arg0: i32) -> (i32, i32) {
    %c0_i32 = arith.constant 0 : i32
    %c0_i32_0 = arith.constant 0 : i32
    %c0_i32_1 = arith.constant 0 : i32
    return %c0_i32, %c0_i32_0 : i32, i32
  }
  func.func @transform_8(%arg0: i32) -> (i32, i32) {
    %c0_i32 = arith.constant 0 : i32
    %c0_i32_0 = arith.constant 0 : i32
    %c0_i32_1 = arith.constant 0 : i32
    return %c0_i32, %c0_i32_0 : i32, i32
  }
  func.func @transform_9(%arg0: i32) -> (i32, i32) {
    %c0_i32 = arith.constant 0 : i32
    %c0_i32_0 = arith.constant 0 : i32
    %c0_i32_1 = arith.constant 0 : i32
    return %c0_i32, %c0_i32_0 : i32, i32
  }
  func.func @transform_10(%arg0: i32) -> (i32, i32) {
    %c0_i32 = arith.constant 0 : i32
    %c0_i32_0 = arith.constant 0 : i32
    %c0_i32_1 = arith.constant 0 : i32
    return %c0_i32, %c0_i32_0 : i32, i32
  }
  func.func @transform_11(%arg0: i32) -> (i32, i32) {
    %c0_i32 = arith.constant 0 : i32
    %c0_i32_0 = arith.constant 0 : i32
    %c0_i32_1 = arith.constant 0 : i32
    return %c0_i32, %c0_i32_0 : i32, i32
  }
  func.func @transform_12(%arg0: i32) -> (i32, i32) {
    %c0_i32 = arith.constant 0 : i32
    %c0_i32_0 = arith.constant 0 : i32
    %c0_i32_1 = arith.constant 0 : i32
    return %c0_i32, %c0_i32_0 : i32, i32
  }
  func.func @transform_13(%arg0: i32) -> (i32, i32) {
    %c0_i32 = arith.constant 0 : i32
    %c0_i32_0 = arith.constant 0 : i32
    %c0_i32_1 = arith.constant 0 : i32
    return %c0_i32, %c0_i32_0 : i32, i32
  }
  func.func @transform_14(%arg0: i32) -> (i32, i32) {
    %c0_i32 = arith.constant 0 : i32
    %c0_i32_0 = arith.constant 0 : i32
    %c0_i32_1 = arith.constant 0 : i32
    return %c0_i32, %c0_i32_0 : i32, i32
  }
  func.func @transform_15(%arg0: i32) -> (i32, i32, i32) {
    %c0_i32 = arith.constant 0 : i32
    %c0_i32_0 = arith.constant 0 : i32
    %c0_i32_1 = arith.constant 0 : i32
    %c0_i32_2 = arith.constant 0 : i32
    return %c0_i32, %c0_i32_0, %c0_i32_1 : i32, i32, i32
  }
}

</mosaic_0001>

<llo_original>
// kernel: tile.19
$region0: #{tile.19}
  %s0 = inlined_call_operand.vmem [shape: f32[16,8,8], index: 0, kind: input, shape index: {}]
  %s1 = inlined_call_operand.vmem [shape: f32[128,8], index: 1, kind: output, shape index: {}]
  %s2 = smov 3
  %v3 = vld [vmem:[%s0] ss:$16 sm:%s2]
  %s4 = smov 12
  %v5 = vld [vmem:[%s0] ss:$16 sm:%s4]
  %vm6 = vcmask 1043458
  %v7 = vsel %vm6, %v5, %v3
  %s8 = smov 48
  %v9 = vld [vmem:[%s0] ss:$16 sm:%s8]
  %vm10 = vcmask 1045508
  %v11 = vsel %vm10, %v9, %v7
  %s12 = smov 192
  %v13 = vld [vmem:[%s0] ss:$16 sm:%s12]
  %vm14 = vcmask 1047558
  %v15 = vsel %vm14, %v13, %v11
  %vm16 = vcmask 64512
  %17 = vst.msk [vmem:[%s1] sm:$0xff] %vm16, %v15
  %s18 = scalar_lea.vmem %s0, 15
  %s19 = smov 3
  %v20 = vld [vmem:[%s18] ss:$16 sm:%s19]
  %s21 = scalar_lea.vmem %s0, 15
  %s22 = smov 12
  %v23 = vld [vmem:[%s21] ss:$16 sm:%s22]
  %vm24 = vcmask 1043458
  %v25 = vsel %vm24, %v23, %v20
  %s26 = scalar_lea.vmem %s0, 15
  %s27 = smov 48
  %v28 = vld [vmem:[%s26] ss:$16 sm:%s27]
  %vm29 = vcmask 1045508
  %v30 = vsel %vm29, %v28, %v25
  %s31 = scalar_lea.vmem %s0, 15
  %s32 = smov 192
  %v33 = vld [vmem:[%s31] ss:$16 sm:%s32]
  %vm34 = vcmask 1047558
  %v35 = vsel %vm34, %v33, %v30
  %36 = vrot.lane.b32.xlu0 %v35, 120
  %v37 = vpop.permute.xlu0 %36
  %vm38 = vcmask 1048512
  %39 = vst.msk [vmem:[%s1] sm:$0xff] %vm38, %v37
  %s40 = scalar_lea.vmem %s0, 14
  %s41 = smov 3
  %v42 = vld [vmem:[%s40] ss:$16 sm:%s41]
  %s43 = scalar_lea.vmem %s0, 14
  %s44 = smov 12
  %v45 = vld [vmem:[%s43] ss:$16 sm:%s44]
  %vm46 = vcmask 1043458
  %v47 = vsel %vm46, %v45, %v42
  %s48 = scalar_lea.vmem %s0, 14
  %s49 = smov 48
  %v50 = vld [vmem:[%s48] ss:$16 sm:%s49]
  %vm51 = vcmask 1045508
  %v52 = vsel %vm51, %v50, %v47
  %s53 = scalar_lea.vmem %s0, 14
  %s54 = smov 192
  %v55 = vld [vmem:[%s53] ss:$16 sm:%s54]
  %vm56 = vcmask 1047558
  %v57 = vsel %vm56, %v55, %v52
  %58 = vrot.lane.b32.xlu0 %v57, 112
  %v59 = vpop.permute.xlu0 %58
  %vm60 = vcmask 982912
  %61 = vst.msk [vmem:[%s1] sm:$0xff] %vm60, %v59
  %s62 = scalar_lea.vmem %s0, 13
  %s63 = smov 3
  %v64 = vld [vmem:[%s62] ss:$16 sm:%s63]
  %s65 = scalar_lea.vmem %s0, 13
  %s66 = smov 12
  %v67 = vld [vmem:[%s65] ss:$16 sm:%s66]
  %vm68 = vcmask 1043458
  %v69 = vsel %vm68, %v67, %v64
  %s70 = scalar_lea.vmem %s0, 13
  %s71 = smov 48
  %v72 = vld [vmem:[%s70] ss:$16 sm:%s71]
  %vm73 = vcmask 1045508
  %v74 = vsel %vm73, %v72, %v69
  %s75 = scalar_lea.vmem %s0, 13
  %s76 = smov 192
  %v77 = vld [vmem:[%s75] ss:$16 sm:%s76]
  %vm78 = vcmask 1047558
  %v79 = vsel %vm78, %v77, %v74
  %80 = vrot.lane.b32.xlu0 %v79, 104
  %v81 = vpop.permute.xlu0 %80
  %vm82 = vcmask 917312
  %83 = vst.msk [vmem:[%s1] sm:$0xff] %vm82, %v81
  %s84 = scalar_lea.vmem %s0, 12
  %s85 = smov 3
  %v86 = vld [vmem:[%s84] ss:$16 sm:%s85]
  %s87 = scalar_lea.vmem %s0, 12
  %s88 = smov 12
  %v89 = vld [vmem:[%s87] ss:$16 sm:%s88]
  %vm90 = vcmask 1043458
  %v91 = vsel %vm90, %v89, %v86
  %s92 = scalar_lea.vmem %s0, 12
  %s93 = smov 48
  %v94 = vld [vmem:[%s92] ss:$16 sm:%s93]
  %vm95 = vcmask 1045508
  %v96 = vsel %vm95, %v94, %v91
  %s97 = scalar_lea.vmem %s0, 12
  %s98 = smov 192
  %v99 = vld [vmem:[%s97] ss:$16 sm:%s98]
  %vm100 = vcmask 1047558
  %v101 = vsel %vm100, %v99, %v96
  %102 = vrot.lane.b32.xlu0 %v101, 96
  %v103 = vpop.permute.xlu0 %102
  %vm104 = vcmask 851712
  %105 = vst.msk [vmem:[%s1] sm:$0xff] %vm104, %v103
  %s106 = scalar_lea.vmem %s0, 11
  %s107 = smov 3
  %v108 = vld [vmem:[%s106] ss:$16 sm:%s107]
  %s109 = scalar_lea.vmem %s0, 11
  %s110 = smov 12
  %v111 = vld [vmem:[%s109] ss:$16 sm:%s110]
  %vm112 = vcmask 1043458
  %v113 = vsel %vm112, %v111, %v108
  %s114 = scalar_lea.vmem %s0, 11
  %s115 = smov 48
  %v116 = vld [vmem:[%s114] ss:$16 sm:%s115]
  %vm117 = vcmask 1045508
  %v118 = vsel %vm117, %v116, %v113
  %s119 = scalar_lea.vmem %s0, 11
  %s120 = smov 192
  %v121 = vld [vmem:[%s119] ss:$16 sm:%s120]
  %vm122 = vcmask 1047558
  %v123 = vsel %vm122, %v121, %v118
  %124 = vrot.lane.b32.xlu0 %v123, 88
  %v125 = vpop.permute.xlu0 %124
  %vm126 = vcmask 786112
  %127 = vst.msk [vmem:[%s1] sm:$0xff] %vm126, %v125
  %s128 = scalar_lea.vmem %s0, 10
  %s129 = smov 3
  %v130 = vld [vmem:[%s128] ss:$16 sm:%s129]
  %s131 = scalar_lea.vmem %s0, 10
  %s132 = smov 12
  %v133 = vld [vmem:[%s131] ss:$16 sm:%s132]
  %vm134 = vcmask 1043458
  %v135 = vsel %vm134, %v133, %v130
  %s136 = scalar_lea.vmem %s0, 10
  %s137 = smov 48
  %v138 = vld [vmem:[%s136] ss:$16 sm:%s137]
  %vm139 = vcmask 1045508
  %v140 = vsel %vm139, %v138, %v135
  %s141 = scalar_lea.vmem %s0, 10
  %s142 = smov 192
  %v143 = vld [vmem:[%s141] ss:$16 sm:%s142]
  %vm144 = vcmask 1047558
  %v145 = vsel %vm144, %v143, %v140
  %146 = vrot.lane.b32.xlu0 %v145, 80
  %v147 = vpop.permute.xlu0 %146
  %vm148 = vcmask 720512
  %149 = vst.msk [vmem:[%s1] sm:$0xff] %vm148, %v147
  %s150 = scalar_lea.vmem %s0, 9
  %s151 = smov 3
  %v152 = vld [vmem:[%s150] ss:$16 sm:%s151]
  %s153 = scalar_lea.vmem %s0, 9
  %s154 = smov 12
  %v155 = vld [vmem:[%s153] ss:$16 sm:%s154]
  %vm156 = vcmask 1043458
  %v157 = vsel %vm156, %v155, %v152
  %s158 = scalar_lea.vmem %s0, 9
  %s159 = smov 48
  %v160 = vld [vmem:[%s158] ss:$16 sm:%s159]
  %vm161 = vcmask 1045508
  %v162 = vsel %vm161, %v160, %v157
  %s163 = scalar_lea.vmem %s0, 9
  %s164 = smov 192
  %v165 = vld [vmem:[%s163] ss:$16 sm:%s164]
  %vm166 = vcmask 1047558
  %v167 = vsel %vm166, %v165, %v162
  %168 = vrot.lane.b32.xlu0 %v167, 72
  %v169 = vpop.permute.xlu0 %168
  %vm170 = vcmask 654912
  %171 = vst.msk [vmem:[%s1] sm:$0xff] %vm170, %v169
  %s172 = scalar_lea.vmem %s0, 8
  %s173 = smov 3
  %v174 = vld [vmem:[%s172] ss:$16 sm:%s173]
  %s175 = scalar_lea.vmem %s0, 8
  %s176 = smov 12
  %v177 = vld [vmem:[%s175] ss:$16 sm:%s176]
  %vm178 = vcmask 1043458
  %v179 = vsel %vm178, %v177, %v174
  %s180 = scalar_lea.vmem %s0, 8
  %s181 = smov 48
  %v182 = vld [vmem:[%s180] ss:$16 sm:%s181]
  %vm183 = vcmask 1045508
  %v184 = vsel %vm183, %v182, %v179
  %s185 = scalar_lea.vmem %s0, 8
  %s186 = smov 192
  %v187 = vld [vmem:[%s185] ss:$16 sm:%s186]
  %vm188 = vcmask 1047558
  %v189 = vsel %vm188, %v187, %v184
  %190 = vrot.lane.b32.xlu0 %v189, 64
  %v191 = vpop.permute.xlu0 %190
  %vm192 = vcmask 589312
  %193 = vst.msk [vmem:[%s1] sm:$0xff] %vm192, %v191
  %s194 = scalar_lea.vmem %s0, 7
  %s195 = smov 3
  %v196 = vld [vmem:[%s194] ss:$16 sm:%s195]
  %s197 = scalar_lea.vmem %s0, 7
  %s198 = smov 12
  %v199 = vld [vmem:[%s197] ss:$16 sm:%s198]
  %vm200 = vcmask 1043458
  %v201 = vsel %vm200, %v199, %v196
  %s202 = scalar_lea.vmem %s0, 7
  %s203 = smov 48
  %v204 = vld [vmem:[%s202] ss:$16 sm:%s203]
  %vm205 = vcmask 1045508
  %v206 = vsel %vm205, %v204, %v201
  %s207 = scalar_lea.vmem %s0, 7
  %s208 = smov 192
  %v209 = vld [vmem:[%s207] ss:$16 sm:%s208]
  %vm210 = vcmask 1047558
  %v211 = vsel %vm210, %v209, %v206
  %212 = vrot.lane.b32.xlu0 %v211, 56
  %v213 = vpop.permute.xlu0 %212
  %vm214 = vcmask 523712
  %215 = vst.msk [vmem:[%s1] sm:$0xff] %vm214, %v213
  %s216 = scalar_lea.vmem %s0, 6
  %s217 = smov 3
  %v218 = vld [vmem:[%s216] ss:$16 sm:%s217]
  %s219 = scalar_lea.vmem %s0, 6
  %s220 = smov 12
  %v221 = vld [vmem:[%s219] ss:$16 sm:%s220]
  %vm222 = vcmask 1043458
  %v223 = vsel %vm222, %v221, %v218
  %s224 = scalar_lea.vmem %s0, 6
  %s225 = smov 48
  %v226 = vld [vmem:[%s224] ss:$16 sm:%s225]
  %vm227 = vcmask 1045508
  %v228 = vsel %vm227, %v226, %v223
  %s229 = scalar_lea.vmem %s0, 6
  %s230 = smov 192
  %v231 = vld [vmem:[%s229] ss:$16 sm:%s230]
  %vm232 = vcmask 1047558
  %v233 = vsel %vm232, %v231, %v228
  %234 = vrot.lane.b32.xlu0 %v233, 48
  %v235 = vpop.permute.xlu0 %234
  %vm236 = vcmask 458112
  %237 = vst.msk [vmem:[%s1] sm:$0xff] %vm236, %v235
  %s238 = scalar_lea.vmem %s0, 5
  %s239 = smov 3
  %v240 = vld [vmem:[%s238] ss:$16 sm:%s239]
  %s241 = scalar_lea.vmem %s0, 5
  %s242 = smov 12
  %v243 = vld [vmem:[%s241] ss:$16 sm:%s242]
  %vm244 = vcmask 1043458
  %v245 = vsel %vm244, %v243, %v240
  %s246 = scalar_lea.vmem %s0, 5
  %s247 = smov 48
  %v248 = vld [vmem:[%s246] ss:$16 sm:%s247]
  %vm249 = vcmask 1045508
  %v250 = vsel %vm249, %v248, %v245
  %s251 = scalar_lea.vmem %s0, 5
  %s252 = smov 192
  %v253 = vld [vmem:[%s251] ss:$16 sm:%s252]
  %vm254 = vcmask 1047558
  %v255 = vsel %vm254, %v253, %v250
  %256 = vrot.lane.b32.xlu0 %v255, 40
  %v257 = vpop.permute.xlu0 %256
  %vm258 = vcmask 392512
  %259 = vst.msk [vmem:[%s1] sm:$0xff] %vm258, %v257
  %s260 = scalar_lea.vmem %s0, 4
  %s261 = smov 3
  %v262 = vld [vmem:[%s260] ss:$16 sm:%s261]
  %s263 = scalar_lea.vmem %s0, 4
  %s264 = smov 12
  %v265 = vld [vmem:[%s263] ss:$16 sm:%s264]
  %vm266 = vcmask 1043458
  %v267 = vsel %vm266, %v265, %v262
  %s268 = scalar_lea.vmem %s0, 4
  %s269 = smov 48
  %v270 = vld [vmem:[%s268] ss:$16 sm:%s269]
  %vm271 = vcmask 1045508
  %v272 = vsel %vm271, %v270, %v267
  %s273 = scalar_lea.vmem %s0, 4
  %s274 = smov 192
  %v275 = vld [vmem:[%s273] ss:$16 sm:%s274]
  %vm276 = vcmask 1047558
  %v277 = vsel %vm276, %v275, %v272
  %278 = vrot.lane.b32.xlu0 %v277, 32
  %v279 = vpop.permute.xlu0 %278
  %vm280 = vcmask 326912
  %281 = vst.msk [vmem:[%s1] sm:$0xff] %vm280, %v279
  %s282 = scalar_lea.vmem %s0, 3
  %s283 = smov 3
  %v284 = vld [vmem:[%s282] ss:$16 sm:%s283]
  %s285 = scalar_lea.vmem %s0, 3
  %s286 = smov 12
  %v287 = vld [vmem:[%s285] ss:$16 sm:%s286]
  %vm288 = vcmask 1043458
  %v289 = vsel %vm288, %v287, %v284
  %s290 = scalar_lea.vmem %s0, 3
  %s291 = smov 48
  %v292 = vld [vmem:[%s290] ss:$16 sm:%s291]
  %vm293 = vcmask 1045508
  %v294 = vsel %vm293, %v292, %v289
  %s295 = scalar_lea.vmem %s0, 3
  %s296 = smov 192
  %v297 = vld [vmem:[%s295] ss:$16 sm:%s296]
  %vm298 = vcmask 1047558
  %v299 = vsel %vm298, %v297, %v294
  %300 = vrot.lane.b32.xlu0 %v299, 24
  %v301 = vpop.permute.xlu0 %300
  %vm302 = vcmask 261312
  %303 = vst.msk [vmem:[%s1] sm:$0xff] %vm302, %v301
  %s304 = scalar_lea.vmem %s0, 2
  %s305 = smov 3
  %v306 = vld [vmem:[%s304] ss:$16 sm:%s305]
  %s307 = scalar_lea.vmem %s0, 2
  %s308 = smov 12
  %v309 = vld [vmem:[%s307] ss:$16 sm:%s308]
  %vm310 = vcmask 1043458
  %v311 = vsel %vm310, %v309, %v306
  %s312 = scalar_lea.vmem %s0, 2
  %s313 = smov 48
  %v314 = vld [vmem:[%s312] ss:$16 sm:%s313]
  %vm315 = vcmask 1045508
  %v316 = vsel %vm315, %v314, %v311
  %s317 = scalar_lea.vmem %s0, 2
  %s318 = smov 192
  %v319 = vld [vmem:[%s317] ss:$16 sm:%s318]
  %vm320 = vcmask 1047558
  %v321 = vsel %vm320, %v319, %v316
  %322 = vrot.lane.b32.xlu0 %v321, 16
  %v323 = vpop.permute.xlu0 %322
  %vm324 = vcmask 195712
  %325 = vst.msk [vmem:[%s1] sm:$0xff] %vm324, %v323
  %s326 = scalar_lea.vmem %s0, 1
  %s327 = smov 3
  %v328 = vld [vmem:[%s326] ss:$16 sm:%s327]
  %s329 = scalar_lea.vmem %s0, 1
  %s330 = smov 12
  %v331 = vld [vmem:[%s329] ss:$16 sm:%s330]
  %vm332 = vcmask 1043458
  %v333 = vsel %vm332, %v331, %v328
  %s334 = scalar_lea.vmem %s0, 1
  %s335 = smov 48
  %v336 = vld [vmem:[%s334] ss:$16 sm:%s335]
  %vm337 = vcmask 1045508
  %v338 = vsel %vm337, %v336, %v333
  %s339 = scalar_lea.vmem %s0, 1
  %s340 = smov 192
  %v341 = vld [vmem:[%s339] ss:$16 sm:%s340]
  %vm342 = vcmask 1047558
  %v343 = vsel %vm342, %v341, %v338
  %344 = vrot.lane.b32.xlu0 %v343, 8
  %v345 = vpop.permute.xlu0 %344
  %vm346 = vcmask 130112
  %347 = vst.msk [vmem:[%s1] sm:$0xff] %vm346, %v345

// kernel: tile.14
$region0: #{tile.14}
  %s0 = inlined_call_operand.vmem [shape: f32[3,16,8], index: 0, kind: input, shape index: {}]
  %s1 = inlined_call_operand.vmem [shape: f32[3,128], index: 1, kind: output, shape index: {}]
  $region1: #{tile.14} parent=0
    #allocation0 [shape = 'u8[4096]{0}', space=vmem, size = 0x1000, scoped, tag = 'scoped mem for output reshape']
    %s2 = smov 3
    %v3 = vld [vmem:[%s0] ss:$16 sm:%s2]
    %s4 = scalar_lea.vmem %s0, 30
    %v5 = vld [vmem:[%s4] sm:$0x4]
    %vm6 = vcmask 1042434
    %v7 = vsel %vm6, %v5, %v3
    %vm8 = vcmask 64512
    %9 = vst.msk [vmem:[#allocation0] sm:$0x7] %vm8, %v7
    %s10 = scalar_lea.vmem %s0, 15
    %s11 = smov 3
    %v12 = vld [vmem:[%s10] ss:$16 sm:%s11]
    %s13 = scalar_lea.vmem %s0, 45
    %v14 = vld [vmem:[%s13] sm:$0x4]
    %vm15 = vcmask 1042434
    %v16 = vsel %vm15, %v14, %v12
    %17 = vrot.lane.b32.xlu0 %v16, 120
    %v18 = vpop.permute.xlu0 %17
    %vm19 = vcmask 1048512
    %20 = vst.msk [vmem:[#allocation0] sm:$0x7] %vm19, %v18
    %s21 = scalar_lea.vmem %s0, 14
    %s22 = smov 3
    %v23 = vld [vmem:[%s21] ss:$16 sm:%s22]
    %s24 = scalar_lea.vmem %s0, 44
    %v25 = vld [vmem:[%s24] sm:$0x4]
    %vm26 = vcmask 1042434
    %v27 = vsel %vm26, %v25, %v23
    %28 = vrot.lane.b32.xlu0 %v27, 112
    %v29 = vpop.permute.xlu0 %28
    %vm30 = vcmask 982912
    %31 = vst.msk [vmem:[#allocation0] sm:$0x7] %vm30, %v29
    %s32 = scalar_lea.vmem %s0, 13
    %s33 = smov 3
    %v34 = vld [vmem:[%s32] ss:$16 sm:%s33]
    %s35 = scalar_lea.vmem %s0, 43
    %v36 = vld [vmem:[%s35] sm:$0x4]
    %vm37 = vcmask 1042434
    %v38 = vsel %vm37, %v36, %v34
    %39 = vrot.lane.b32.xlu0 %v38, 104
    %v40 = vpop.permute.xlu0 %39
    %vm41 = vcmask 917312
    %42 = vst.msk [vmem:[#allocation0] sm:$0x7] %vm41, %v40
    %s43 = scalar_lea.vmem %s0, 12
    %s44 = smov 3
    %v45 = vld [vmem:[%s43] ss:$16 sm:%s44]
    %s46 = scalar_lea.vmem %s0, 42
    %v47 = vld [vmem:[%s46] sm:$0x4]
    %vm48 = vcmask 1042434
    %v49 = vsel %vm48, %v47, %v45
    %50 = vrot.lane.b32.xlu0 %v49, 96
    %v51 = vpop.permute.xlu0 %50
    %vm52 = vcmask 851712
    %53 = vst.msk [vmem:[#allocation0] sm:$0x7] %vm52, %v51
    %s54 = scalar_lea.vmem %s0, 11
    %s55 = smov 3
    %v56 = vld [vmem:[%s54] ss:$16 sm:%s55]
    %s57 = scalar_lea.vmem %s0, 41
    %v58 = vld [vmem:[%s57] sm:$0x4]
    %vm59 = vcmask 1042434
    %v60 = vsel %vm59, %v58, %v56
    %61 = vrot.lane.b32.xlu0 %v60, 88
    %v62 = vpop.permute.xlu0 %61
    %vm63 = vcmask 786112
    %64 = vst.msk [vmem:[#allocation0] sm:$0x7] %vm63, %v62
    %s65 = scalar_lea.vmem %s0, 10
    %s66 = smov 3
    %v67 = vld [vmem:[%s65] ss:$16 sm:%s66]
    %s68 = scalar_lea.vmem %s0, 40
    %v69 = vld [vmem:[%s68] sm:$0x4]
    %vm70 = vcmask 1042434
    %v71 = vsel %vm70, %v69, %v67
    %72 = vrot.lane.b32.xlu0 %v71, 80
    %v73 = vpop.permute.xlu0 %72
    %vm74 = vcmask 720512
    %75 = vst.msk [vmem:[#allocation0] sm:$0x7] %vm74, %v73
    %s76 = scalar_lea.vmem %s0, 9
    %s77 = smov 3
    %v78 = vld [vmem:[%s76] ss:$16 sm:%s77]
    %s79 = scalar_lea.vmem %s0, 39
    %v80 = vld [vmem:[%s79] sm:$0x4]
    %vm81 = vcmask 1042434
    %v82 = vsel %vm81, %v80, %v78
    %83 = vrot.lane.b32.xlu0 %v82, 72
    %v84 = vpop.permute.xlu0 %83
    %vm85 = vcmask 654912
    %86 = vst.msk [vmem:[#allocation0] sm:$0x7] %vm85, %v84
    %s87 = scalar_lea.vmem %s0, 8
    %s88 = smov 3
    %v89 = vld [vmem:[%s87] ss:$16 sm:%s88]
    %s90 = scalar_lea.vmem %s0, 38
    %v91 = vld [vmem:[%s90] sm:$0x4]
    %vm92 = vcmask 1042434
    %v93 = vsel %vm92, %v91, %v89
    %94 = vrot.lane.b32.xlu0 %v93, 64
    %v95 = vpop.permute.xlu0 %94
    %vm96 = vcmask 589312
    %97 = vst.msk [vmem:[#allocation0] sm:$0x7] %vm96, %v95
    %s98 = scalar_lea.vmem %s0, 7
    %s99 = smov 3
    %v100 = vld [vmem:[%s98] ss:$16 sm:%s99]
    %s101 = scalar_lea.vmem %s0, 37
    %v102 = vld [vmem:[%s101] sm:$0x4]
    %vm103 = vcmask 1042434
    %v104 = vsel %vm103, %v102, %v100
    %105 = vrot.lane.b32.xlu0 %v104, 56
    %v106 = vpop.permute.xlu0 %105
    %vm107 = vcmask 523712
    %108 = vst.msk [vmem:[#allocation0] sm:$0x7] %vm107, %v106
    %s109 = scalar_lea.vmem %s0, 6
    %s110 = smov 3
    %v111 = vld [vmem:[%s109] ss:$16 sm:%s110]
    %s112 = scalar_lea.vmem %s0, 36
    %v113 = vld [vmem:[%s112] sm:$0x4]
    %vm114 = vcmask 1042434
    %v115 = vsel %vm114, %v113, %v111
    %116 = vrot.lane.b32.xlu0 %v115, 48
    %v117 = vpop.permute.xlu0 %116
    %vm118 = vcmask 458112
    %119 = vst.msk [vmem:[#allocation0] sm:$0x7] %vm118, %v117
    %s120 = scalar_lea.vmem %s0, 5
    %s121 = smov 3
    %v122 = vld [vmem:[%s120] ss:$16 sm:%s121]
    %s123 = scalar_lea.vmem %s0, 35
    %v124 = vld [vmem:[%s123] sm:$0x4]
    %vm125 = vcmask 1042434
    %v126 = vsel %vm125, %v124, %v122
    %127 = vrot.lane.b32.xlu0 %v126, 40
    %v128 = vpop.permute.xlu0 %127
    %vm129 = vcmask 392512
    %130 = vst.msk [vmem:[#allocation0] sm:$0x7] %vm129, %v128
    %s131 = scalar_lea.vmem %s0, 4
    %s132 = smov 3
    %v133 = vld [vmem:[%s131] ss:$16 sm:%s132]
    %s134 = scalar_lea.vmem %s0, 34
    %v135 = vld [vmem:[%s134] sm:$0x4]
    %vm136 = vcmask 1042434
    %v137 = vsel %vm136, %v135, %v133
    %138 = vrot.lane.b32.xlu0 %v137, 32
    %v139 = vpop.permute.xlu0 %138
    %vm140 = vcmask 326912
    %141 = vst.msk [vmem:[#allocation0] sm:$0x7] %vm140, %v139
    %s142 = scalar_lea.vmem %s0, 3
    %s143 = smov 3
    %v144 = vld [vmem:[%s142] ss:$16 sm:%s143]
    %s145 = scalar_lea.vmem %s0, 33
    %v146 = vld [vmem:[%s145] sm:$0x4]
    %vm147 = vcmask 1042434
    %v148 = vsel %vm147, %v146, %v144
    %149 = vrot.lane.b32.xlu0 %v148, 24
    %v150 = vpop.permute.xlu0 %149
    %vm151 = vcmask 261312
    %152 = vst.msk [vmem:[#allocation0] sm:$0x7] %vm151, %v150
    %s153 = scalar_lea.vmem %s0, 2
    %s154 = smov 3
    %v155 = vld [vmem:[%s153] ss:$16 sm:%s154]
    %s156 = scalar_lea.vmem %s0, 32
    %v157 = vld [vmem:[%s156] sm:$0x4]
    %vm158 = vcmask 1042434
    %v159 = vsel %vm158, %v157, %v155
    %160 = vrot.lane.b32.xlu0 %v159, 16
    %v161 = vpop.permute.xlu0 %160
    %vm162 = vcmask 195712
    %163 = vst.msk [vmem:[#allocation0] sm:$0x7] %vm162, %v161
    %s164 = scalar_lea.vmem %s0, 1
    %s165 = smov 3
    %v166 = vld [vmem:[%s164] ss:$16 sm:%s165]
    %s167 = scalar_lea.vmem %s0, 31
    %v168 = vld [vmem:[%s167] sm:$0x4]
    %vm169 = vcmask 1042434
    %v170 = vsel %vm169, %v168, %v166
    %171 = vrot.lane.b32.xlu0 %v170, 8
    %v172 = vpop.permute.xlu0 %171
    %vm173 = vcmask 130112
    %174 = vst.msk [vmem:[#allocation0] sm:$0x7] %vm173, %v172
    %s176 = sshllo.u32 0, 4
    %v178 = vld [vmem:[#allocation0] sm:%s176]
    %s179 = sshllo.u32 0, 4
    %180 = vst [vmem:[%s1] sm:%s179] %v178

// kernel: bc_res_block.1
$region0: #{bc_res_block.1}
  #allocation0 [shape = 'u32[]', space=smem, size = 0x4, offset = 0x4, fixed_abs, tag = 'smem constant byte address 0x4 - core index']
  #allocation1 [shape = 'u32[144,128]{1,0:T(1,128)}', space=vmem, size = 0x12000, scoped, tag = 'internal scratch']
  #allocation2 [shape = 'f32[2,22,128]{2,1,0:T(8,128)}', space=vmem, size = 0x6000, scoped, tag = 'scratch operand']
  %s0 = inlined_call_operand.vmem [shape: f32[2,20,64], index: 0, kind: input, shape index: {}]
  %s1 = inlined_call_operand.vmem [shape: bf16[64,128], index: 1, kind: input, shape index: {}]
  %s2 = inlined_call_operand.vmem [shape: f32[1,8], index: 2, kind: input, shape index: {}]
  %s3 = inlined_call_operand.vmem [shape: f32[1,8], index: 3, kind: input, shape index: {}]
  %s4 = inlined_call_operand.vmem [shape: f32[3,128], index: 4, kind: input, shape index: {}]
  %s5 = inlined_call_operand.vmem [shape: f32[5,8], index: 5, kind: input, shape index: {}]
  %s6 = inlined_call_operand.vmem [shape: f32[5,8], index: 6, kind: input, shape index: {}]
  %s7 = inlined_call_operand.vmem [shape: bf16[128,128], index: 7, kind: input, shape index: {}]
  %s8 = inlined_call_operand.vmem [shape: f32[1,8], index: 8, kind: input, shape index: {}]
  %s9 = inlined_call_operand.vmem [shape: f32[1,8], index: 9, kind: input, shape index: {}]
  %s10 = inlined_call_operand.vmem [shape: bf16[128,128], index: 10, kind: input, shape index: {}]
  %s11 = inlined_call_operand.vmem [shape: f32[128,8], index: 11, kind: input, shape index: {}]
  %s12 = inlined_call_operand.vmem [shape: f32[8,128], index: 12, kind: input, shape index: {}]
  %s13 = inlined_call_operand.vmem [shape: f32[5,20], index: 13, kind: input, shape index: {}]
  %s14 = inlined_call_operand.vmem [shape: f32[20,5], index: 14, kind: input, shape index: {}]
  %s15 = inlined_call_operand.vmem [shape: f32[2,20,128], index: 15, kind: output, shape index: {}]
  %s16 = sld [smem:[#allocation0]]
  $region70: #{bc_res_block.1} parent=0
    _
  %s18 = ssub.s32 1, %s16
  %s19 = scalar_select 0, %s18, %s16
  // Predicated region
  $region2: #{bc_res_block.1} parent=0 // pred_check
    _
  $region3: #{bc_res_block.1} parent=0 // pred_check_branch
    %21 = sbr.rel (0) target = $region5
  $region4: #{bc_res_block.1} parent=0 // pred_region
    _
  $region5: #{bc_res_block.1} parent=0 // pred_fallthru
    _
  // Predicated region
  $region6: #{bc_res_block.1} parent=0 // pred_check
    _
  $region7: #{bc_res_block.1} parent=0 // pred_check_branch
    %23 = sbr.rel (0) target = $region9
  $region8: #{bc_res_block.1} parent=0 // pred_region
    _
  $region9: #{bc_res_block.1} parent=0 // pred_fallthru
    _
  // Predicated region
  $region10: #{bc_res_block.1} parent=0 // pred_check
    _
  $region11: #{bc_res_block.1} parent=0 // pred_check_branch
    %25 = sbr.rel (0) target = $region13
  $region12: #{bc_res_block.1} parent=0 // pred_region
    _
  $region13: #{bc_res_block.1} parent=0 // pred_fallthru
    _
  // Predicated region
  $region14: #{bc_res_block.1} parent=0 // pred_check
    _
  $region15: #{bc_res_block.1} parent=0 // pred_check_branch
    %27 = sbr.rel (0) target = $region17
  $region16: #{bc_res_block.1} parent=0 // pred_region
    _
  $region17: #{bc_res_block.1} parent=0 // pred_fallthru
    _
  // Predicated region
  $region18: #{bc_res_block.1} parent=0 // pred_check
    _
  $region19: #{bc_res_block.1} parent=0 // pred_check_branch
    %29 = sbr.rel (0) target = $region21
  $region20: #{bc_res_block.1} parent=0 // pred_region
    _
  $region21: #{bc_res_block.1} parent=0 // pred_fallthru
    _
  // Predicated region
  $region22: #{bc_res_block.1} parent=0 // pred_check
    _
  $region23: #{bc_res_block.1} parent=0 // pred_check_branch
    %31 = sbr.rel (0) target = $region25
  $region24: #{bc_res_block.1} parent=0 // pred_region
    _
  $region25: #{bc_res_block.1} parent=0 // pred_fallthru
    _
  // Predicated region
  $region26: #{bc_res_block.1} parent=0 // pred_check
    _
  $region27: #{bc_res_block.1} parent=0 // pred_check_branch
    %33 = sbr.rel (0) target = $region29
  $region28: #{bc_res_block.1} parent=0 // pred_region
    _
  $region29: #{bc_res_block.1} parent=0 // pred_fallthru
    _
  // Predicated region
  $region30: #{bc_res_block.1} parent=0 // pred_check
    _
  $region31: #{bc_res_block.1} parent=0 // pred_check_branch
    %35 = sbr.rel (0) target = $region33
  $region32: #{bc_res_block.1} parent=0 // pred_region
    _
  $region33: #{bc_res_block.1} parent=0 // pred_fallthru
    _
  // Predicated region
  $region34: #{bc_res_block.1} parent=0 // pred_check
    _
  $region35: #{bc_res_block.1} parent=0 // pred_check_branch
    %37 = sbr.rel (0) target = $region37
  $region36: #{bc_res_block.1} parent=0 // pred_region
    _
  $region37: #{bc_res_block.1} parent=0 // pred_fallthru
    _
  // Predicated region
  $region38: #{bc_res_block.1} parent=0 // pred_check
    _
  $region39: #{bc_res_block.1} parent=0 // pred_check_branch
    %39 = sbr.rel (0) target = $region41
  $region40: #{bc_res_block.1} parent=0 // pred_region
    _
  $region41: #{bc_res_block.1} parent=0 // pred_fallthru
    _
  // Predicated region
  $region42: #{bc_res_block.1} parent=0 // pred_check
    _
  $region43: #{bc_res_block.1} parent=0 // pred_check_branch
    %41 = sbr.rel (0) target = $region45
  $region44: #{bc_res_block.1} parent=0 // pred_region
    _
  $region45: #{bc_res_block.1} parent=0 // pred_fallthru
    _
  // Predicated region
  $region46: #{bc_res_block.1} parent=0 // pred_check
    _
  $region47: #{bc_res_block.1} parent=0 // pred_check_branch
    %43 = sbr.rel (0) target = $region49
  $region48: #{bc_res_block.1} parent=0 // pred_region
    _
  $region49: #{bc_res_block.1} parent=0 // pred_fallthru
    _
  // Predicated region
  $region50: #{bc_res_block.1} parent=0 // pred_check
    _
  $region51: #{bc_res_block.1} parent=0 // pred_check_branch
    %45 = sbr.rel (0) target = $region53
  $region52: #{bc_res_block.1} parent=0 // pred_region
    _
  $region53: #{bc_res_block.1} parent=0 // pred_fallthru
    _
  // Predicated region
  $region54: #{bc_res_block.1} parent=0 // pred_check
    _
  $region55: #{bc_res_block.1} parent=0 // pred_check_branch
    %47 = sbr.rel (0) target = $region57
  $region56: #{bc_res_block.1} parent=0 // pred_region
    _
  $region57: #{bc_res_block.1} parent=0 // pred_fallthru
    _
  // Predicated region
  $region58: #{bc_res_block.1} parent=0 // pred_check
    _
  $region59: #{bc_res_block.1} parent=0 // pred_check_branch
    %49 = sbr.rel (0) target = $region61
  $region60: #{bc_res_block.1} parent=0 // pred_region
    _
  $region61: #{bc_res_block.1} parent=0 // pred_fallthru
    _
  %v51 = vld [vmem:[%s0] sm:$0xff]
  %v52 = vld [vmem:[%s0 + $0x8] sm:$0xff]
  %v53 = vld [vmem:[%s0 + $0x10] sm:$0xf]
  %v54 = vld [vmem:[%s0 + $0x18] sm:$0xff]
  %v55 = vld [vmem:[%s0 + $0x20] sm:$0xff]
  %v56 = vld [vmem:[%s0 + $0x28] sm:$0xf]
  %v57 = vld [vmem:[%s11] sm:$0xff]
  %v58 = vld [vmem:[%s11 + $0x8] sm:$0xff]
  %v59 = vld [vmem:[%s11 + $0x10] sm:$0xff]
  %v60 = vld [vmem:[%s11 + $0x18] sm:$0xff]
  %v61 = vld [vmem:[%s11 + $0x20] sm:$0xff]
  %v62 = vld [vmem:[%s11 + $0x28] sm:$0xff]
  %v63 = vld [vmem:[%s11 + $0x30] sm:$0xff]
  %v64 = vld [vmem:[%s11 + $0x38] sm:$0xff]
  %v65 = vld [vmem:[%s11 + $0x40] sm:$0xff]
  %v66 = vld [vmem:[%s11 + $0x48] sm:$0xff]
  %v67 = vld [vmem:[%s11 + $0x50] sm:$0xff]
  %v68 = vld [vmem:[%s11 + $0x58] sm:$0xff]
  %v69 = vld [vmem:[%s11 + $0x60] sm:$0xff]
  %v70 = vld [vmem:[%s11 + $0x68] sm:$0xff]
  %v71 = vld [vmem:[%s11 + $0x70] sm:$0xff]
  %v72 = vld [vmem:[%s11 + $0x78] sm:$0xff]
  %v73 = vld [vmem:[%s12] sm:$0xff]
  %v74 = vld [vmem:[%s13] sm:$0x1f]
  %v75 = vld [vmem:[%s14] sm:$0xff]
  %v76 = vld [vmem:[%s14 + $0x8] sm:$0xff]
  %v77 = vld [vmem:[%s14 + $0x10] sm:$0xf]
  %v78 = vld [vmem:[%s1] sm:$0xf]
  %v79 = vld [vmem:[%s1 + $0x4] sm:$0xf]
  %v80 = vld [vmem:[%s1 + $0x8] sm:$0xf]
  %v81 = vld [vmem:[%s1 + $0xc] sm:$0xf]
  %v82 = vld [vmem:[%s1 + $0x10] sm:$0xf]
  %v83 = vld [vmem:[%s1 + $0x14] sm:$0xf]
  %v84 = vld [vmem:[%s1 + $0x18] sm:$0xf]
  %v85 = vld [vmem:[%s1 + $0x1c] sm:$0xf]
  %v86 = vpack.c.bf16 %v52, %v51
  %v87 = vpack.c.bf16 %v53, %v53
  %v88 = vpack.c.bf16 %v55, %v54
  %v89 = vpack.c.bf16 %v56, %v56
  %v98 = vunpack.c.l.b16 %v78
  %v99 = vunpack.c.l.b16 %v79
  %v100 = vunpack.c.l.b16 %v80
  %v101 = vunpack.c.l.b16 %v81
  %v102 = vunpack.c.l.b16 %v82
  %v103 = vunpack.c.l.b16 %v83
  %v104 = vunpack.c.l.b16 %v84
  %v105 = vunpack.c.l.b16 %v85
  %v106 = vpack.c.b16 %v99, %v98
  %v107 = vpack.c.b16 %v101, %v100
  %v108 = vpack.c.b16 %v103, %v102
  %v109 = vpack.c.b16 %v105, %v104
  %vm114 = vcmask 523264
  %v116 = vsel %vm114, %v86, 0
  %v119 = vsel %vm114, %v87, 0
  %121 = vmatprep.subr.bf16.mxu0 0
  %122 = vmatpush1.bf16.msra.mxu0 %v106
  %123 = vmatprep.subr.bf16.mxu0 0
  %124 = vmatpush1.bf16.msra.mxu0 %v107
  %125 = vmatprep.subr.bf16.mxu0 0
  %126 = vmatpush1.bf16.msra.mxu0 %v108
  %127 = vmatprep.subr.bf16.mxu0 0
  %128 = vmatpush1.bf16.msra.mxu0 %v109
  %129 = vmatprep.subr.bf16.mxu0 0
  %130 = vmatpush1.bf16.msra.mxu0 0
  %131 = vmatprep.subr.bf16.mxu0 0
  %132 = vmatpush1.bf16.msra.mxu0 0
  %133 = vmatprep.subr.bf16.mxu0 0
  %134 = vmatpush1.bf16.msra.mxu0 0
  %135 = vmatprep.subr.bf16.mxu0 0
  %136 = vmatpush1.bf16.msra.mxu0 0
  %137 = vmatprep.subr.bf16.mxu0 0
  %138 = vmatpush1.bf16.msra.mxu0 0
  %139 = vmatprep.subr.bf16.mxu0 0
  %140 = vmatpush1.bf16.msra.mxu0 0
  %141 = vmatprep.subr.bf16.mxu0 0
  %142 = vmatpush1.bf16.msra.mxu0 0
  %143 = vmatprep.subr.bf16.mxu0 0
  %144 = vmatpush1.bf16.msra.mxu0 0
  %145 = vmatprep.subr.bf16.mxu0 0
  %146 = vmatpush1.bf16.msra.mxu0 0
  %147 = vmatprep.subr.bf16.mxu0 0
  %148 = vmatpush1.bf16.msra.mxu0 0
  %149 = vmatprep.subr.bf16.mxu0 0
  %150 = vmatpush1.bf16.msra.mxu0 0
  %151 = vmatprep.subr.bf16.mxu0 0
  %152 = vmatpush1.bf16.msra.mxu0 0
  %153 = vmatprep.mubr.bf16.mxu0 0
  %154 = vmatmul.mubr.bf16.gmra.mrb[0].mxu0 %v116
  %v155 = vpop.f32.mrb[0].mxu0
  %v156 = vadd.f32 0.0, %v155
  %v157 = vpop.f32.mrb[0].mxu0
  %v158 = vpop.f32.mrb[0].mxu0
  %v159 = vadd.f32 0.0, %v158
  %v160 = vpop.f32.mrb[0].mxu0
  %161 = vmatprep.mubr.bf16.mxu0 0
  %162 = vmatmul.mubr.bf16.gmra.mrb[0].mxu0 %v119
  %v163 = vpop.f32.mrb[0].mxu0
  %v164 = vadd.f32 0.0, %v163
  %v165 = vpop.f32.mrb[0].mxu0
  %v166 = vpop.f32.mrb[0].mxu0
  %v167 = vpop.f32.mrb[0].mxu0
  %168 = vdwg.mxu0
  %v170 = vsel %vm114, %v88, 0
  %v173 = vsel %vm114, %v89, 0
  %175 = vmatprep.subr.bf16.mxu0 0
  %176 = vmatpush1.bf16.msra.mxu0 %v106
  %177 = vmatprep.subr.bf16.mxu0 0
  %178 = vmatpush1.bf16.msra.mxu0 %v107
  %179 = vmatprep.subr.bf16.mxu0 0
  %180 = vmatpush1.bf16.msra.mxu0 %v108
  %181 = vmatprep.subr.bf16.mxu0 0
  %182 = vmatpush1.bf16.msra.mxu0 %v109
  %183 = vmatprep.subr.bf16.mxu0 0
  %184 = vmatpush1.bf16.msra.mxu0 0
  %185 = vmatprep.subr.bf16.mxu0 0
  %186 = vmatpush1.bf16.msra.mxu0 0
  %187 = vmatprep.subr.bf16.mxu0 0
  %188 = vmatpush1.bf16.msra.mxu0 0
  %189 = vmatprep.subr.bf16.mxu0 0
  %190 = vmatpush1.bf16.msra.mxu0 0
  %191 = vmatprep.subr.bf16.mxu0 0
  %192 = vmatpush1.bf16.msra.mxu0 0
  %193 = vmatprep.subr.bf16.mxu0 0
  %194 = vmatpush1.bf16.msra.mxu0 0
  %195 = vmatprep.subr.bf16.mxu0 0
  %196 = vmatpush1.bf16.msra.mxu0 0
  %197 = vmatprep.subr.bf16.mxu0 0
  %198 = vmatpush1.bf16.msra.mxu0 0
  %199 = vmatprep.subr.bf16.mxu0 0
  %200 = vmatpush1.bf16.msra.mxu0 0
  %201 = vmatprep.subr.bf16.mxu0 0
  %202 = vmatpush1.bf16.msra.mxu0 0
  %203 = vmatprep.subr.bf16.mxu0 0
  %204 = vmatpush1.bf16.msra.mxu0 0
  %205 = vmatprep.subr.bf16.mxu0 0
  %206 = vmatpush1.bf16.msra.mxu0 0
  %207 = vmatprep.mubr.bf16.mxu0 0
  %208 = vmatmul.mubr.bf16.gmra.mrb[0].mxu0 %v170
  %v209 = vpop.f32.mrb[0].mxu0
  %v210 = vadd.f32 0.0, %v209
  %v211 = vpop.f32.mrb[0].mxu0
  %v212 = vpop.f32.mrb[0].mxu0
  %v213 = vadd.f32 0.0, %v212
  %v214 = vpop.f32.mrb[0].mxu0
  %215 = vmatprep.mubr.bf16.mxu0 0
  %216 = vmatmul.mubr.bf16.gmra.mrb[0].mxu0 %v173
  %v217 = vpop.f32.mrb[0].mxu0
  %v218 = vadd.f32 0.0, %v217
  %v219 = vpop.f32.mrb[0].mxu0
  %v220 = vpop.f32.mrb[0].mxu0
  %v221 = vpop.f32.mrb[0].mxu0
  %222 = vdwg.mxu0
  %v223 = vld [vmem:[%s2] sm:$0x1]
  %v224 = vld [vmem:[%s3] sm:$0x1]
  %v225 = vadd.f32 %v156, %v210
  %v226 = vadd.f32 %v159, %v213
  %vm227 = vcmask 1043456
  %v228 = vsel %vm227, %v164, 0.0
  %v229 = vsel %vm227, %v218, 0.0
  %v230 = vadd.f32 %v228, %v229
  %v231 = vadd.f32 %v225, %v226
  %v232 = vsel %vm227, %v230, 0.0
  %v233 = vadd.f32 %v231, %v232
  %v234 = vrot.slane %v233, 4
  %v235 = vadd.f32 %v233, %v234
  %v236 = vrot.slane %v235, 2
  %v237 = vadd.f32 %v235, %v236
  %v238 = vrot.slane %v237, 1
  %v239 = vadd.f32 %v237, %v238
  %240 = vmatprep.subr.mxu0 0.0
  %241 = vmatpush1.msra.mxu0 %v57
  %242 = vmatprep.subr.mxu0 0.0
  %243 = vmatpush1.msra.mxu0 %v58
  %244 = vmatprep.subr.mxu0 0.0
  %245 = vmatpush1.msra.mxu0 %v59
  %246 = vmatprep.subr.mxu0 0.0
  %247 = vmatpush1.msra.mxu0 %v60
  %248 = vmatprep.subr.mxu0 0.0
  %249 = vmatpush1.msra.mxu0 %v61
  %250 = vmatprep.subr.mxu0 0.0
  %251 = vmatpush1.msra.mxu0 %v62
  %252 = vmatprep.subr.mxu0 0.0
  %253 = vmatpush1.msra.mxu0 %v63
  %254 = vmatprep.subr.mxu0 0.0
  %255 = vmatpush1.msra.mxu0 %v64
  %256 = vmatprep.subr.mxu0 0.0
  %257 = vmatpush1.msra.mxu0 %v65
  %258 = vmatprep.subr.mxu0 0.0
  %259 = vmatpush1.msra.mxu0 %v66
  %260 = vmatprep.subr.mxu0 0.0
  %261 = vmatpush1.msra.mxu0 %v67
  %262 = vmatprep.subr.mxu0 0.0
  %263 = vmatpush1.msra.mxu0 %v68
  %264 = vmatprep.subr.mxu0 0.0
  %265 = vmatpush1.msra.mxu0 %v69
  %266 = vmatprep.subr.mxu0 0.0
  %267 = vmatpush1.msra.mxu0 %v70
  %268 = vmatprep.subr.mxu0 0.0
  %269 = vmatpush1.msra.mxu0 %v71
  %270 = vmatprep.subr.mxu0 0.0
  %271 = vmatpush1.msra.mxu0 %v72
  %272 = vmatprep.subr.mxu0 0.0
  %273 = vmatpush1.msra.mxu0 0.0
  %274 = vmatprep.subr.mxu0 0.0
  %275 = vmatpush1.msra.mxu0 0.0
  %276 = vmatprep.subr.mxu0 0.0
  %277 = vmatpush1.msra.mxu0 0.0
  %278 = vmatprep.subr.mxu0 0.0
  %279 = vmatpush1.msra.mxu0 0.0
  %280 = vmatprep.subr.mxu0 0.0
  %281 = vmatpush1.msra.mxu0 0.0
  %282 = vmatprep.subr.mxu0 0.0
  %283 = vmatpush1.msra.mxu0 0.0
  %284 = vmatprep.subr.mxu0 0.0
  %285 = vmatpush1.msra.mxu0 0.0
  %286 = vmatprep.subr.mxu0 0.0
  %287 = vmatpush1.msra.mxu0 0.0
  %288 = vmatprep.subr.mxu0 0.0
  %289 = vmatpush1.msra.mxu0 0.0
  %290 = vmatprep.subr.mxu0 0.0
  %291 = vmatpush1.msra.mxu0 0.0
  %292 = vmatprep.subr.mxu0 0.0
  %293 = vmatpush1.msra.mxu0 0.0
  %294 = vmatprep.subr.mxu0 0.0
  %295 = vmatpush1.msra.mxu0 0.0
  %296 = vmatprep.subr.mxu0 0.0
  %297 = vmatpush1.msra.mxu0 0.0
  %298 = vmatprep.subr.mxu0 0.0
  %299 = vmatpush1.msra.mxu0 0.0
  %300 = vmatprep.subr.mxu0 0.0
  %301 = vmatpush1.msra.mxu0 0.0
  %302 = vmatprep.subr.mxu0 0.0
  %303 = vmatpush1.msra.mxu0 0.0
  %304 = vmatprep.mubr.f32.mxu0 0.0
  %305 = vmatmul.mubr.f32.gmra.mrb[0].mxu0 %v239
  %v306 = vpop.f32.mrb[0].mxu0
  %v307 = vadd.f32 0.0, %v306
  %v308 = vpop.f32.mrb[0].mxu0
  %309 = vdwg.mxu0
  %v310 = vrcp.pop 640.0
  %v311 = vmul.f32 %v307, %v310
  %vm312 = vcmask 64512
  %v314 = vsel %vm312, %v311, 0
  %316 = vmatprep.subr.mxu0 0.0
  %317 = vmatpush1.msra.mxu0 %v73
  %318 = vmatprep.subr.mxu0 0.0
  %319 = vmatpush1.msra.mxu0 0.0
  %320 = vmatprep.subr.mxu0 0.0
  %321 = vmatpush1.msra.mxu0 0.0
  %322 = vmatprep.subr.mxu0 0.0
  %323 = vmatpush1.msra.mxu0 0.0
  %324 = vmatprep.subr.mxu0 0.0
  %325 = vmatpush1.msra.mxu0 0.0
  %326 = vmatprep.subr.mxu0 0.0
  %327 = vmatpush1.msra.mxu0 0.0
  %328 = vmatprep.subr.mxu0 0.0
  %329 = vmatpush1.msra.mxu0 0.0
  %330 = vmatprep.subr.mxu0 0.0
  %331 = vmatpush1.msra.mxu0 0.0
  %332 = vmatprep.subr.mxu0 0.0
  %333 = vmatpush1.msra.mxu0 0.0
  %334 = vmatprep.subr.mxu0 0.0
  %335 = vmatpush1.msra.mxu0 0.0
  %336 = vmatprep.subr.mxu0 0.0
  %337 = vmatpush1.msra.mxu0 0.0
  %338 = vmatprep.subr.mxu0 0.0
  %339 = vmatpush1.msra.mxu0 0.0
  %340 = vmatprep.subr.mxu0 0.0
  %341 = vmatpush1.msra.mxu0 0.0
  %342 = vmatprep.subr.mxu0 0.0
  %343 = vmatpush1.msra.mxu0 0.0
  %344 = vmatprep.subr.mxu0 0.0
  %345 = vmatpush1.msra.mxu0 0.0
  %346 = vmatprep.subr.mxu0 0.0
  %347 = vmatpush1.msra.mxu0 0.0
  %348 = vmatprep.subr.mxu0 0.0
  %349 = vmatpush1.msra.mxu0 0.0
  %350 = vmatprep.subr.mxu0 0.0
  %351 = vmatpush1.msra.mxu0 0.0
  %352 = vmatprep.subr.mxu0 0.0
  %353 = vmatpush1.msra.mxu0 0.0
  %354 = vmatprep.subr.mxu0 0.0
  %355 = vmatpush1.msra.mxu0 0.0
  %356 = vmatprep.subr.mxu0 0.0
  %357 = vmatpush1.msra.mxu0 0.0
  %358 = vmatprep.subr.mxu0 0.0
  %359 = vmatpush1.msra.mxu0 0.0
  %360 = vmatprep.subr.mxu0 0.0
  %361 = vmatpush1.msra.mxu0 0.0
  %362 = vmatprep.subr.mxu0 0.0
  %363 = vmatpush1.msra.mxu0 0.0
  %364 = vmatprep.subr.mxu0 0.0
  %365 = vmatpush1.msra.mxu0 0.0
  %366 = vmatprep.subr.mxu0 0.0
  %367 = vmatpush1.msra.mxu0 0.0
  %368 = vmatprep.subr.mxu0 0.0
  %369 = vmatpush1.msra.mxu0 0.0
  %370 = vmatprep.subr.mxu0 0.0
  %371 = vmatpush1.msra.mxu0 0.0
  %372 = vmatprep.subr.mxu0 0.0
  %373 = vmatpush1.msra.mxu0 0.0
  %374 = vmatprep.subr.mxu0 0.0
  %375 = vmatpush1.msra.mxu0 0.0
  %376 = vmatprep.subr.mxu0 0.0
  %377 = vmatpush1.msra.mxu0 0.0
  %378 = vmatprep.subr.mxu0 0.0
  %379 = vmatpush1.msra.mxu0 0.0
  %380 = vmatprep.mubr.f32.mxu0 0.0
  %381 = vmatmul.mubr.f32.gmra.mrb[0].mxu0 %v314
  %v382 = vpop.f32.mrb[0].mxu0
  %v383 = vadd.f32 0.0, %v382
  %v384 = vpop.f32.mrb[0].mxu0
  %385 = vdwg.mxu0
  %v386 = vlaneseq
  %v387 = vshrl.u32 %v386, 7
  %v388 = vsub.s32 0, %v387
  %v389 = vrot.slane %v383, %v388
  %v390 = vsub.f32 %v156, %v389
  %v391 = vsub.f32 %v159, %v389
  %v392 = vsub.f32 %v164, %v389
  %v393 = vsub.f32 %v210, %v389
  %v394 = vsub.f32 %v213, %v389
  %v395 = vsub.f32 %v218, %v389
  %v396 = vmul.f32 %v390, %v390
  %v397 = vmul.f32 %v391, %v391
  %v398 = vmul.f32 %v392, %v392
  %v399 = vmul.f32 %v393, %v393
  %v400 = vmul.f32 %v394, %v394
  %v401 = vmul.f32 %v395, %v395
  %v402 = vadd.f32 %v396, %v399
  %v403 = vadd.f32 %v397, %v400
  %v404 = vsel %vm227, %v398, 0.0
  %v405 = vsel %vm227, %v401, 0.0
  %v406 = vadd.f32 %v404, %v405
  %v407 = vadd.f32 %v402, %v403
  %v408 = vsel %vm227, %v406, 0.0
  %v409 = vadd.f32 %v407, %v408
  %v410 = vrot.slane %v409, 4
  %v411 = vadd.f32 %v409, %v410
  %v412 = vrot.slane %v411, 2
  %v413 = vadd.f32 %v411, %v412
  %v414 = vrot.slane %v413, 1
  %v415 = vadd.f32 %v413, %v414
  %416 = vmatprep.subr.mxu0 0.0
  %417 = vmatpush1.msra.mxu0 %v57
  %418 = vmatprep.subr.mxu0 0.0
  %419 = vmatpush1.msra.mxu0 %v58
  %420 = vmatprep.subr.mxu0 0.0
  %421 = vmatpush1.msra.mxu0 %v59
  %422 = vmatprep.subr.mxu0 0.0
  %423 = vmatpush1.msra.mxu0 %v60
  %424 = vmatprep.subr.mxu0 0.0
  %425 = vmatpush1.msra.mxu0 %v61
  %426 = vmatprep.subr.mxu0 0.0
  %427 = vmatpush1.msra.mxu0 %v62
  %428 = vmatprep.subr.mxu0 0.0
  %429 = vmatpush1.msra.mxu0 %v63
  %430 = vmatprep.subr.mxu0 0.0
  %431 = vmatpush1.msra.mxu0 %v64
  %432 = vmatprep.subr.mxu0 0.0
  %433 = vmatpush1.msra.mxu0 %v65
  %434 = vmatprep.subr.mxu0 0.0
  %435 = vmatpush1.msra.mxu0 %v66
  %436 = vmatprep.subr.mxu0 0.0
  %437 = vmatpush1.msra.mxu0 %v67
  %438 = vmatprep.subr.mxu0 0.0
  %439 = vmatpush1.msra.mxu0 %v68
  %440 = vmatprep.subr.mxu0 0.0
  %441 = vmatpush1.msra.mxu0 %v69
  %442 = vmatprep.subr.mxu0 0.0
  %443 = vmatpush1.msra.mxu0 %v70
  %444 = vmatprep.subr.mxu0 0.0
  %445 = vmatpush1.msra.mxu0 %v71
  %446 = vmatprep.subr.mxu0 0.0
  %447 = vmatpush1.msra.mxu0 %v72
  %448 = vmatprep.subr.mxu0 0.0
  %449 = vmatpush1.msra.mxu0 0.0
  %450 = vmatprep.subr.mxu0 0.0
  %451 = vmatpush1.msra.mxu0 0.0
  %452 = vmatprep.subr.mxu0 0.0
  %453 = vmatpush1.msra.mxu0 0.0
  %454 = vmatprep.subr.mxu0 0.0
  %455 = vmatpush1.msra.mxu0 0.0
  %456 = vmatprep.subr.mxu0 0.0
  %457 = vmatpush1.msra.mxu0 0.0
  %458 = vmatprep.subr.mxu0 0.0
  %459 = vmatpush1.msra.mxu0 0.0
  %460 = vmatprep.subr.mxu0 0.0
  %461 = vmatpush1.msra.mxu0 0.0
  %462 = vmatprep.subr.mxu0 0.0
  %463 = vmatpush1.msra.mxu0 0.0
  %464 = vmatprep.subr.mxu0 0.0
  %465 = vmatpush1.msra.mxu0 0.0
  %466 = vmatprep.subr.mxu0 0.0
  %467 = vmatpush1.msra.mxu0 0.0
  %468 = vmatprep.subr.mxu0 0.0
  %469 = vmatpush1.msra.mxu0 0.0
  %470 = vmatprep.subr.mxu0 0.0
  %471 = vmatpush1.msra.mxu0 0.0
  %472 = vmatprep.subr.mxu0 0.0
  %473 = vmatpush1.msra.mxu0 0.0
  %474 = vmatprep.subr.mxu0 0.0
  %475 = vmatpush1.msra.mxu0 0.0
  %476 = vmatprep.subr.mxu0 0.0
  %477 = vmatpush1.msra.mxu0 0.0
  %478 = vmatprep.subr.mxu0 0.0
  %479 = vmatpush1.msra.mxu0 0.0
  %480 = vmatprep.mubr.f32.mxu0 0.0
  %481 = vmatmul.mubr.f32.gmra.mrb[0].mxu0 %v415
  %v482 = vpop.f32.mrb[0].mxu0
  %v483 = vadd.f32 0.0, %v482
  %v484 = vpop.f32.mrb[0].mxu0
  %485 = vdwg.mxu0
  %v486 = vmul.f32 %v483, %v310
  %v487 = vadd.f32 %v486, 1e-05
  %v488 = vrsqrt.pop %v487
  %v489 = vmul.f32 %v223, %v488
  %v490 = vmul.f32 %v311, %v489
  %v491 = vsub.f32 %v224, %v490
  %v493 = vsel %vm312, %v489, 0
  %495 = vmatprep.subr.mxu0 0.0
  %496 = vmatpush1.msra.mxu0 %v73
  %497 = vmatprep.subr.mxu0 0.0
  %498 = vmatpush1.msra.mxu0 0.0
  %499 = vmatprep.subr.mxu0 0.0
  %500 = vmatpush1.msra.mxu0 0.0
  %501 = vmatprep.subr.mxu0 0.0
  %502 = vmatpush1.msra.mxu0 0.0
  %503 = vmatprep.subr.mxu0 0.0
  %504 = vmatpush1.msra.mxu0 0.0
  %505 = vmatprep.subr.mxu0 0.0
  %506 = vmatpush1.msra.mxu0 0.0
  %507 = vmatprep.subr.mxu0 0.0
  %508 = vmatpush1.msra.mxu0 0.0
  %509 = vmatprep.subr.mxu0 0.0
  %510 = vmatpush1.msra.mxu0 0.0
  %511 = vmatprep.subr.mxu0 0.0
  %512 = vmatpush1.msra.mxu0 0.0
  %513 = vmatprep.subr.mxu0 0.0
  %514 = vmatpush1.msra.mxu0 0.0
  %515 = vmatprep.subr.mxu0 0.0
  %516 = vmatpush1.msra.mxu0 0.0
  %517 = vmatprep.subr.mxu0 0.0
  %518 = vmatpush1.msra.mxu0 0.0
  %519 = vmatprep.subr.mxu0 0.0
  %520 = vmatpush1.msra.mxu0 0.0
  %521 = vmatprep.subr.mxu0 0.0
  %522 = vmatpush1.msra.mxu0 0.0
  %523 = vmatprep.subr.mxu0 0.0
  %524 = vmatpush1.msra.mxu0 0.0
  %525 = vmatprep.subr.mxu0 0.0
  %526 = vmatpush1.msra.mxu0 0.0
  %527 = vmatprep.subr.mxu0 0.0
  %528 = vmatpush1.msra.mxu0 0.0
  %529 = vmatprep.subr.mxu0 0.0
  %530 = vmatpush1.msra.mxu0 0.0
  %531 = vmatprep.subr.mxu0 0.0
  %532 = vmatpush1.msra.mxu0 0.0
  %533 = vmatprep.subr.mxu0 0.0
  %534 = vmatpush1.msra.mxu0 0.0
  %535 = vmatprep.subr.mxu0 0.0
  %536 = vmatpush1.msra.mxu0 0.0
  %537 = vmatprep.subr.mxu0 0.0
  %538 = vmatpush1.msra.mxu0 0.0
  %539 = vmatprep.subr.mxu0 0.0
  %540 = vmatpush1.msra.mxu0 0.0
  %541 = vmatprep.subr.mxu0 0.0
  %542 = vmatpush1.msra.mxu0 0.0
  %543 = vmatprep.subr.mxu0 0.0
  %544 = vmatpush1.msra.mxu0 0.0
  %545 = vmatprep.subr.mxu0 0.0
  %546 = vmatpush1.msra.mxu0 0.0
  %547 = vmatprep.subr.mxu0 0.0
  %548 = vmatpush1.msra.mxu0 0.0
  %549 = vmatprep.subr.mxu0 0.0
  %550 = vmatpush1.msra.mxu0 0.0
  %551 = vmatprep.subr.mxu0 0.0
  %552 = vmatpush1.msra.mxu0 0.0
  %553 = vmatprep.subr.mxu0 0.0
  %554 = vmatpush1.msra.mxu0 0.0
  %555 = vmatprep.subr.mxu0 0.0
  %556 = vmatpush1.msra.mxu0 0.0
  %557 = vmatprep.subr.mxu0 0.0
  %558 = vmatpush1.msra.mxu0 0.0
  %559 = vmatprep.mubr.f32.mxu0 0.0
  %560 = vmatmul.mubr.f32.gmra.mrb[0].mxu0 %v493
  %v561 = vpop.f32.mrb[0].mxu0
  %v562 = vadd.f32 0.0, %v561
  %v563 = vpop.f32.mrb[0].mxu0
  %564 = vdwg.mxu0
  %v566 = vsel %vm312, %v491, 0
  %568 = vmatprep.subr.mxu0 0.0
  %569 = vmatpush1.msra.mxu0 %v73
  %570 = vmatprep.subr.mxu0 0.0
  %571 = vmatpush1.msra.mxu0 0.0
  %572 = vmatprep.subr.mxu0 0.0
  %573 = vmatpush1.msra.mxu0 0.0
  %574 = vmatprep.subr.mxu0 0.0
  %575 = vmatpush1.msra.mxu0 0.0
  %576 = vmatprep.subr.mxu0 0.0
  %577 = vmatpush1.msra.mxu0 0.0
  %578 = vmatprep.subr.mxu0 0.0
  %579 = vmatpush1.msra.mxu0 0.0
  %580 = vmatprep.subr.mxu0 0.0
  %581 = vmatpush1.msra.mxu0 0.0
  %582 = vmatprep.subr.mxu0 0.0
  %583 = vmatpush1.msra.mxu0 0.0
  %584 = vmatprep.subr.mxu0 0.0
  %585 = vmatpush1.msra.mxu0 0.0
  %586 = vmatprep.subr.mxu0 0.0
  %587 = vmatpush1.msra.mxu0 0.0
  %588 = vmatprep.subr.mxu0 0.0
  %589 = vmatpush1.msra.mxu0 0.0
  %590 = vmatprep.subr.mxu0 0.0
  %591 = vmatpush1.msra.mxu0 0.0
  %592 = vmatprep.subr.mxu0 0.0
  %593 = vmatpush1.msra.mxu0 0.0
  %594 = vmatprep.subr.mxu0 0.0
  %595 = vmatpush1.msra.mxu0 0.0
  %596 = vmatprep.subr.mxu0 0.0
  %597 = vmatpush1.msra.mxu0 0.0
  %598 = vmatprep.subr.mxu0 0.0
  %599 = vmatpush1.msra.mxu0 0.0
  %600 = vmatprep.subr.mxu0 0.0
  %601 = vmatpush1.msra.mxu0 0.0
  %602 = vmatprep.subr.mxu0 0.0
  %603 = vmatpush1.msra.mxu0 0.0
  %604 = vmatprep.subr.mxu0 0.0
  %605 = vmatpush1.msra.mxu0 0.0
  %606 = vmatprep.subr.mxu0 0.0
  %607 = vmatpush1.msra.mxu0 0.0
  %608 = vmatprep.subr.mxu0 0.0
  %609 = vmatpush1.msra.mxu0 0.0
  %610 = vmatprep.subr.mxu0 0.0
  %611 = vmatpush1.msra.mxu0 0.0
  %612 = vmatprep.subr.mxu0 0.0
  %613 = vmatpush1.msra.mxu0 0.0
  %614 = vmatprep.subr.mxu0 0.0
  %615 = vmatpush1.msra.mxu0 0.0
  %616 = vmatprep.subr.mxu0 0.0
  %617 = vmatpush1.msra.mxu0 0.0
  %618 = vmatprep.subr.mxu0 0.0
  %619 = vmatpush1.msra.mxu0 0.0
  %620 = vmatprep.subr.mxu0 0.0
  %621 = vmatpush1.msra.mxu0 0.0
  %622 = vmatprep.subr.mxu0 0.0
  %623 = vmatpush1.msra.mxu0 0.0
  %624 = vmatprep.subr.mxu0 0.0
  %625 = vmatpush1.msra.mxu0 0.0
  %626 = vmatprep.subr.mxu0 0.0
  %627 = vmatpush1.msra.mxu0 0.0
  %628 = vmatprep.subr.mxu0 0.0
  %629 = vmatpush1.msra.mxu0 0.0
  %630 = vmatprep.subr.mxu0 0.0
  %631 = vmatpush1.msra.mxu0 0.0
  %632 = vmatprep.mubr.f32.mxu0 0.0
  %633 = vmatmul.mubr.f32.gmra.mrb[0].mxu0 %v566
  %v634 = vpop.f32.mrb[0].mxu0
  %v635 = vadd.f32 0.0, %v634
  %v636 = vpop.f32.mrb[0].mxu0
  %637 = vdwg.mxu0
  %v638 = vlaneseq
  %v639 = vshrl.u32 %v638, 7
  %v640 = vsub.s32 0, %v639
  %v641 = vrot.slane %v562, %v640
  %v642 = vmul.f32 %v156, %v641
  %v643 = vmul.f32 %v159, %v641
  %v644 = vmul.f32 %v164, %v641
  %v645 = vmul.f32 %v210, %v641
  %v646 = vmul.f32 %v213, %v641
  %v647 = vmul.f32 %v218, %v641
  %v648 = vlaneseq
  %v649 = vshrl.u32 %v648, 7
  %v650 = vsub.s32 0, %v649
  %v651 = vrot.slane %v635, %v650
  %v652 = vadd.f32 %v642, %v651
  %v653 = vadd.f32 %v643, %v651
  %v654 = vadd.f32 %v644, %v651
  %v655 = vadd.f32 %v645, %v651
  %v656 = vadd.f32 %v646, %v651
  %v657 = vadd.f32 %v647, %v651
  %v658 = vmax.f32 %v652, 0.0
  %v659 = vmax.f32 %v653, 0.0
  %v660 = vmax.f32 %v654, 0.0
  %v661 = vmax.f32 %v655, 0.0
  %v662 = vmax.f32 %v656, 0.0
  %v663 = vmax.f32 %v657, 0.0
  %v664 = vmin.f32 %v658, 10.0
  %v665 = vmin.f32 %v659, 10.0
  %v666 = vmin.f32 %v660, 10.0
  %v667 = vmin.f32 %v661, 10.0
  %v668 = vmin.f32 %v662, 10.0
  %v669 = vmin.f32 %v663, 10.0
  %v670 = vmul.f32 %v664, 1.5
  %v671 = vmul.f32 %v665, 1.5
  %v672 = vmul.f32 %v666, 1.5
  %v673 = vmul.f32 %v667, 1.5
  %v674 = vmul.f32 %v668, 1.5
  %v675 = vmul.f32 %v669, 1.5
  %v676 = vround.ne.pseudo %v670
  %v677 = vround.ne.pseudo %v671
  %v678 = vround.ne.pseudo %v672
  %v679 = vround.ne.pseudo %v673
  %v680 = vround.ne.pseudo %v674
  %v681 = vround.ne.pseudo %v675
  %v682 = vrcp.pop 1.5
  %v683 = vmul.f32 %v676, %v682
  %v684 = vmul.f32 %v677, %v682
  %v685 = vmul.f32 %v678, %v682
  %v686 = vmul.f32 %v679, %v682
  %v687 = vmul.f32 %v680, %v682
  %v688 = vmul.f32 %v681, %v682
  %v689 = vld [vmem:[%s4] sm:$0x7]
  %690 = vst [vmem:[#allocation2] sm:$0x1] 0.0
  %691 = vst [vmem:[#allocation2 + $0x18] sm:$0x1] 0.0
  %692 = vst [vmem:[#allocation2 + $0x15] sm:$0x1] 0.0
  %693 = vst [vmem:[#allocation2 + $0x2d] sm:$0x1] 0.0
  %694 = vst [vmem:[#allocation2 + $0x1] sm:$0xff] %v683
  %695 = vst [vmem:[#allocation2 + $0x9] sm:$0xff] %v684
  %696 = vst [vmem:[#allocation2 + $0x11] sm:$0xf] %v685
  %697 = vst [vmem:[#allocation2 + $0x19] sm:$0xff] %v686
  %698 = vst [vmem:[#allocation2 + $0x21] sm:$0xff] %v687
  %699 = vst [vmem:[#allocation2 + $0x29] sm:$0xf] %v688
  %v700 = vld [vmem:[#allocation2] sm:$0xff]
  %v701 = vld [vmem:[#allocation2 + $0x8] sm:$0xff]
  %v702 = vld [vmem:[#allocation2 + $0x10] sm:$0xf]
  %v703 = vld [vmem:[#allocation2 + $0x18] sm:$0xff]
  %v704 = vld [vmem:[#allocation2 + $0x20] sm:$0xff]
  %v705 = vld [vmem:[#allocation2 + $0x28] sm:$0xf]
  %v706 = vlaneseq
  %v707 = vshrl.u32 %v706, 7
  %v708 = vsub.s32 0, %v707
  %v709 = vrot.slane %v689, %v708
  %v710 = vmul.f32 %v709, %v700
  %v711 = vmul.f32 %v709, %v701
  %v712 = vmul.f32 %v709, %v702
  %v713 = vmul.f32 %v709, %v703
  %v714 = vmul.f32 %v709, %v704
  %v715 = vmul.f32 %v709, %v705
  %v716 = vld [vmem:[#allocation2 + $0x1] sm:$0xff]
  %v717 = vld [vmem:[#allocation2 + $0x9] sm:$0xff]
  %v718 = vld [vmem:[#allocation2 + $0x11] sm:$0xf]
  %v719 = vld [vmem:[#allocation2 + $0x19] sm:$0xff]
  %v720 = vld [vmem:[#allocation2 + $0x21] sm:$0xff]
  %v721 = vld [vmem:[#allocation2 + $0x29] sm:$0xf]
  %v722 = vlaneseq
  %v723 = vshrl.u32 %v722, 7
  %v724 = vsub.s32 1, %v723
  %v725 = vrot.slane %v689, %v724
  %v726 = vmul.f32 %v725, %v716
  %v727 = vmul.f32 %v725, %v717
  %v728 = vmul.f32 %v725, %v718
  %v729 = vmul.f32 %v725, %v719
  %v730 = vmul.f32 %v725, %v720
  %v731 = vmul.f32 %v725, %v721
  %v732 = vadd.f32 %v710, %v726
  %v733 = vadd.f32 %v711, %v727
  %v734 = vadd.f32 %v712, %v728
  %v735 = vadd.f32 %v713, %v729
  %v736 = vadd.f32 %v714, %v730
  %v737 = vadd.f32 %v715, %v731
  %v738 = vld [vmem:[#allocation2 + $0x2] sm:$0xff]
  %v739 = vld [vmem:[#allocation2 + $0xa] sm:$0xff]
  %v740 = vld [vmem:[#allocation2 + $0x12] sm:$0xf]
  %v741 = vld [vmem:[#allocation2 + $0x1a] sm:$0xff]
  %v742 = vld [vmem:[#allocation2 + $0x22] sm:$0xff]
  %v743 = vld [vmem:[#allocation2 + $0x2a] sm:$0xf]
  %v744 = vlaneseq
  %v745 = vshrl.u32 %v744, 7
  %v746 = vsub.s32 2, %v745
  %v747 = vrot.slane %v689, %v746
  %v748 = vmul.f32 %v747, %v738
  %v749 = vmul.f32 %v747, %v739
  %v750 = vmul.f32 %v747, %v740
  %v751 = vmul.f32 %v747, %v741
  %v752 = vmul.f32 %v747, %v742
  %v753 = vmul.f32 %v747, %v743
  %v754 = vadd.f32 %v732, %v748
  %v755 = vadd.f32 %v733, %v749
  %v756 = vadd.f32 %v734, %v750
  %v757 = vadd.f32 %v735, %v751
  %v758 = vadd.f32 %v736, %v752
  %v759 = vadd.f32 %v737, %v753
  %v760 = vld [vmem:[%s5] sm:$0x1f]
  %v761 = vld [vmem:[%s6] sm:$0x1f]
  %v762 = vadd.f32 %v754, %v757
  %v763 = vadd.f32 %v755, %v758
  %v764 = vsel %vm227, %v756, 0.0
  %v765 = vsel %vm227, %v759, 0.0
  %v766 = vadd.f32 %v764, %v765
  %vm767 = vcmask 162816
  %v769 = vsel %vm767, %v74, 0
  %v772 = vsel %vm227, %v766, 0
  %774 = vmatprep.subr.mxu0 0.0
  %775 = vmatpush1.msra.mxu0 %v762
  %776 = vmatprep.subr.mxu0 0.0
  %777 = vmatpush1.msra.mxu0 %v763
  %778 = vmatprep.subr.mxu0 0.0
  %779 = vmatpush1.msra.mxu0 %v772
  %780 = vmatprep.subr.mxu0 0.0
  %781 = vmatpush1.msra.mxu0 0.0
  %782 = vmatprep.subr.mxu0 0.0
  %783 = vmatpush1.msra.mxu0 0.0
  %784 = vmatprep.subr.mxu0 0.0
  %785 = vmatpush1.msra.mxu0 0.0
  %786 = vmatprep.subr.mxu0 0.0
  %787 = vmatpush1.msra.mxu0 0.0
  %788 = vmatprep.subr.mxu0 0.0
  %789 = vmatpush1.msra.mxu0 0.0
  %790 = vmatprep.subr.mxu0 0.0
  %791 = vmatpush1.msra.mxu0 0.0
  %792 = vmatprep.subr.mxu0 0.0
  %793 = vmatpush1.msra.mxu0 0.0
  %794 = vmatprep.subr.mxu0 0.0
  %795 = vmatpush1.msra.mxu0 0.0
  %796 = vmatprep.subr.mxu0 0.0
  %797 = vmatpush1.msra.mxu0 0.0
  %798 = vmatprep.subr.mxu0 0.0
  %799 = vmatpush1.msra.mxu0 0.0
  %800 = vmatprep.subr.mxu0 0.0
  %801 = vmatpush1.msra.mxu0 0.0
  %802 = vmatprep.subr.mxu0 0.0
  %803 = vmatpush1.msra.mxu0 0.0
  %804 = vmatprep.subr.mxu0 0.0
  %805 = vmatpush1.msra.mxu0 0.0
  %806 = vmatprep.subr.mxu0 0.0
  %807 = vmatpush1.msra.mxu0 0.0
  %808 = vmatprep.subr.mxu0 0.0
  %809 = vmatpush1.msra.mxu0 0.0
  %810 = vmatprep.subr.mxu0 0.0
  %811 = vmatpush1.msra.mxu0 0.0
  %812 = vmatprep.subr.mxu0 0.0
  %813 = vmatpush1.msra.mxu0 0.0
  %814 = vmatprep.subr.mxu0 0.0
  %815 = vmatpush1.msra.mxu0 0.0
  %816 = vmatprep.subr.mxu0 0.0
  %817 = vmatpush1.msra.mxu0 0.0
  %818 = vmatprep.subr.mxu0 0.0
  %819 = vmatpush1.msra.mxu0 0.0
  %820 = vmatprep.subr.mxu0 0.0
  %821 = vmatpush1.msra.mxu0 0.0
  %822 = vmatprep.subr.mxu0 0.0
  %823 = vmatpush1.msra.mxu0 0.0
  %824 = vmatprep.subr.mxu0 0.0
  %825 = vmatpush1.msra.mxu0 0.0
  %826 = vmatprep.subr.mxu0 0.0
  %827 = vmatpush1.msra.mxu0 0.0
  %828 = vmatprep.subr.mxu0 0.0
  %829 = vmatpush1.msra.mxu0 0.0
  %830 = vmatprep.subr.mxu0 0.0
  %831 = vmatpush1.msra.mxu0 0.0
  %832 = vmatprep.subr.mxu0 0.0
  %833 = vmatpush1.msra.mxu0 0.0
  %834 = vmatprep.subr.mxu0 0.0
  %835 = vmatpush1.msra.mxu0 0.0
  %836 = vmatprep.subr.mxu0 0.0
  %837 = vmatpush1.msra.mxu0 0.0
  %838 = vmatprep.mubr.f32.mxu0 0.0
  %839 = vmatmul.mubr.f32.gmra.mrb[0].mxu0 %v769
  %v840 = vpop.f32.mrb[0].mxu0
  %v841 = vadd.f32 0.0, %v840
  %v842 = vpop.f32.mrb[0].mxu0
  %843 = vdwg.mxu0
  %844 = vmatprep.subr.mxu0 0.0
  %845 = vmatpush1.msra.mxu0 %v57
  %846 = vmatprep.subr.mxu0 0.0
  %847 = vmatpush1.msra.mxu0 %v58
  %848 = vmatprep.subr.mxu0 0.0
  %849 = vmatpush1.msra.mxu0 %v59
  %850 = vmatprep.subr.mxu0 0.0
  %851 = vmatpush1.msra.mxu0 %v60
  %852 = vmatprep.subr.mxu0 0.0
  %853 = vmatpush1.msra.mxu0 %v61
  %854 = vmatprep.subr.mxu0 0.0
  %855 = vmatpush1.msra.mxu0 %v62
  %856 = vmatprep.subr.mxu0 0.0
  %857 = vmatpush1.msra.mxu0 %v63
  %858 = vmatprep.subr.mxu0 0.0
  %859 = vmatpush1.msra.mxu0 %v64
  %860 = vmatprep.subr.mxu0 0.0
  %861 = vmatpush1.msra.mxu0 %v65
  %862 = vmatprep.subr.mxu0 0.0
  %863 = vmatpush1.msra.mxu0 %v66
  %864 = vmatprep.subr.mxu0 0.0
  %865 = vmatpush1.msra.mxu0 %v67
  %866 = vmatprep.subr.mxu0 0.0
  %867 = vmatpush1.msra.mxu0 %v68
  %868 = vmatprep.subr.mxu0 0.0
  %869 = vmatpush1.msra.mxu0 %v69
  %870 = vmatprep.subr.mxu0 0.0
  %871 = vmatpush1.msra.mxu0 %v70
  %872 = vmatprep.subr.mxu0 0.0
  %873 = vmatpush1.msra.mxu0 %v71
  %874 = vmatprep.subr.mxu0 0.0
  %875 = vmatpush1.msra.mxu0 %v72
  %876 = vmatprep.subr.mxu0 0.0
  %877 = vmatpush1.msra.mxu0 0.0
  %878 = vmatprep.subr.mxu0 0.0
  %879 = vmatpush1.msra.mxu0 0.0
  %880 = vmatprep.subr.mxu0 0.0
  %881 = vmatpush1.msra.mxu0 0.0
  %882 = vmatprep.subr.mxu0 0.0
  %883 = vmatpush1.msra.mxu0 0.0
  %884 = vmatprep.subr.mxu0 0.0
  %885 = vmatpush1.msra.mxu0 0.0
  %886 = vmatprep.subr.mxu0 0.0
  %887 = vmatpush1.msra.mxu0 0.0
  %888 = vmatprep.subr.mxu0 0.0
  %889 = vmatpush1.msra.mxu0 0.0
  %890 = vmatprep.subr.mxu0 0.0
  %891 = vmatpush1.msra.mxu0 0.0
  %892 = vmatprep.subr.mxu0 0.0
  %893 = vmatpush1.msra.mxu0 0.0
  %894 = vmatprep.subr.mxu0 0.0
  %895 = vmatpush1.msra.mxu0 0.0
  %896 = vmatprep.subr.mxu0 0.0
  %897 = vmatpush1.msra.mxu0 0.0
  %898 = vmatprep.subr.mxu0 0.0
  %899 = vmatpush1.msra.mxu0 0.0
  %900 = vmatprep.subr.mxu0 0.0
  %901 = vmatpush1.msra.mxu0 0.0
  %902 = vmatprep.subr.mxu0 0.0
  %903 = vmatpush1.msra.mxu0 0.0
  %904 = vmatprep.subr.mxu0 0.0
  %905 = vmatpush1.msra.mxu0 0.0
  %906 = vmatprep.subr.mxu0 0.0
  %907 = vmatpush1.msra.mxu0 0.0
  %908 = vmatprep.mubr.f32.mxu0 0.0
  %909 = vmatmul.mubr.f32.gmra.mrb[0].mxu0 %v841
  %v910 = vpop.f32.mrb[0].mxu0
  %v911 = vadd.f32 0.0, %v910
  %v912 = vpop.f32.mrb[0].mxu0
  %913 = vdwg.mxu0
  %v914 = vrcp.pop 128.0
  %v915 = vmul.f32 %v911, %v914
  %v917 = vsel %vm312, %v915, 0
  %919 = vmatprep.subr.mxu0 0.0
  %920 = vmatpush1.msra.mxu0 %v73
  %921 = vmatprep.subr.mxu0 0.0
  %922 = vmatpush1.msra.mxu0 0.0
  %923 = vmatprep.subr.mxu0 0.0
  %924 = vmatpush1.msra.mxu0 0.0
  %925 = vmatprep.subr.mxu0 0.0
  %926 = vmatpush1.msra.mxu0 0.0
  %927 = vmatprep.subr.mxu0 0.0
  %928 = vmatpush1.msra.mxu0 0.0
  %929 = vmatprep.subr.mxu0 0.0
  %930 = vmatpush1.msra.mxu0 0.0
  %931 = vmatprep.subr.mxu0 0.0
  %932 = vmatpush1.msra.mxu0 0.0
  %933 = vmatprep.subr.mxu0 0.0
  %934 = vmatpush1.msra.mxu0 0.0
  %935 = vmatprep.subr.mxu0 0.0
  %936 = vmatpush1.msra.mxu0 0.0
  %937 = vmatprep.subr.mxu0 0.0
  %938 = vmatpush1.msra.mxu0 0.0
  %939 = vmatprep.subr.mxu0 0.0
  %940 = vmatpush1.msra.mxu0 0.0
  %941 = vmatprep.subr.mxu0 0.0
  %942 = vmatpush1.msra.mxu0 0.0
  %943 = vmatprep.subr.mxu0 0.0
  %944 = vmatpush1.msra.mxu0 0.0
  %945 = vmatprep.subr.mxu0 0.0
  %946 = vmatpush1.msra.mxu0 0.0
  %947 = vmatprep.subr.mxu0 0.0
  %948 = vmatpush1.msra.mxu0 0.0
  %949 = vmatprep.subr.mxu0 0.0
  %950 = vmatpush1.msra.mxu0 0.0
  %951 = vmatprep.subr.mxu0 0.0
  %952 = vmatpush1.msra.mxu0 0.0
  %953 = vmatprep.subr.mxu0 0.0
  %954 = vmatpush1.msra.mxu0 0.0
  %955 = vmatprep.subr.mxu0 0.0
  %956 = vmatpush1.msra.mxu0 0.0
  %957 = vmatprep.subr.mxu0 0.0
  %958 = vmatpush1.msra.mxu0 0.0
  %959 = vmatprep.subr.mxu0 0.0
  %960 = vmatpush1.msra.mxu0 0.0
  %961 = vmatprep.subr.mxu0 0.0
  %962 = vmatpush1.msra.mxu0 0.0
  %963 = vmatprep.subr.mxu0 0.0
  %964 = vmatpush1.msra.mxu0 0.0
  %965 = vmatprep.subr.mxu0 0.0
  %966 = vmatpush1.msra.mxu0 0.0
  %967 = vmatprep.subr.mxu0 0.0
  %968 = vmatpush1.msra.mxu0 0.0
  %969 = vmatprep.subr.mxu0 0.0
  %970 = vmatpush1.msra.mxu0 0.0
  %971 = vmatprep.subr.mxu0 0.0
  %972 = vmatpush1.msra.mxu0 0.0
  %973 = vmatprep.subr.mxu0 0.0
  %974 = vmatpush1.msra.mxu0 0.0
  %975 = vmatprep.subr.mxu0 0.0
  %976 = vmatpush1.msra.mxu0 0.0
  %977 = vmatprep.subr.mxu0 0.0
  %978 = vmatpush1.msra.mxu0 0.0
  %979 = vmatprep.subr.mxu0 0.0
  %980 = vmatpush1.msra.mxu0 0.0
  %981 = vmatprep.subr.mxu0 0.0
  %982 = vmatpush1.msra.mxu0 0.0
  %983 = vmatprep.mubr.f32.mxu0 0.0
  %984 = vmatmul.mubr.f32.gmra.mrb[0].mxu0 %v917
  %v985 = vpop.f32.mrb[0].mxu0
  %v986 = vadd.f32 0.0, %v985
  %v987 = vpop.f32.mrb[0].mxu0
  %988 = vdwg.mxu0
  %vm989 = vcmask 39936
  %v991 = vsel %vm989, %v75, 0
  %v994 = vsel %vm989, %v76, 0
  %v997 = vsel %vm989, %v77, 0
  %vm999 = vcmask 1044480
  %v1001 = vsel %vm999, %v986, 0
  %1003 = vmatprep.subr.mxu0 0.0
  %1004 = vmatpush1.msra.mxu0 %v1001
  %1005 = vmatprep.subr.mxu0 0.0
  %1006 = vmatpush1.msra.mxu0 0.0
  %1007 = vmatprep.subr.mxu0 0.0
  %1008 = vmatpush1.msra.mxu0 0.0
  %1009 = vmatprep.subr.mxu0 0.0
  %1010 = vmatpush1.msra.mxu0 0.0
  %1011 = vmatprep.subr.mxu0 0.0
  %1012 = vmatpush1.msra.mxu0 0.0
  %1013 = vmatprep.subr.mxu0 0.0
  %1014 = vmatpush1.msra.mxu0 0.0
  %1015 = vmatprep.subr.mxu0 0.0
  %1016 = vmatpush1.msra.mxu0 0.0
  %1017 = vmatprep.subr.mxu0 0.0
  %1018 = vmatpush1.msra.mxu0 0.0
  %1019 = vmatprep.subr.mxu0 0.0
  %1020 = vmatpush1.msra.mxu0 0.0
  %1021 = vmatprep.subr.mxu0 0.0
  %1022 = vmatpush1.msra.mxu0 0.0
  %1023 = vmatprep.subr.mxu0 0.0
  %1024 = vmatpush1.msra.mxu0 0.0
  %1025 = vmatprep.subr.mxu0 0.0
  %1026 = vmatpush1.msra.mxu0 0.0
  %1027 = vmatprep.subr.mxu0 0.0
  %1028 = vmatpush1.msra.mxu0 0.0
  %1029 = vmatprep.subr.mxu0 0.0
  %1030 = vmatpush1.msra.mxu0 0.0
  %1031 = vmatprep.subr.mxu0 0.0
  %1032 = vmatpush1.msra.mxu0 0.0
  %1033 = vmatprep.subr.mxu0 0.0
  %1034 = vmatpush1.msra.mxu0 0.0
  %1035 = vmatprep.subr.mxu0 0.0
  %1036 = vmatpush1.msra.mxu0 0.0
  %1037 = vmatprep.subr.mxu0 0.0
  %1038 = vmatpush1.msra.mxu0 0.0
  %1039 = vmatprep.subr.mxu0 0.0
  %1040 = vmatpush1.msra.mxu0 0.0
  %1041 = vmatprep.subr.mxu0 0.0
  %1042 = vmatpush1.msra.mxu0 0.0
  %1043 = vmatprep.subr.mxu0 0.0
  %1044 = vmatpush1.msra.mxu0 0.0
  %1045 = vmatprep.subr.mxu0 0.0
  %1046 = vmatpush1.msra.mxu0 0.0
  %1047 = vmatprep.subr.mxu0 0.0
  %1048 = vmatpush1.msra.mxu0 0.0
  %1049 = vmatprep.subr.mxu0 0.0
  %1050 = vmatpush1.msra.mxu0 0.0
  %1051 = vmatprep.subr.mxu0 0.0
  %1052 = vmatpush1.msra.mxu0 0.0
  %1053 = vmatprep.subr.mxu0 0.0
  %1054 = vmatpush1.msra.mxu0 0.0
  %1055 = vmatprep.subr.mxu0 0.0
  %1056 = vmatpush1.msra.mxu0 0.0
  %1057 = vmatprep.subr.mxu0 0.0
  %1058 = vmatpush1.msra.mxu0 0.0
  %1059 = vmatprep.subr.mxu0 0.0
  %1060 = vmatpush1.msra.mxu0 0.0
  %1061 = vmatprep.subr.mxu0 0.0
  %1062 = vmatpush1.msra.mxu0 0.0
  %1063 = vmatprep.subr.mxu0 0.0
  %1064 = vmatpush1.msra.mxu0 0.0
  %1065 = vmatprep.subr.mxu0 0.0
  %1066 = vmatpush1.msra.mxu0 0.0
  %1067 = vmatprep.mubr.f32.mxu0 0.0
  %1068 = vmatmul.mubr.f32.gmra.mrb[0].mxu0 %v991
  %v1069 = vpop.f32.mrb[0].mxu0
  %v1070 = vadd.f32 0.0, %v1069
  %v1071 = vpop.f32.mrb[0].mxu0
  %1072 = vmatprep.mubr.f32.mxu0 0.0
  %1073 = vmatmul.mubr.f32.gmra.mrb[0].mxu0 %v994
  %v1074 = vpop.f32.mrb[0].mxu0
  %v1075 = vadd.f32 0.0, %v1074
  %v1076 = vpop.f32.mrb[0].mxu0
  %1077 = vmatprep.mubr.f32.mxu0 0.0
  %1078 = vmatmul.mubr.f32.gmra.mrb[0].mxu0 %v997
  %v1079 = vpop.f32.mrb[0].mxu0
  %v1080 = vadd.f32 0.0, %v1079
  %v1081 = vpop.f32.mrb[0].mxu0
  %1082 = vdwg.mxu0
  %v1083 = vsub.f32 %v754, %v1070
  %v1084 = vsub.f32 %v755, %v1075
  %v1085 = vsub.f32 %v756, %v1080
  %v1086 = vsub.f32 %v757, %v1070
  %v1087 = vsub.f32 %v758, %v1075
  %v1088 = vsub.f32 %v759, %v1080
  %v1089 = vmul.f32 %v1083, %v1083
  %v1090 = vmul.f32 %v1084, %v1084
  %v1091 = vmul.f32 %v1085, %v1085
  %v1092 = vmul.f32 %v1086, %v1086
  %v1093 = vmul.f32 %v1087, %v1087
  %v1094 = vmul.f32 %v1088, %v1088
  %v1095 = vadd.f32 %v1089, %v1092
  %v1096 = vadd.f32 %v1090, %v1093
  %v1097 = vsel %vm227, %v1091, 0.0
  %v1098 = vsel %vm227, %v1094, 0.0
  %v1099 = vadd.f32 %v1097, %v1098
  %v1101 = vsel %vm227, %v1099, 0
  %1103 = vmatprep.subr.mxu0 0.0
  %1104 = vmatpush1.msra.mxu0 %v1095
  %1105 = vmatprep.subr.mxu0 0.0
  %1106 = vmatpush1.msra.mxu0 %v1096
  %1107 = vmatprep.subr.mxu0 0.0
  %1108 = vmatpush1.msra.mxu0 %v1101
  %1109 = vmatprep.subr.mxu0 0.0
  %1110 = vmatpush1.msra.mxu0 0.0
  %1111 = vmatprep.subr.mxu0 0.0
  %1112 = vmatpush1.msra.mxu0 0.0
  %1113 = vmatprep.subr.mxu0 0.0
  %1114 = vmatpush1.msra.mxu0 0.0
  %1115 = vmatprep.subr.mxu0 0.0
  %1116 = vmatpush1.msra.mxu0 0.0
  %1117 = vmatprep.subr.mxu0 0.0
  %1118 = vmatpush1.msra.mxu0 0.0
  %1119 = vmatprep.subr.mxu0 0.0
  %1120 = vmatpush1.msra.mxu0 0.0
  %1121 = vmatprep.subr.mxu0 0.0
  %1122 = vmatpush1.msra.mxu0 0.0
  %1123 = vmatprep.subr.mxu0 0.0
  %1124 = vmatpush1.msra.mxu0 0.0
  %1125 = vmatprep.subr.mxu0 0.0
  %1126 = vmatpush1.msra.mxu0 0.0
  %1127 = vmatprep.subr.mxu0 0.0
  %1128 = vmatpush1.msra.mxu0 0.0
  %1129 = vmatprep.subr.mxu0 0.0
  %1130 = vmatpush1.msra.mxu0 0.0
  %1131 = vmatprep.subr.mxu0 0.0
  %1132 = vmatpush1.msra.mxu0 0.0
  %1133 = vmatprep.subr.mxu0 0.0
  %1134 = vmatpush1.msra.mxu0 0.0
  %1135 = vmatprep.subr.mxu0 0.0
  %1136 = vmatpush1.msra.mxu0 0.0
  %1137 = vmatprep.subr.mxu0 0.0
  %1138 = vmatpush1.msra.mxu0 0.0
  %1139 = vmatprep.subr.mxu0 0.0
  %1140 = vmatpush1.msra.mxu0 0.0
  %1141 = vmatprep.subr.mxu0 0.0
  %1142 = vmatpush1.msra.mxu0 0.0
  %1143 = vmatprep.subr.mxu0 0.0
  %1144 = vmatpush1.msra.mxu0 0.0
  %1145 = vmatprep.subr.mxu0 0.0
  %1146 = vmatpush1.msra.mxu0 0.0
  %1147 = vmatprep.subr.mxu0 0.0
  %1148 = vmatpush1.msra.mxu0 0.0
  %1149 = vmatprep.subr.mxu0 0.0
  %1150 = vmatpush1.msra.mxu0 0.0
  %1151 = vmatprep.subr.mxu0 0.0
  %1152 = vmatpush1.msra.mxu0 0.0
  %1153 = vmatprep.subr.mxu0 0.0
  %1154 = vmatpush1.msra.mxu0 0.0
  %1155 = vmatprep.subr.mxu0 0.0
  %1156 = vmatpush1.msra.mxu0 0.0
  %1157 = vmatprep.subr.mxu0 0.0
  %1158 = vmatpush1.msra.mxu0 0.0
  %1159 = vmatprep.subr.mxu0 0.0
  %1160 = vmatpush1.msra.mxu0 0.0
  %1161 = vmatprep.subr.mxu0 0.0
  %1162 = vmatpush1.msra.mxu0 0.0
  %1163 = vmatprep.subr.mxu0 0.0
  %1164 = vmatpush1.msra.mxu0 0.0
  %1165 = vmatprep.subr.mxu0 0.0
  %1166 = vmatpush1.msra.mxu0 0.0
  %1167 = vmatprep.mubr.f32.mxu0 0.0
  %1168 = vmatmul.mubr.f32.gmra.mrb[0].mxu0 %v769
  %v1169 = vpop.f32.mrb[0].mxu0
  %v1170 = vadd.f32 0.0, %v1169
  %v1171 = vpop.f32.mrb[0].mxu0
  %1172 = vdwg.mxu0
  %1173 = vmatprep.subr.mxu0 0.0
  %1174 = vmatpush1.msra.mxu0 %v57
  %1175 = vmatprep.subr.mxu0 0.0
  %1176 = vmatpush1.msra.mxu0 %v58
  %1177 = vmatprep.subr.mxu0 0.0
  %1178 = vmatpush1.msra.mxu0 %v59
  %1179 = vmatprep.subr.mxu0 0.0
  %1180 = vmatpush1.msra.mxu0 %v60
  %1181 = vmatprep.subr.mxu0 0.0
  %1182 = vmatpush1.msra.mxu0 %v61
  %1183 = vmatprep.subr.mxu0 0.0
  %1184 = vmatpush1.msra.mxu0 %v62
  %1185 = vmatprep.subr.mxu0 0.0
  %1186 = vmatpush1.msra.mxu0 %v63
  %1187 = vmatprep.subr.mxu0 0.0
  %1188 = vmatpush1.msra.mxu0 %v64
  %1189 = vmatprep.subr.mxu0 0.0
  %1190 = vmatpush1.msra.mxu0 %v65
  %1191 = vmatprep.subr.mxu0 0.0
  %1192 = vmatpush1.msra.mxu0 %v66
  %1193 = vmatprep.subr.mxu0 0.0
  %1194 = vmatpush1.msra.mxu0 %v67
  %1195 = vmatprep.subr.mxu0 0.0
  %1196 = vmatpush1.msra.mxu0 %v68
  %1197 = vmatprep.subr.mxu0 0.0
  %1198 = vmatpush1.msra.mxu0 %v69
  %1199 = vmatprep.subr.mxu0 0.0
  %1200 = vmatpush1.msra.mxu0 %v70
  %1201 = vmatprep.subr.mxu0 0.0
  %1202 = vmatpush1.msra.mxu0 %v71
  %1203 = vmatprep.subr.mxu0 0.0
  %1204 = vmatpush1.msra.mxu0 %v72
  %1205 = vmatprep.subr.mxu0 0.0
  %1206 = vmatpush1.msra.mxu0 0.0
  %1207 = vmatprep.subr.mxu0 0.0
  %1208 = vmatpush1.msra.mxu0 0.0
  %1209 = vmatprep.subr.mxu0 0.0
  %1210 = vmatpush1.msra.mxu0 0.0
  %1211 = vmatprep.subr.mxu0 0.0
  %1212 = vmatpush1.msra.mxu0 0.0
  %1213 = vmatprep.subr.mxu0 0.0
  %1214 = vmatpush1.msra.mxu0 0.0
  %1215 = vmatprep.subr.mxu0 0.0
  %1216 = vmatpush1.msra.mxu0 0.0
  %1217 = vmatprep.subr.mxu0 0.0
  %1218 = vmatpush1.msra.mxu0 0.0
  %1219 = vmatprep.subr.mxu0 0.0
  %1220 = vmatpush1.msra.mxu0 0.0
  %1221 = vmatprep.subr.mxu0 0.0
  %1222 = vmatpush1.msra.mxu0 0.0
  %1223 = vmatprep.subr.mxu0 0.0
  %1224 = vmatpush1.msra.mxu0 0.0
  %1225 = vmatprep.subr.mxu0 0.0
  %1226 = vmatpush1.msra.mxu0 0.0
  %1227 = vmatprep.subr.mxu0 0.0
  %1228 = vmatpush1.msra.mxu0 0.0
  %1229 = vmatprep.subr.mxu0 0.0
  %1230 = vmatpush1.msra.mxu0 0.0
  %1231 = vmatprep.subr.mxu0 0.0
  %1232 = vmatpush1.msra.mxu0 0.0
  %1233 = vmatprep.subr.mxu0 0.0
  %1234 = vmatpush1.msra.mxu0 0.0
  %1235 = vmatprep.subr.mxu0 0.0
  %1236 = vmatpush1.msra.mxu0 0.0
  %1237 = vmatprep.mubr.f32.mxu0 0.0
  %1238 = vmatmul.mubr.f32.gmra.mrb[0].mxu0 %v1170
  %v1239 = vpop.f32.mrb[0].mxu0
  %v1240 = vadd.f32 0.0, %v1239
  %v1241 = vpop.f32.mrb[0].mxu0
  %1242 = vdwg.mxu0
  %v1243 = vmul.f32 %v1240, %v914
  %v1244 = vadd.f32 %v1243, 1e-05
  %v1245 = vrsqrt.pop %v1244
  %v1246 = vmul.f32 %v760, %v1245
  %v1247 = vmul.f32 %v915, %v1246
  %v1248 = vsub.f32 %v761, %v1247
  %v1250 = vsel %vm312, %v1246, 0
  %1252 = vmatprep.subr.mxu0 0.0
  %1253 = vmatpush1.msra.mxu0 %v73
  %1254 = vmatprep.subr.mxu0 0.0
  %1255 = vmatpush1.msra.mxu0 0.0
  %1256 = vmatprep.subr.mxu0 0.0
  %1257 = vmatpush1.msra.mxu0 0.0
  %1258 = vmatprep.subr.mxu0 0.0
  %1259 = vmatpush1.msra.mxu0 0.0
  %1260 = vmatprep.subr.mxu0 0.0
  %1261 = vmatpush1.msra.mxu0 0.0
  %1262 = vmatprep.subr.mxu0 0.0
  %1263 = vmatpush1.msra.mxu0 0.0
  %1264 = vmatprep.subr.mxu0 0.0
  %1265 = vmatpush1.msra.mxu0 0.0
  %1266 = vmatprep.subr.mxu0 0.0
  %1267 = vmatpush1.msra.mxu0 0.0
  %1268 = vmatprep.subr.mxu0 0.0
  %1269 = vmatpush1.msra.mxu0 0.0
  %1270 = vmatprep.subr.mxu0 0.0
  %1271 = vmatpush1.msra.mxu0 0.0
  %1272 = vmatprep.subr.mxu0 0.0
  %1273 = vmatpush1.msra.mxu0 0.0
  %1274 = vmatprep.subr.mxu0 0.0
  %1275 = vmatpush1.msra.mxu0 0.0
  %1276 = vmatprep.subr.mxu0 0.0
  %1277 = vmatpush1.msra.mxu0 0.0
  %1278 = vmatprep.subr.mxu0 0.0
  %1279 = vmatpush1.msra.mxu0 0.0
  %1280 = vmatprep.subr.mxu0 0.0
  %1281 = vmatpush1.msra.mxu0 0.0
  %1282 = vmatprep.subr.mxu0 0.0
  %1283 = vmatpush1.msra.mxu0 0.0
  %1284 = vmatprep.subr.mxu0 0.0
  %1285 = vmatpush1.msra.mxu0 0.0
  %1286 = vmatprep.subr.mxu0 0.0
  %1287 = vmatpush1.msra.mxu0 0.0
  %1288 = vmatprep.subr.mxu0 0.0
  %1289 = vmatpush1.msra.mxu0 0.0
  %1290 = vmatprep.subr.mxu0 0.0
  %1291 = vmatpush1.msra.mxu0 0.0
  %1292 = vmatprep.subr.mxu0 0.0
  %1293 = vmatpush1.msra.mxu0 0.0
  %1294 = vmatprep.subr.mxu0 0.0
  %1295 = vmatpush1.msra.mxu0 0.0
  %1296 = vmatprep.subr.mxu0 0.0
  %1297 = vmatpush1.msra.mxu0 0.0
  %1298 = vmatprep.subr.mxu0 0.0
  %1299 = vmatpush1.msra.mxu0 0.0
  %1300 = vmatprep.subr.mxu0 0.0
  %1301 = vmatpush1.msra.mxu0 0.0
  %1302 = vmatprep.subr.mxu0 0.0
  %1303 = vmatpush1.msra.mxu0 0.0
  %1304 = vmatprep.subr.mxu0 0.0
  %1305 = vmatpush1.msra.mxu0 0.0
  %1306 = vmatprep.subr.mxu0 0.0
  %1307 = vmatpush1.msra.mxu0 0.0
  %1308 = vmatprep.subr.mxu0 0.0
  %1309 = vmatpush1.msra.mxu0 0.0
  %1310 = vmatprep.subr.mxu0 0.0
  %1311 = vmatpush1.msra.mxu0 0.0
  %1312 = vmatprep.subr.mxu0 0.0
  %1313 = vmatpush1.msra.mxu0 0.0
  %1314 = vmatprep.subr.mxu0 0.0
  %1315 = vmatpush1.msra.mxu0 0.0
  %1316 = vmatprep.mubr.f32.mxu0 0.0
  %1317 = vmatmul.mubr.f32.gmra.mrb[0].mxu0 %v1250
  %v1318 = vpop.f32.mrb[0].mxu0
  %v1319 = vadd.f32 0.0, %v1318
  %v1320 = vpop.f32.mrb[0].mxu0
  %1321 = vdwg.mxu0
  %v1323 = vsel %vm312, %v1248, 0
  %1325 = vmatprep.subr.mxu0 0.0
  %1326 = vmatpush1.msra.mxu0 %v73
  %1327 = vmatprep.subr.mxu0 0.0
  %1328 = vmatpush1.msra.mxu0 0.0
  %1329 = vmatprep.subr.mxu0 0.0
  %1330 = vmatpush1.msra.mxu0 0.0
  %1331 = vmatprep.subr.mxu0 0.0
  %1332 = vmatpush1.msra.mxu0 0.0
  %1333 = vmatprep.subr.mxu0 0.0
  %1334 = vmatpush1.msra.mxu0 0.0
  %1335 = vmatprep.subr.mxu0 0.0
  %1336 = vmatpush1.msra.mxu0 0.0
  %1337 = vmatprep.subr.mxu0 0.0
  %1338 = vmatpush1.msra.mxu0 0.0
  %1339 = vmatprep.subr.mxu0 0.0
  %1340 = vmatpush1.msra.mxu0 0.0
  %1341 = vmatprep.subr.mxu0 0.0
  %1342 = vmatpush1.msra.mxu0 0.0
  %1343 = vmatprep.subr.mxu0 0.0
  %1344 = vmatpush1.msra.mxu0 0.0
  %1345 = vmatprep.subr.mxu0 0.0
  %1346 = vmatpush1.msra.mxu0 0.0
  %1347 = vmatprep.subr.mxu0 0.0
  %1348 = vmatpush1.msra.mxu0 0.0
  %1349 = vmatprep.subr.mxu0 0.0
  %1350 = vmatpush1.msra.mxu0 0.0
  %1351 = vmatprep.subr.mxu0 0.0
  %1352 = vmatpush1.msra.mxu0 0.0
  %1353 = vmatprep.subr.mxu0 0.0
  %1354 = vmatpush1.msra.mxu0 0.0
  %1355 = vmatprep.subr.mxu0 0.0
  %1356 = vmatpush1.msra.mxu0 0.0
  %1357 = vmatprep.subr.mxu0 0.0
  %1358 = vmatpush1.msra.mxu0 0.0
  %1359 = vmatprep.subr.mxu0 0.0
  %1360 = vmatpush1.msra.mxu0 0.0
  %1361 = vmatprep.subr.mxu0 0.0
  %1362 = vmatpush1.msra.mxu0 0.0
  %1363 = vmatprep.subr.mxu0 0.0
  %1364 = vmatpush1.msra.mxu0 0.0
  %1365 = vmatprep.subr.mxu0 0.0
  %1366 = vmatpush1.msra.mxu0 0.0
  %1367 = vmatprep.subr.mxu0 0.0
  %1368 = vmatpush1.msra.mxu0 0.0
  %1369 = vmatprep.subr.mxu0 0.0
  %1370 = vmatpush1.msra.mxu0 0.0
  %1371 = vmatprep.subr.mxu0 0.0
  %1372 = vmatpush1.msra.mxu0 0.0
  %1373 = vmatprep.subr.mxu0 0.0
  %1374 = vmatpush1.msra.mxu0 0.0
  %1375 = vmatprep.subr.mxu0 0.0
  %1376 = vmatpush1.msra.mxu0 0.0
  %1377 = vmatprep.subr.mxu0 0.0
  %1378 = vmatpush1.msra.mxu0 0.0
  %1379 = vmatprep.subr.mxu0 0.0
  %1380 = vmatpush1.msra.mxu0 0.0
  %1381 = vmatprep.subr.mxu0 0.0
  %1382 = vmatpush1.msra.mxu0 0.0
  %1383 = vmatprep.subr.mxu0 0.0
  %1384 = vmatpush1.msra.mxu0 0.0
  %1385 = vmatprep.subr.mxu0 0.0
  %1386 = vmatpush1.msra.mxu0 0.0
  %1387 = vmatprep.subr.mxu0 0.0
  %1388 = vmatpush1.msra.mxu0 0.0
  %1389 = vmatprep.mubr.f32.mxu0 0.0
  %1390 = vmatmul.mubr.f32.gmra.mrb[0].mxu0 %v1323
  %v1391 = vpop.f32.mrb[0].mxu0
  %v1392 = vadd.f32 0.0, %v1391
  %v1393 = vpop.f32.mrb[0].mxu0
  %1394 = vdwg.mxu0
  %v1396 = vsel %vm999, %v1319, 0
  %1398 = vmatprep.subr.mxu0 0.0
  %1399 = vmatpush1.msra.mxu0 %v1396
  %1400 = vmatprep.subr.mxu0 0.0
  %1401 = vmatpush1.msra.mxu0 0.0
  %1402 = vmatprep.subr.mxu0 0.0
  %1403 = vmatpush1.msra.mxu0 0.0
  %1404 = vmatprep.subr.mxu0 0.0
  %1405 = vmatpush1.msra.mxu0 0.0
  %1406 = vmatprep.subr.mxu0 0.0
  %1407 = vmatpush1.msra.mxu0 0.0
  %1408 = vmatprep.subr.mxu0 0.0
  %1409 = vmatpush1.msra.mxu0 0.0
  %1410 = vmatprep.subr.mxu0 0.0
  %1411 = vmatpush1.msra.mxu0 0.0
  %1412 = vmatprep.subr.mxu0 0.0
  %1413 = vmatpush1.msra.mxu0 0.0
  %1414 = vmatprep.subr.mxu0 0.0
  %1415 = vmatpush1.msra.mxu0 0.0
  %1416 = vmatprep.subr.mxu0 0.0
  %1417 = vmatpush1.msra.mxu0 0.0
  %1418 = vmatprep.subr.mxu0 0.0
  %1419 = vmatpush1.msra.mxu0 0.0
  %1420 = vmatprep.subr.mxu0 0.0
  %1421 = vmatpush1.msra.mxu0 0.0
  %1422 = vmatprep.subr.mxu0 0.0
  %1423 = vmatpush1.msra.mxu0 0.0
  %1424 = vmatprep.subr.mxu0 0.0
  %1425 = vmatpush1.msra.mxu0 0.0
  %1426 = vmatprep.subr.mxu0 0.0
  %1427 = vmatpush1.msra.mxu0 0.0
  %1428 = vmatprep.subr.mxu0 0.0
  %1429 = vmatpush1.msra.mxu0 0.0
  %1430 = vmatprep.subr.mxu0 0.0
  %1431 = vmatpush1.msra.mxu0 0.0
  %1432 = vmatprep.subr.mxu0 0.0
  %1433 = vmatpush1.msra.mxu0 0.0
  %1434 = vmatprep.subr.mxu0 0.0
  %1435 = vmatpush1.msra.mxu0 0.0
  %1436 = vmatprep.subr.mxu0 0.0
  %1437 = vmatpush1.msra.mxu0 0.0
  %1438 = vmatprep.subr.mxu0 0.0
  %1439 = vmatpush1.msra.mxu0 0.0
  %1440 = vmatprep.subr.mxu0 0.0
  %1441 = vmatpush1.msra.mxu0 0.0
  %1442 = vmatprep.subr.mxu0 0.0
  %1443 = vmatpush1.msra.mxu0 0.0
  %1444 = vmatprep.subr.mxu0 0.0
  %1445 = vmatpush1.msra.mxu0 0.0
  %1446 = vmatprep.subr.mxu0 0.0
  %1447 = vmatpush1.msra.mxu0 0.0
  %1448 = vmatprep.subr.mxu0 0.0
  %1449 = vmatpush1.msra.mxu0 0.0
  %1450 = vmatprep.subr.mxu0 0.0
  %1451 = vmatpush1.msra.mxu0 0.0
  %1452 = vmatprep.subr.mxu0 0.0
  %1453 = vmatpush1.msra.mxu0 0.0
  %1454 = vmatprep.subr.mxu0 0.0
  %1455 = vmatpush1.msra.mxu0 0.0
  %1456 = vmatprep.subr.mxu0 0.0
  %1457 = vmatpush1.msra.mxu0 0.0
  %1458 = vmatprep.subr.mxu0 0.0
  %1459 = vmatpush1.msra.mxu0 0.0
  %1460 = vmatprep.subr.mxu0 0.0
  %1461 = vmatpush1.msra.mxu0 0.0
  %1462 = vmatprep.mubr.f32.mxu0 0.0
  %1463 = vmatmul.mubr.f32.gmra.mrb[0].mxu0 %v991
  %v1464 = vpop.f32.mrb[0].mxu0
  %v1465 = vadd.f32 0.0, %v1464
  %v1466 = vpop.f32.mrb[0].mxu0
  %1467 = vmatprep.mubr.f32.mxu0 0.0
  %1468 = vmatmul.mubr.f32.gmra.mrb[0].mxu0 %v994
  %v1469 = vpop.f32.mrb[0].mxu0
  %v1470 = vadd.f32 0.0, %v1469
  %v1471 = vpop.f32.mrb[0].mxu0
  %1472 = vmatprep.mubr.f32.mxu0 0.0
  %1473 = vmatmul.mubr.f32.gmra.mrb[0].mxu0 %v997
  %v1474 = vpop.f32.mrb[0].mxu0
  %v1475 = vadd.f32 0.0, %v1474
  %v1476 = vpop.f32.mrb[0].mxu0
  %1477 = vdwg.mxu0
  %v1479 = vsel %vm999, %v1392, 0
  %1481 = vmatprep.subr.mxu0 0.0
  %1482 = vmatpush1.msra.mxu0 %v1479
  %1483 = vmatprep.subr.mxu0 0.0
  %1484 = vmatpush1.msra.mxu0 0.0
  %1485 = vmatprep.subr.mxu0 0.0
  %1486 = vmatpush1.msra.mxu0 0.0
  %1487 = vmatprep.subr.mxu0 0.0
  %1488 = vmatpush1.msra.mxu0 0.0
  %1489 = vmatprep.subr.mxu0 0.0
  %1490 = vmatpush1.msra.mxu0 0.0
  %1491 = vmatprep.subr.mxu0 0.0
  %1492 = vmatpush1.msra.mxu0 0.0
  %1493 = vmatprep.subr.mxu0 0.0
  %1494 = vmatpush1.msra.mxu0 0.0
  %1495 = vmatprep.subr.mxu0 0.0
  %1496 = vmatpush1.msra.mxu0 0.0
  %1497 = vmatprep.subr.mxu0 0.0
  %1498 = vmatpush1.msra.mxu0 0.0
  %1499 = vmatprep.subr.mxu0 0.0
  %1500 = vmatpush1.msra.mxu0 0.0
  %1501 = vmatprep.subr.mxu0 0.0
  %1502 = vmatpush1.msra.mxu0 0.0
  %1503 = vmatprep.subr.mxu0 0.0
  %1504 = vmatpush1.msra.mxu0 0.0
  %1505 = vmatprep.subr.mxu0 0.0
  %1506 = vmatpush1.msra.mxu0 0.0
  %1507 = vmatprep.subr.mxu0 0.0
  %1508 = vmatpush1.msra.mxu0 0.0
  %1509 = vmatprep.subr.mxu0 0.0
  %1510 = vmatpush1.msra.mxu0 0.0
  %1511 = vmatprep.subr.mxu0 0.0
  %1512 = vmatpush1.msra.mxu0 0.0
  %1513 = vmatprep.subr.mxu0 0.0
  %1514 = vmatpush1.msra.mxu0 0.0
  %1515 = vmatprep.subr.mxu0 0.0
  %1516 = vmatpush1.msra.mxu0 0.0
  %1517 = vmatprep.subr.mxu0 0.0
  %1518 = vmatpush1.msra.mxu0 0.0
  %1519 = vmatprep.subr.mxu0 0.0
  %1520 = vmatpush1.msra.mxu0 0.0
  %1521 = vmatprep.subr.mxu0 0.0
  %1522 = vmatpush1.msra.mxu0 0.0
  %1523 = vmatprep.subr.mxu0 0.0
  %1524 = vmatpush1.msra.mxu0 0.0
  %1525 = vmatprep.subr.mxu0 0.0
  %1526 = vmatpush1.msra.mxu0 0.0
  %1527 = vmatprep.subr.mxu0 0.0
  %1528 = vmatpush1.msra.mxu0 0.0
  %1529 = vmatprep.subr.mxu0 0.0
  %1530 = vmatpush1.msra.mxu0 0.0
  %1531 = vmatprep.subr.mxu0 0.0
  %1532 = vmatpush1.msra.mxu0 0.0
  %1533 = vmatprep.subr.mxu0 0.0
  %1534 = vmatpush1.msra.mxu0 0.0
  %1535 = vmatprep.subr.mxu0 0.0
  %1536 = vmatpush1.msra.mxu0 0.0
  %1537 = vmatprep.subr.mxu0 0.0
  %1538 = vmatpush1.msra.mxu0 0.0
  %1539 = vmatprep.subr.mxu0 0.0
  %1540 = vmatpush1.msra.mxu0 0.0
  %1541 = vmatprep.subr.mxu0 0.0
  %1542 = vmatpush1.msra.mxu0 0.0
  %1543 = vmatprep.subr.mxu0 0.0
  %1544 = vmatpush1.msra.mxu0 0.0
  %1545 = vmatprep.mubr.f32.mxu0 0.0
  %1546 = vmatmul.mubr.f32.gmra.mrb[0].mxu0 %v991
  %v1547 = vpop.f32.mrb[0].mxu0
  %v1548 = vadd.f32 0.0, %v1547
  %v1549 = vpop.f32.mrb[0].mxu0
  %1550 = vmatprep.mubr.f32.mxu0 0.0
  %1551 = vmatmul.mubr.f32.gmra.mrb[0].mxu0 %v994
  %v1552 = vpop.f32.mrb[0].mxu0
  %v1553 = vadd.f32 0.0, %v1552
  %v1554 = vpop.f32.mrb[0].mxu0
  %1555 = vmatprep.mubr.f32.mxu0 0.0
  %1556 = vmatmul.mubr.f32.gmra.mrb[0].mxu0 %v997
  %v1557 = vpop.f32.mrb[0].mxu0
  %v1558 = vadd.f32 0.0, %v1557
  %v1559 = vpop.f32.mrb[0].mxu0
  %1560 = vdwg.mxu0
  %v1561 = vmul.f32 %v754, %v1465
  %v1562 = vmul.f32 %v755, %v1470
  %v1563 = vmul.f32 %v756, %v1475
  %v1564 = vmul.f32 %v757, %v1465
  %v1565 = vmul.f32 %v758, %v1470
  %v1566 = vmul.f32 %v759, %v1475
  %v1567 = vadd.f32 %v1561, %v1548
  %v1568 = vadd.f32 %v1562, %v1553
  %v1569 = vadd.f32 %v1563, %v1558
  %v1570 = vadd.f32 %v1564, %v1548
  %v1571 = vadd.f32 %v1565, %v1553
  %v1572 = vadd.f32 %v1566, %v1558
  %v1573 = vadd.f32 %v1567, %v1568
  %v1574 = vsel %vm227, %v1569, 0.0
  %v1575 = vadd.f32 %v1573, %v1574
  %v1576 = vrot.slane %v1575, 4
  %v1577 = vadd.f32 %v1575, %v1576
  %v1578 = vrot.slane %v1577, 2
  %v1579 = vadd.f32 %v1577, %v1578
  %v1580 = vrot.slane %v1579, 1
  %v1581 = vadd.f32 %v1579, %v1580
  %v1582 = vadd.f32 %v1570, %v1571
  %v1583 = vsel %vm227, %v1572, 0.0
  %v1584 = vadd.f32 %v1582, %v1583
  %v1585 = vrot.slane %v1584, 4
  %v1586 = vadd.f32 %v1584, %v1585
  %v1587 = vrot.slane %v1586, 2
  %v1588 = vadd.f32 %v1586, %v1587
  %v1589 = vrot.slane %v1588, 1
  %v1590 = vadd.f32 %v1588, %v1589
  %v1591 = vrcp.pop 20.0
  %v1592 = vmul.f32 %v1581, %v1591
  %v1593 = vmul.f32 %v1590, %v1591
  %v1594 = vpack.c.bf16 %v1592, %v1592
  %v1595 = vpack.c.bf16 %v1593, %v1593
  %v1596 = vld [vmem:[%s7] sm:$0xf]
  %v1597 = vld [vmem:[%s7 + $0x4] sm:$0xf]
  %v1598 = vld [vmem:[%s7 + $0x8] sm:$0xf]
  %v1599 = vld [vmem:[%s7 + $0xc] sm:$0xf]
  %v1600 = vld [vmem:[%s7 + $0x10] sm:$0xf]
  %v1601 = vld [vmem:[%s7 + $0x14] sm:$0xf]
  %v1602 = vld [vmem:[%s7 + $0x18] sm:$0xf]
  %v1603 = vld [vmem:[%s7 + $0x1c] sm:$0xf]
  %v1604 = vld [vmem:[%s7 + $0x20] sm:$0xf]
  %v1605 = vld [vmem:[%s7 + $0x24] sm:$0xf]
  %v1606 = vld [vmem:[%s7 + $0x28] sm:$0xf]
  %v1607 = vld [vmem:[%s7 + $0x2c] sm:$0xf]
  %v1608 = vld [vmem:[%s7 + $0x30] sm:$0xf]
  %v1609 = vld [vmem:[%s7 + $0x34] sm:$0xf]
  %v1610 = vld [vmem:[%s7 + $0x38] sm:$0xf]
  %v1611 = vld [vmem:[%s7 + $0x3c] sm:$0xf]
  %v1614 = vunpack.c.l.b16 %v1594
  %v1615 = vunpack.c.l.b16 %v1595
  %vm1616 = vcmask 1041409
  %v1617 = vsel %vm1616, %v1615, %v1614
  %v1618 = vpack.c.b16 %v1617, %v1617
  %v1636 = vunpack.c.l.b16 %v1596
  %v1637 = vunpack.c.l.b16 %v1597
  %v1638 = vunpack.c.l.b16 %v1598
  %v1639 = vunpack.c.l.b16 %v1599
  %v1640 = vunpack.c.l.b16 %v1600
  %v1641 = vunpack.c.l.b16 %v1601
  %v1642 = vunpack.c.l.b16 %v1602
  %v1643 = vunpack.c.l.b16 %v1603
  %v1644 = vunpack.c.l.b16 %v1604
  %v1645 = vunpack.c.l.b16 %v1605
  %v1646 = vunpack.c.l.b16 %v1606
  %v1647 = vunpack.c.l.b16 %v1607
  %v1648 = vunpack.c.l.b16 %v1608
  %v1649 = vunpack.c.l.b16 %v1609
  %v1650 = vunpack.c.l.b16 %v1610
  %v1651 = vunpack.c.l.b16 %v1611
  %v1652 = vpack.c.b16 %v1637, %v1636
  %v1653 = vpack.c.b16 %v1639, %v1638
  %v1654 = vpack.c.b16 %v1641, %v1640
  %v1655 = vpack.c.b16 %v1643, %v1642
  %v1656 = vpack.c.b16 %v1645, %v1644
  %v1657 = vpack.c.b16 %v1647, %v1646
  %v1658 = vpack.c.b16 %v1649, %v1648
  %v1659 = vpack.c.b16 %v1651, %v1650
  %1668 = vmatprep.subr.bf16.mxu0 0
  %1669 = vmatpush1.bf16.msra.mxu0 %v1652
  %1670 = vmatprep.subr.bf16.mxu0 0
  %1671 = vmatpush1.bf16.msra.mxu0 %v1653
  %1672 = vmatprep.subr.bf16.mxu0 0
  %1673 = vmatpush1.bf16.msra.mxu0 %v1654
  %1674 = vmatprep.subr.bf16.mxu0 0
  %1675 = vmatpush1.bf16.msra.mxu0 %v1655
  %1676 = vmatprep.subr.bf16.mxu0 0
  %1677 = vmatpush1.bf16.msra.mxu0 %v1656
  %1678 = vmatprep.subr.bf16.mxu0 0
  %1679 = vmatpush1.bf16.msra.mxu0 %v1657
  %1680 = vmatprep.subr.bf16.mxu0 0
  %1681 = vmatpush1.bf16.msra.mxu0 %v1658
  %1682 = vmatprep.subr.bf16.mxu0 0
  %1683 = vmatpush1.bf16.msra.mxu0 %v1659
  %1684 = vmatprep.subr.bf16.mxu0 0
  %1685 = vmatpush1.bf16.msra.mxu0 0
  %1686 = vmatprep.subr.bf16.mxu0 0
  %1687 = vmatpush1.bf16.msra.mxu0 0
  %1688 = vmatprep.subr.bf16.mxu0 0
  %1689 = vmatpush1.bf16.msra.mxu0 0
  %1690 = vmatprep.subr.bf16.mxu0 0
  %1691 = vmatpush1.bf16.msra.mxu0 0
  %1692 = vmatprep.subr.bf16.mxu0 0
  %1693 = vmatpush1.bf16.msra.mxu0 0
  %1694 = vmatprep.subr.bf16.mxu0 0
  %1695 = vmatpush1.bf16.msra.mxu0 0
  %1696 = vmatprep.subr.bf16.mxu0 0
  %1697 = vmatpush1.bf16.msra.mxu0 0
  %1698 = vmatprep.subr.bf16.mxu0 0
  %1699 = vmatpush1.bf16.msra.mxu0 0
  %1700 = vmatprep.mubr.bf16.mxu0 0
  %1701 = vmatmul.mubr.bf16.gmra.mrb[0].mxu0 %v1618
  %v1702 = vpop.f32.mrb[0].mxu0
  %v1703 = vadd.f32 0.0, %v1702
  %v1704 = vpop.f32.mrb[0].mxu0
  %v1705 = vpop.f32.mrb[0].mxu0
  %v1706 = vpop.f32.mrb[0].mxu0
  %1707 = vdwg.mxu0
  %v1708 = vld [vmem:[%s8] sm:$0x1]
  %v1709 = vld [vmem:[%s9] sm:$0x1]
  %vm1710 = vcmask 1041408
  %v1711 = vsel %vm1710, %v1703, 0.0
  %v1712 = vrot.slane %v1711, 4
  %v1713 = vadd.f32 %v1711, %v1712
  %v1714 = vrot.slane %v1713, 2
  %v1715 = vadd.f32 %v1713, %v1714
  %v1716 = vrot.slane %v1715, 1
  %v1717 = vadd.f32 %v1715, %v1716
  %1718 = vmatprep.subr.mxu0 0.0
  %1719 = vmatpush1.msra.mxu0 %v57
  %1720 = vmatprep.subr.mxu0 0.0
  %1721 = vmatpush1.msra.mxu0 %v58
  %1722 = vmatprep.subr.mxu0 0.0
  %1723 = vmatpush1.msra.mxu0 %v59
  %1724 = vmatprep.subr.mxu0 0.0
  %1725 = vmatpush1.msra.mxu0 %v60
  %1726 = vmatprep.subr.mxu0 0.0
  %1727 = vmatpush1.msra.mxu0 %v61
  %1728 = vmatprep.subr.mxu0 0.0
  %1729 = vmatpush1.msra.mxu0 %v62
  %1730 = vmatprep.subr.mxu0 0.0
  %1731 = vmatpush1.msra.mxu0 %v63
  %1732 = vmatprep.subr.mxu0 0.0
  %1733 = vmatpush1.msra.mxu0 %v64
  %1734 = vmatprep.subr.mxu0 0.0
  %1735 = vmatpush1.msra.mxu0 %v65
  %1736 = vmatprep.subr.mxu0 0.0
  %1737 = vmatpush1.msra.mxu0 %v66
  %1738 = vmatprep.subr.mxu0 0.0
  %1739 = vmatpush1.msra.mxu0 %v67
  %1740 = vmatprep.subr.mxu0 0.0
  %1741 = vmatpush1.msra.mxu0 %v68
  %1742 = vmatprep.subr.mxu0 0.0
  %1743 = vmatpush1.msra.mxu0 %v69
  %1744 = vmatprep.subr.mxu0 0.0
  %1745 = vmatpush1.msra.mxu0 %v70
  %1746 = vmatprep.subr.mxu0 0.0
  %1747 = vmatpush1.msra.mxu0 %v71
  %1748 = vmatprep.subr.mxu0 0.0
  %1749 = vmatpush1.msra.mxu0 %v72
  %1750 = vmatprep.subr.mxu0 0.0
  %1751 = vmatpush1.msra.mxu0 0.0
  %1752 = vmatprep.subr.mxu0 0.0
  %1753 = vmatpush1.msra.mxu0 0.0
  %1754 = vmatprep.subr.mxu0 0.0
  %1755 = vmatpush1.msra.mxu0 0.0
  %1756 = vmatprep.subr.mxu0 0.0
  %1757 = vmatpush1.msra.mxu0 0.0
  %1758 = vmatprep.subr.mxu0 0.0
  %1759 = vmatpush1.msra.mxu0 0.0
  %1760 = vmatprep.subr.mxu0 0.0
  %1761 = vmatpush1.msra.mxu0 0.0
  %1762 = vmatprep.subr.mxu0 0.0
  %1763 = vmatpush1.msra.mxu0 0.0
  %1764 = vmatprep.subr.mxu0 0.0
  %1765 = vmatpush1.msra.mxu0 0.0
  %1766 = vmatprep.subr.mxu0 0.0
  %1767 = vmatpush1.msra.mxu0 0.0
  %1768 = vmatprep.subr.mxu0 0.0
  %1769 = vmatpush1.msra.mxu0 0.0
  %1770 = vmatprep.subr.mxu0 0.0
  %1771 = vmatpush1.msra.mxu0 0.0
  %1772 = vmatprep.subr.mxu0 0.0
  %1773 = vmatpush1.msra.mxu0 0.0
  %1774 = vmatprep.subr.mxu0 0.0
  %1775 = vmatpush1.msra.mxu0 0.0
  %1776 = vmatprep.subr.mxu0 0.0
  %1777 = vmatpush1.msra.mxu0 0.0
  %1778 = vmatprep.subr.mxu0 0.0
  %1779 = vmatpush1.msra.mxu0 0.0
  %1780 = vmatprep.subr.mxu0 0.0
  %1781 = vmatpush1.msra.mxu0 0.0
  %1782 = vmatprep.mubr.f32.mxu0 0.0
  %1783 = vmatmul.mubr.f32.gmra.mrb[0].mxu0 %v1717
  %v1784 = vpop.f32.mrb[0].mxu0
  %v1785 = vadd.f32 0.0, %v1784
  %v1786 = vpop.f32.mrb[0].mxu0
  %1787 = vdwg.mxu0
  %v1788 = vrcp.pop 32.0
  %v1789 = vmul.f32 %v1785, %v1788
  %v1791 = vsel %vm312, %v1789, 0
  %1793 = vmatprep.subr.mxu0 0.0
  %1794 = vmatpush1.msra.mxu0 %v73
  %1795 = vmatprep.subr.mxu0 0.0
  %1796 = vmatpush1.msra.mxu0 0.0
  %1797 = vmatprep.subr.mxu0 0.0
  %1798 = vmatpush1.msra.mxu0 0.0
  %1799 = vmatprep.subr.mxu0 0.0
  %1800 = vmatpush1.msra.mxu0 0.0
  %1801 = vmatprep.subr.mxu0 0.0
  %1802 = vmatpush1.msra.mxu0 0.0
  %1803 = vmatprep.subr.mxu0 0.0
  %1804 = vmatpush1.msra.mxu0 0.0
  %1805 = vmatprep.subr.mxu0 0.0
  %1806 = vmatpush1.msra.mxu0 0.0
  %1807 = vmatprep.subr.mxu0 0.0
  %1808 = vmatpush1.msra.mxu0 0.0
  %1809 = vmatprep.subr.mxu0 0.0
  %1810 = vmatpush1.msra.mxu0 0.0
  %1811 = vmatprep.subr.mxu0 0.0
  %1812 = vmatpush1.msra.mxu0 0.0
  %1813 = vmatprep.subr.mxu0 0.0
  %1814 = vmatpush1.msra.mxu0 0.0
  %1815 = vmatprep.subr.mxu0 0.0
  %1816 = vmatpush1.msra.mxu0 0.0
  %1817 = vmatprep.subr.mxu0 0.0
  %1818 = vmatpush1.msra.mxu0 0.0
  %1819 = vmatprep.subr.mxu0 0.0
  %1820 = vmatpush1.msra.mxu0 0.0
  %1821 = vmatprep.subr.mxu0 0.0
  %1822 = vmatpush1.msra.mxu0 0.0
  %1823 = vmatprep.subr.mxu0 0.0
  %1824 = vmatpush1.msra.mxu0 0.0
  %1825 = vmatprep.subr.mxu0 0.0
  %1826 = vmatpush1.msra.mxu0 0.0
  %1827 = vmatprep.subr.mxu0 0.0
  %1828 = vmatpush1.msra.mxu0 0.0
  %1829 = vmatprep.subr.mxu0 0.0
  %1830 = vmatpush1.msra.mxu0 0.0
  %1831 = vmatprep.subr.mxu0 0.0
  %1832 = vmatpush1.msra.mxu0 0.0
  %1833 = vmatprep.subr.mxu0 0.0
  %1834 = vmatpush1.msra.mxu0 0.0
  %1835 = vmatprep.subr.mxu0 0.0
  %1836 = vmatpush1.msra.mxu0 0.0
  %1837 = vmatprep.subr.mxu0 0.0
  %1838 = vmatpush1.msra.mxu0 0.0
  %1839 = vmatprep.subr.mxu0 0.0
  %1840 = vmatpush1.msra.mxu0 0.0
  %1841 = vmatprep.subr.mxu0 0.0
  %1842 = vmatpush1.msra.mxu0 0.0
  %1843 = vmatprep.subr.mxu0 0.0
  %1844 = vmatpush1.msra.mxu0 0.0
  %1845 = vmatprep.subr.mxu0 0.0
  %1846 = vmatpush1.msra.mxu0 0.0
  %1847 = vmatprep.subr.mxu0 0.0
  %1848 = vmatpush1.msra.mxu0 0.0
  %1849 = vmatprep.subr.mxu0 0.0
  %1850 = vmatpush1.msra.mxu0 0.0
  %1851 = vmatprep.subr.mxu0 0.0
  %1852 = vmatpush1.msra.mxu0 0.0
  %1853 = vmatprep.subr.mxu0 0.0
  %1854 = vmatpush1.msra.mxu0 0.0
  %1855 = vmatprep.subr.mxu0 0.0
  %1856 = vmatpush1.msra.mxu0 0.0
  %1857 = vmatprep.mubr.f32.mxu0 0.0
  %1858 = vmatmul.mubr.f32.gmra.mrb[0].mxu0 %v1791
  %v1859 = vpop.f32.mrb[0].mxu0
  %v1860 = vadd.f32 0.0, %v1859
  %v1861 = vpop.f32.mrb[0].mxu0
  %1862 = vdwg.mxu0
  %v1863 = vlaneseq
  %v1864 = vshrl.u32 %v1863, 7
  %v1865 = vsub.s32 0, %v1864
  %v1866 = vrot.slane %v1860, %v1865
  %v1867 = vsub.f32 %v1703, %v1866
  %v1868 = vmul.f32 %v1867, %v1867
  %v1869 = vsel %vm1710, %v1868, 0.0
  %v1870 = vrot.slane %v1869, 4
  %v1871 = vadd.f32 %v1869, %v1870
  %v1872 = vrot.slane %v1871, 2
  %v1873 = vadd.f32 %v1871, %v1872
  %v1874 = vrot.slane %v1873, 1
  %v1875 = vadd.f32 %v1873, %v1874
  %1876 = vmatprep.subr.mxu0 0.0
  %1877 = vmatpush1.msra.mxu0 %v57
  %1878 = vmatprep.subr.mxu0 0.0
  %1879 = vmatpush1.msra.mxu0 %v58
  %1880 = vmatprep.subr.mxu0 0.0
  %1881 = vmatpush1.msra.mxu0 %v59
  %1882 = vmatprep.subr.mxu0 0.0
  %1883 = vmatpush1.msra.mxu0 %v60
  %1884 = vmatprep.subr.mxu0 0.0
  %1885 = vmatpush1.msra.mxu0 %v61
  %1886 = vmatprep.subr.mxu0 0.0
  %1887 = vmatpush1.msra.mxu0 %v62
  %1888 = vmatprep.subr.mxu0 0.0
  %1889 = vmatpush1.msra.mxu0 %v63
  %1890 = vmatprep.subr.mxu0 0.0
  %1891 = vmatpush1.msra.mxu0 %v64
  %1892 = vmatprep.subr.mxu0 0.0
  %1893 = vmatpush1.msra.mxu0 %v65
  %1894 = vmatprep.subr.mxu0 0.0
  %1895 = vmatpush1.msra.mxu0 %v66
  %1896 = vmatprep.subr.mxu0 0.0
  %1897 = vmatpush1.msra.mxu0 %v67
  %1898 = vmatprep.subr.mxu0 0.0
  %1899 = vmatpush1.msra.mxu0 %v68
  %1900 = vmatprep.subr.mxu0 0.0
  %1901 = vmatpush1.msra.mxu0 %v69
  %1902 = vmatprep.subr.mxu0 0.0
  %1903 = vmatpush1.msra.mxu0 %v70
  %1904 = vmatprep.subr.mxu0 0.0
  %1905 = vmatpush1.msra.mxu0 %v71
  %1906 = vmatprep.subr.mxu0 0.0
  %1907 = vmatpush1.msra.mxu0 %v72
  %1908 = vmatprep.subr.mxu0 0.0
  %1909 = vmatpush1.msra.mxu0 0.0
  %1910 = vmatprep.subr.mxu0 0.0
  %1911 = vmatpush1.msra.mxu0 0.0
  %1912 = vmatprep.subr.mxu0 0.0
  %1913 = vmatpush1.msra.mxu0 0.0
  %1914 = vmatprep.subr.mxu0 0.0
  %1915 = vmatpush1.msra.mxu0 0.0
  %1916 = vmatprep.subr.mxu0 0.0
  %1917 = vmatpush1.msra.mxu0 0.0
  %1918 = vmatprep.subr.mxu0 0.0
  %1919 = vmatpush1.msra.mxu0 0.0
  %1920 = vmatprep.subr.mxu0 0.0
  %1921 = vmatpush1.msra.mxu0 0.0
  %1922 = vmatprep.subr.mxu0 0.0
  %1923 = vmatpush1.msra.mxu0 0.0
  %1924 = vmatprep.subr.mxu0 0.0
  %1925 = vmatpush1.msra.mxu0 0.0
  %1926 = vmatprep.subr.mxu0 0.0
  %1927 = vmatpush1.msra.mxu0 0.0
  %1928 = vmatprep.subr.mxu0 0.0
  %1929 = vmatpush1.msra.mxu0 0.0
  %1930 = vmatprep.subr.mxu0 0.0
  %1931 = vmatpush1.msra.mxu0 0.0
  %1932 = vmatprep.subr.mxu0 0.0
  %1933 = vmatpush1.msra.mxu0 0.0
  %1934 = vmatprep.subr.mxu0 0.0
  %1935 = vmatpush1.msra.mxu0 0.0
  %1936 = vmatprep.subr.mxu0 0.0
  %1937 = vmatpush1.msra.mxu0 0.0
  %1938 = vmatprep.subr.mxu0 0.0
  %1939 = vmatpush1.msra.mxu0 0.0
  %1940 = vmatprep.mubr.f32.mxu0 0.0
  %1941 = vmatmul.mubr.f32.gmra.mrb[0].mxu0 %v1875
  %v1942 = vpop.f32.mrb[0].mxu0
  %v1943 = vadd.f32 0.0, %v1942
  %v1944 = vpop.f32.mrb[0].mxu0
  %1945 = vdwg.mxu0
  %v1946 = vmul.f32 %v1943, %v1788
  %v1947 = vadd.f32 %v1946, 1e-05
  %v1948 = vrsqrt.pop %v1947
  %v1949 = vmul.f32 %v1708, %v1948
  %v1950 = vmul.f32 %v1789, %v1949
  %v1951 = vsub.f32 %v1709, %v1950
  %v1953 = vsel %vm312, %v1949, 0
  %1955 = vmatprep.subr.mxu0 0.0
  %1956 = vmatpush1.msra.mxu0 %v73
  %1957 = vmatprep.subr.mxu0 0.0
  %1958 = vmatpush1.msra.mxu0 0.0
  %1959 = vmatprep.subr.mxu0 0.0
  %1960 = vmatpush1.msra.mxu0 0.0
  %1961 = vmatprep.subr.mxu0 0.0
  %1962 = vmatpush1.msra.mxu0 0.0
  %1963 = vmatprep.subr.mxu0 0.0
  %1964 = vmatpush1.msra.mxu0 0.0
  %1965 = vmatprep.subr.mxu0 0.0
  %1966 = vmatpush1.msra.mxu0 0.0
  %1967 = vmatprep.subr.mxu0 0.0
  %1968 = vmatpush1.msra.mxu0 0.0
  %1969 = vmatprep.subr.mxu0 0.0
  %1970 = vmatpush1.msra.mxu0 0.0
  %1971 = vmatprep.subr.mxu0 0.0
  %1972 = vmatpush1.msra.mxu0 0.0
  %1973 = vmatprep.subr.mxu0 0.0
  %1974 = vmatpush1.msra.mxu0 0.0
  %1975 = vmatprep.subr.mxu0 0.0
  %1976 = vmatpush1.msra.mxu0 0.0
  %1977 = vmatprep.subr.mxu0 0.0
  %1978 = vmatpush1.msra.mxu0 0.0
  %1979 = vmatprep.subr.mxu0 0.0
  %1980 = vmatpush1.msra.mxu0 0.0
  %1981 = vmatprep.subr.mxu0 0.0
  %1982 = vmatpush1.msra.mxu0 0.0
  %1983 = vmatprep.subr.mxu0 0.0
  %1984 = vmatpush1.msra.mxu0 0.0
  %1985 = vmatprep.subr.mxu0 0.0
  %1986 = vmatpush1.msra.mxu0 0.0
  %1987 = vmatprep.subr.mxu0 0.0
  %1988 = vmatpush1.msra.mxu0 0.0
  %1989 = vmatprep.subr.mxu0 0.0
  %1990 = vmatpush1.msra.mxu0 0.0
  %1991 = vmatprep.subr.mxu0 0.0
  %1992 = vmatpush1.msra.mxu0 0.0
  %1993 = vmatprep.subr.mxu0 0.0
  %1994 = vmatpush1.msra.mxu0 0.0
  %1995 = vmatprep.subr.mxu0 0.0
  %1996 = vmatpush1.msra.mxu0 0.0
  %1997 = vmatprep.subr.mxu0 0.0
  %1998 = vmatpush1.msra.mxu0 0.0
  %1999 = vmatprep.subr.mxu0 0.0
  %2000 = vmatpush1.msra.mxu0 0.0
  %2001 = vmatprep.subr.mxu0 0.0
  %2002 = vmatpush1.msra.mxu0 0.0
  %2003 = vmatprep.subr.mxu0 0.0
  %2004 = vmatpush1.msra.mxu0 0.0
  %2005 = vmatprep.subr.mxu0 0.0
  %2006 = vmatpush1.msra.mxu0 0.0
  %2007 = vmatprep.subr.mxu0 0.0
  %2008 = vmatpush1.msra.mxu0 0.0
  %2009 = vmatprep.subr.mxu0 0.0
  %2010 = vmatpush1.msra.mxu0 0.0
  %2011 = vmatprep.subr.mxu0 0.0
  %2012 = vmatpush1.msra.mxu0 0.0
  %2013 = vmatprep.subr.mxu0 0.0
  %2014 = vmatpush1.msra.mxu0 0.0
  %2015 = vmatprep.subr.mxu0 0.0
  %2016 = vmatpush1.msra.mxu0 0.0
  %2017 = vmatprep.subr.mxu0 0.0
  %2018 = vmatpush1.msra.mxu0 0.0
  %2019 = vmatprep.mubr.f32.mxu0 0.0
  %2020 = vmatmul.mubr.f32.gmra.mrb[0].mxu0 %v1953
  %v2021 = vpop.f32.mrb[0].mxu0
  %v2022 = vadd.f32 0.0, %v2021
  %v2023 = vpop.f32.mrb[0].mxu0
  %2024 = vdwg.mxu0
  %v2026 = vsel %vm312, %v1951, 0
  %2028 = vmatprep.subr.mxu0 0.0
  %2029 = vmatpush1.msra.mxu0 %v73
  %2030 = vmatprep.subr.mxu0 0.0
  %2031 = vmatpush1.msra.mxu0 0.0
  %2032 = vmatprep.subr.mxu0 0.0
  %2033 = vmatpush1.msra.mxu0 0.0
  %2034 = vmatprep.subr.mxu0 0.0
  %2035 = vmatpush1.msra.mxu0 0.0
  %2036 = vmatprep.subr.mxu0 0.0
  %2037 = vmatpush1.msra.mxu0 0.0
  %2038 = vmatprep.subr.mxu0 0.0
  %2039 = vmatpush1.msra.mxu0 0.0
  %2040 = vmatprep.subr.mxu0 0.0
  %2041 = vmatpush1.msra.mxu0 0.0
  %2042 = vmatprep.subr.mxu0 0.0
  %2043 = vmatpush1.msra.mxu0 0.0
  %2044 = vmatprep.subr.mxu0 0.0
  %2045 = vmatpush1.msra.mxu0 0.0
  %2046 = vmatprep.subr.mxu0 0.0
  %2047 = vmatpush1.msra.mxu0 0.0
  %2048 = vmatprep.subr.mxu0 0.0
  %2049 = vmatpush1.msra.mxu0 0.0
  %2050 = vmatprep.subr.mxu0 0.0
  %2051 = vmatpush1.msra.mxu0 0.0
  %2052 = vmatprep.subr.mxu0 0.0
  %2053 = vmatpush1.msra.mxu0 0.0
  %2054 = vmatprep.subr.mxu0 0.0
  %2055 = vmatpush1.msra.mxu0 0.0
  %2056 = vmatprep.subr.mxu0 0.0
  %2057 = vmatpush1.msra.mxu0 0.0
  %2058 = vmatprep.subr.mxu0 0.0
  %2059 = vmatpush1.msra.mxu0 0.0
  %2060 = vmatprep.subr.mxu0 0.0
  %2061 = vmatpush1.msra.mxu0 0.0
  %2062 = vmatprep.subr.mxu0 0.0
  %2063 = vmatpush1.msra.mxu0 0.0
  %2064 = vmatprep.subr.mxu0 0.0
  %2065 = vmatpush1.msra.mxu0 0.0
  %2066 = vmatprep.subr.mxu0 0.0
  %2067 = vmatpush1.msra.mxu0 0.0
  %2068 = vmatprep.subr.mxu0 0.0
  %2069 = vmatpush1.msra.mxu0 0.0
  %2070 = vmatprep.subr.mxu0 0.0
  %2071 = vmatpush1.msra.mxu0 0.0
  %2072 = vmatprep.subr.mxu0 0.0
  %2073 = vmatpush1.msra.mxu0 0.0
  %2074 = vmatprep.subr.mxu0 0.0
  %2075 = vmatpush1.msra.mxu0 0.0
  %2076 = vmatprep.subr.mxu0 0.0
  %2077 = vmatpush1.msra.mxu0 0.0
  %2078 = vmatprep.subr.mxu0 0.0
  %2079 = vmatpush1.msra.mxu0 0.0
  %2080 = vmatprep.subr.mxu0 0.0
  %2081 = vmatpush1.msra.mxu0 0.0
  %2082 = vmatprep.subr.mxu0 0.0
  %2083 = vmatpush1.msra.mxu0 0.0
  %2084 = vmatprep.subr.mxu0 0.0
  %2085 = vmatpush1.msra.mxu0 0.0
  %2086 = vmatprep.subr.mxu0 0.0
  %2087 = vmatpush1.msra.mxu0 0.0
  %2088 = vmatprep.subr.mxu0 0.0
  %2089 = vmatpush1.msra.mxu0 0.0
  %2090 = vmatprep.subr.mxu0 0.0
  %2091 = vmatpush1.msra.mxu0 0.0
  %2092 = vmatprep.mubr.f32.mxu0 0.0
  %2093 = vmatmul.mubr.f32.gmra.mrb[0].mxu0 %v2026
  %v2094 = vpop.f32.mrb[0].mxu0
  %v2095 = vadd.f32 0.0, %v2094
  %v2096 = vpop.f32.mrb[0].mxu0
  %2097 = vdwg.mxu0
  %v2098 = vlaneseq
  %v2099 = vshrl.u32 %v2098, 7
  %v2100 = vsub.s32 0, %v2099
  %v2101 = vrot.slane %v2022, %v2100
  %v2102 = vmul.f32 %v1703, %v2101
  %v2103 = vlaneseq
  %v2104 = vshrl.u32 %v2103, 7
  %v2105 = vsub.s32 0, %v2104
  %v2106 = vrot.slane %v2095, %v2105
  %v2107 = vadd.f32 %v2102, %v2106
  %v2108 = vmax.f32 %v2107, 0.0
  %v2109 = vmin.f32 %v2108, 10.0
  %v2110 = vmul.f32 %v2109, 1.5
  %v2111 = vround.ne.pseudo %v2110
  %v2112 = vmul.f32 %v2111, %v682
  %v2113 = vpack.c.bf16 %v2112, %v2112
  %v2114 = vld [vmem:[%s10] sm:$0xf]
  %v2115 = vld [vmem:[%s10 + $0x4] sm:$0xf]
  %v2116 = vld [vmem:[%s10 + $0x8] sm:$0xf]
  %v2117 = vld [vmem:[%s10 + $0xc] sm:$0xf]
  %v2118 = vld [vmem:[%s10 + $0x10] sm:$0xf]
  %v2119 = vld [vmem:[%s10 + $0x14] sm:$0xf]
  %v2120 = vld [vmem:[%s10 + $0x18] sm:$0xf]
  %v2121 = vld [vmem:[%s10 + $0x1c] sm:$0xf]
  %v2122 = vld [vmem:[%s10 + $0x20] sm:$0xf]
  %v2123 = vld [vmem:[%s10 + $0x24] sm:$0xf]
  %v2124 = vld [vmem:[%s10 + $0x28] sm:$0xf]
  %v2125 = vld [vmem:[%s10 + $0x2c] sm:$0xf]
  %v2126 = vld [vmem:[%s10 + $0x30] sm:$0xf]
  %v2127 = vld [vmem:[%s10 + $0x34] sm:$0xf]
  %v2128 = vld [vmem:[%s10 + $0x38] sm:$0xf]
  %v2129 = vld [vmem:[%s10 + $0x3c] sm:$0xf]
  %v2146 = vunpack.c.l.b16 %v2114
  %v2147 = vunpack.c.l.b16 %v2115
  %v2148 = vunpack.c.l.b16 %v2116
  %v2149 = vunpack.c.l.b16 %v2117
  %v2150 = vunpack.c.l.b16 %v2118
  %v2151 = vunpack.c.l.b16 %v2119
  %v2152 = vunpack.c.l.b16 %v2120
  %v2153 = vunpack.c.l.b16 %v2121
  %v2154 = vunpack.c.l.b16 %v2122
  %v2155 = vunpack.c.l.b16 %v2123
  %v2156 = vunpack.c.l.b16 %v2124
  %v2157 = vunpack.c.l.b16 %v2125
  %v2158 = vunpack.c.l.b16 %v2126
  %v2159 = vunpack.c.l.b16 %v2127
  %v2160 = vunpack.c.l.b16 %v2128
  %v2161 = vunpack.c.l.b16 %v2129
  %v2162 = vpack.c.b16 %v2147, %v2146
  %v2163 = vpack.c.b16 %v2149, %v2148
  %v2164 = vpack.c.b16 %v2151, %v2150
  %v2165 = vpack.c.b16 %v2153, %v2152
  %v2166 = vpack.c.b16 %v2155, %v2154
  %v2167 = vpack.c.b16 %v2157, %v2156
  %v2168 = vpack.c.b16 %v2159, %v2158
  %v2169 = vpack.c.b16 %v2161, %v2160
  %2178 = vmatprep.subr.bf16.mxu0 0
  %2179 = vmatpush1.bf16.msra.mxu0 %v2162
  %2180 = vmatprep.subr.bf16.mxu0 0
  %2181 = vmatpush1.bf16.msra.mxu0 %v2163
  %2182 = vmatprep.subr.bf16.mxu0 0
  %2183 = vmatpush1.bf16.msra.mxu0 %v2164
  %2184 = vmatprep.subr.bf16.mxu0 0
  %2185 = vmatpush1.bf16.msra.mxu0 %v2165
  %2186 = vmatprep.subr.bf16.mxu0 0
  %2187 = vmatpush1.bf16.msra.mxu0 %v2166
  %2188 = vmatprep.subr.bf16.mxu0 0
  %2189 = vmatpush1.bf16.msra.mxu0 %v2167
  %2190 = vmatprep.subr.bf16.mxu0 0
  %2191 = vmatpush1.bf16.msra.mxu0 %v2168
  %2192 = vmatprep.subr.bf16.mxu0 0
  %2193 = vmatpush1.bf16.msra.mxu0 %v2169
  %2194 = vmatprep.subr.bf16.mxu0 0
  %2195 = vmatpush1.bf16.msra.mxu0 0
  %2196 = vmatprep.subr.bf16.mxu0 0
  %2197 = vmatpush1.bf16.msra.mxu0 0
  %2198 = vmatprep.subr.bf16.mxu0 0
  %2199 = vmatpush1.bf16.msra.mxu0 0
  %2200 = vmatprep.subr.bf16.mxu0 0
  %2201 = vmatpush1.bf16.msra.mxu0 0
  %2202 = vmatprep.subr.bf16.mxu0 0
  %2203 = vmatpush1.bf16.msra.mxu0 0
  %2204 = vmatprep.subr.bf16.mxu0 0
  %2205 = vmatpush1.bf16.msra.mxu0 0
  %2206 = vmatprep.subr.bf16.mxu0 0
  %2207 = vmatpush1.bf16.msra.mxu0 0
  %2208 = vmatprep.subr.bf16.mxu0 0
  %2209 = vmatpush1.bf16.msra.mxu0 0
  %2210 = vmatprep.mubr.bf16.mxu0 0
  %2211 = vmatmul.mubr.bf16.gmra.mrb[0].mxu0 %v2113
  %v2212 = vpop.f32.mrb[0].mxu0
  %v2213 = vadd.f32 0.0, %v2212
  %v2214 = vpop.f32.mrb[0].mxu0
  %v2215 = vpop.f32.mrb[0].mxu0
  %v2216 = vpop.f32.mrb[0].mxu0
  %2217 = vdwg.mxu0
  %v2220 = vunpack.c.l.s4 1966171168
  %v2221 = vunpack.c.0.s8 %v2220
  %v2222 = vlaneseq
  %v2223 = vshrl.u32 %v2222, 7
  %v2224 = vsub.s32 %v2221, %v2223
  %v2225 = vrot.slane %v2213, %v2224
  %v2226 = vcombine.high %v2225, %v2225
  %v2228 = vunpack.c.l.s4 1966171168
  %v2229 = vunpack.c.0.s8 %v2228
  %v2230 = vlaneseq
  %v2231 = vshrl.u32 %v2230, 7
  %v2232 = vsub.s32 %v2229, %v2231
  %v2233 = vrot.slane %v2225, %v2232
  %v2235 = vunpack.c.l.s4 1966171168
  %v2236 = vunpack.c.0.s8 %v2235
  %v2237 = vlaneseq
  %v2238 = vshrl.u32 %v2237, 7
  %v2239 = vsub.s32 %v2236, %v2238
  %v2240 = vrot.slane %v2226, %v2239
  %v2241 = vlaneseq
  %v2242 = vshrl.u32 %v2241, 7
  %v2243 = vsub.s32 0, %v2242
  %v2244 = vrot.slane %v2233, %v2243
  %v2245 = vlaneseq
  %v2246 = vshrl.u32 %v2245, 7
  %v2247 = vsub.s32 0, %v2246
  %v2248 = vrot.slane %v2240, %v2247
  %v2251 = vadd.f32 %v2244, %v1567
  %v2252 = vadd.f32 %v2244, %v1568
  %v2253 = vadd.f32 %v2244, %v1569
  %v2254 = vadd.f32 %v2248, %v1570
  %v2255 = vadd.f32 %v2248, %v1571
  %v2256 = vadd.f32 %v2248, %v1572
  %v2257 = vmax.f32 %v2251, 0.0
  %v2258 = vmax.f32 %v2252, 0.0
  %v2259 = vmax.f32 %v2253, 0.0
  %v2260 = vmax.f32 %v2254, 0.0
  %v2261 = vmax.f32 %v2255, 0.0
  %v2262 = vmax.f32 %v2256, 0.0
  %v2263 = vmin.f32 %v2257, 10.0
  %v2264 = vmin.f32 %v2258, 10.0
  %v2265 = vmin.f32 %v2259, 10.0
  %v2266 = vmin.f32 %v2260, 10.0
  %v2267 = vmin.f32 %v2261, 10.0
  %v2268 = vmin.f32 %v2262, 10.0
  %v2269 = vmul.f32 %v2263, 1.5
  %v2270 = vmul.f32 %v2264, 1.5
  %v2271 = vmul.f32 %v2265, 1.5
  %v2272 = vmul.f32 %v2266, 1.5
  %v2273 = vmul.f32 %v2267, 1.5
  %v2274 = vmul.f32 %v2268, 1.5
  %v2275 = vround.ne.pseudo %v2269
  %v2276 = vround.ne.pseudo %v2270
  %v2277 = vround.ne.pseudo %v2271
  %v2278 = vround.ne.pseudo %v2272
  %v2279 = vround.ne.pseudo %v2273
  %v2280 = vround.ne.pseudo %v2274
  %v2281 = vmul.f32 %v2275, %v682
  %v2282 = vmul.f32 %v2276, %v682
  %v2283 = vmul.f32 %v2277, %v682
  %v2284 = vmul.f32 %v2278, %v682
  %v2285 = vmul.f32 %v2279, %v682
  %v2286 = vmul.f32 %v2280, %v682
  %2287 = vst [vmem:[%s15] sm:$0xff] %v2281
  %2288 = vst [vmem:[%s15 + $0x8] sm:$0xff] %v2282
  %2289 = vst [vmem:[%s15 + $0x10] sm:$0xf] %v2283
  %2290 = vst [vmem:[%s15 + $0x18] sm:$0xff] %v2284
  %2291 = vst [vmem:[%s15 + $0x20] sm:$0xff] %v2285
  %2292 = vst [vmem:[%s15 + $0x28] sm:$0xf] %v2286
  // Predicated region
  $region62: #{bc_res_block.1} parent=0 // pred_check
    _
  $region63: #{bc_res_block.1} parent=0 // pred_check_branch
    %2294 = sbr.rel (0) target = $region65
  $region64: #{bc_res_block.1} parent=0 // pred_region
    _
  $region65: #{bc_res_block.1} parent=0 // pred_fallthru
    _
  // Predicated region
  $region66: #{bc_res_block.1} parent=0 // pred_check
    _
  $region67: #{bc_res_block.1} parent=0 // pred_check_branch
    %2296 = sbr.rel (0) target = $region69
  $region68: #{bc_res_block.1} parent=0 // pred_region
    _
  $region69: #{bc_res_block.1} parent=0 // pred_fallthru
    _

</llo_original>
